<compile_context>
chip_gen: v6e
topology: v6e:2x2x1
jax: 0.10.0
libtpu: 0.0.40
codegen_flags: <defaults>
</compile_context>

<pallas_src>
import math

import jax
import jax.numpy as jnp
from jax.experimental import pallas as pl
from jax.experimental.pallas import tpu as pltpu

_LANE = 128
_HIGHEST = jax.lax.Precision.HIGHEST


# ----------------------------- Pallas kernel -------------------------------

def _actor_kernel(x_ref,
                  w1_ref, b1_ref,
                  w2_ref, b2_ref,
                  w3_ref, b3_ref,
                  wm_ref, bm_ref,
                  mean_ref):
    # Feature-major: x is (state_dim, tb); every layer is W @ h + b with the
    # batch dimension on the lane axis (lane-dense loads/stores, N = tb on MXU).
    x = x_ref[...]                                            # (S, tb)

    h = jnp.tanh(jnp.dot(w1_ref[...], x,
                         preferred_element_type=jnp.float32,
                         precision=_HIGHEST) + b1_ref[...])   # (128, tb)
    h = jnp.tanh(jnp.dot(w2_ref[...], h,
                         preferred_element_type=jnp.float32,
                         precision=_HIGHEST) + b2_ref[...])   # (64, tb)
    h = jnp.tanh(jnp.dot(w3_ref[...], h,
                         preferred_element_type=jnp.float32,
                         precision=_HIGHEST) + b3_ref[...])   # (32, tb)

    mean = jnp.tanh(jnp.dot(wm_ref[...], h,
                            preferred_element_type=jnp.float32,
                            precision=_HIGHEST) + bm_ref[...])  # (A, tb)
    mean_ref[...] = mean.astype(mean_ref.dtype)


# ------------------------------ wrapper ------------------------------------

def _cdiv(a, b):
    return -(-a // b)


def _round_up(x, m):
    return _cdiv(x, m) * m


def _actor_forward_xla(state, params):
    """Pure-XLA forward (used as tiny-batch fallback and as the reference)."""
    h = jnp.tanh(jnp.dot(state, params["w1"].T, precision=_HIGHEST) + params["b1"][:, 0])
    h = jnp.tanh(jnp.dot(h, params["w2"].T, precision=_HIGHEST) + params["b2"][:, 0])
    h = jnp.tanh(jnp.dot(h, params["w3"].T, precision=_HIGHEST) + params["b3"][:, 0])
    mean = jnp.tanh(jnp.dot(h, params["wm"].T, precision=_HIGHEST) + params["bm"][:, 0])
    std = jnp.broadcast_to(jnp.exp(params["log_std"])[None, :], mean.shape)
    return mean, std


def actor_forward(state, params, *, block_batch=2048, use_pallas=None):
    """JAX/Pallas equivalent of Actor.forward. Returns (mean, std)."""
    state = jnp.asarray(state, dtype=jnp.float32)
    if state.ndim == 1:
        state = state[None, :]                                # unsqueeze(0)

    B, S = state.shape
    A = params["wm"].shape[0]

    # Tiny batches: plain XLA fuses the four small matmuls; the pallas_call
    # launch/DMA fixed cost would dominate.
    if use_pallas is None:
        use_pallas = B >= 64
    if not use_pallas:
        return _actor_forward_xla(state, params)

    # --- tile selection (avoid padding blowup; keep >=2 tiles at big batch) ---
    num_tiles = max(1, _cdiv(B, block_batch))
    if num_tiles == 1 and B >= 8 * _LANE:
        # Keep at least two grid steps at large batch so both TensorCores get
        # work on v7x (no-op cost elsewhere: VMEM is nowhere near the limit).
        num_tiles = 2
    tb = _round_up(_cdiv(B, num_tiles), _LANE)                # lane-dense tile
    padded_B = num_tiles * tb

    # Feature-major input: (S, padded_B).
    x_t = state.T
    if padded_B != B:
        x_t = jnp.pad(x_t, ((0, 0), (0, padded_B - B)))

    weight_args = (
        params["w1"], params["b1"],
        params["w2"], params["b2"],
        params["w3"], params["b3"],
        params["wm"], params["bm"],
    )

    # State / output tiles march over the batch (lane axis); weights stay
    # pinned in VMEM via constant index_maps.
    state_spec = pl.BlockSpec((S, tb), lambda i: (0, i))
    weight_specs = [pl.BlockSpec(w.shape, lambda i: (0, 0)) for w in weight_args]
    out_spec = pl.BlockSpec((A, tb), lambda i: (0, i))

    weight_bytes = sum(int(w.size) * 4 for w in weight_args)
    cost = pl.CostEstimate(
        flops=2 * padded_B * (S * 128 + 128 * 64 + 64 * 32 + 32 * A),
        transcendentals=padded_B * (128 + 64 + 32 + A),
        bytes_accessed=padded_B * (S + A) * 4 + weight_bytes,
    )

    mean_t = pl.pallas_call(
        _actor_kernel,
        out_shape=jax.ShapeDtypeStruct((A, padded_B), jnp.float32),
        grid=(num_tiles,),
        in_specs=[state_spec] + weight_specs,
        out_specs=out_spec,
        compiler_params=pltpu.CompilerParams(
            dimension_semantics=("parallel",)),
        cost_estimate=cost,
    )(x_t, *weight_args)

    mean = mean_t[:, :B].T                                    # (B, A)

    # std = exp(log_std).expand_as(mean) — batch-invariant, computed outside
    # the kernel (no HBM write traffic, no per-row exp).
    std = jnp.broadcast_to(jnp.exp(params["log_std"])[None, :], mean.shape)
    return mean, std


# --------------------------- parameter setup --------------------------------

def init_actor_params(key, state_dim, action_dim):
    """Deterministic init matching PyTorch nn.Linear default (U(-k, k), k=1/sqrt(fan_in)).
    Weights stored PyTorch-native (out, in); biases stored (out, 1) for the
    feature-major kernel; log_std stored (action_dim,)."""
    dims = [(state_dim, 128), (128, 64), (64, 32), (32, action_dim)]
    names = ["1", "2", "3", "m"]
    params = {}
    for (fan_in, fan_out), n in zip(dims, names):
        key, kw, kb = jax.random.split(key, 3)
        bound = 1.0 / math.sqrt(fan_in)
        params[f"w{n}"] = jax.random.uniform(
            kw, (fan_out, fan_in), jnp.float32, minval=-bound, maxval=bound)
        params[f"b{n}"] = jax.random.uniform(
            kb, (fan_out, 1), jnp.float32, minval=-bound, maxval=bound)
    params["log_std"] = jnp.zeros((action_dim,), jnp.float32)
    return params


# pure-JAX reference for sanity checking
def actor_forward_ref(state, params):
    x = jnp.asarray(state, jnp.float32)
    if x.ndim == 1:
        x = x[None, :]
    return _actor_forward_xla(x, params)


# --------------------------------- main -------------------------------------

if __name__ == "__main__":
    key = jax.random.PRNGKey(0)
    k_params, k1, k2, k3 = jax.random.split(key, 4)

    STATE_DIM = 8
    ACTION_DIM = 4

    params = init_actor_params(k_params, STATE_DIM, ACTION_DIM)

    # 1) tiny batch forced through the Pallas path (pads to a single 128-lane tile)
    state = jax.random.normal(k1, (2, STATE_DIM), jnp.float32)
    mean, std = actor_forward(state, params, use_pallas=True)
    jax.block_until_ready((mean, std))
    mean_ref, std_ref = actor_forward_ref(state, params)
    assert mean.shape == (2, ACTION_DIM) and std.shape == (2, ACTION_DIM)
    assert jnp.allclose(mean, mean_ref, atol=1e-5, rtol=1e-5)
    assert jnp.allclose(std, std_ref, atol=1e-5, rtol=1e-5)

    # 2) same tiny batch through the default path -> pure-XLA fallback
    mean_x, std_x = actor_forward(state, params)
    jax.block_until_ready((mean_x, std_x))
    assert jnp.allclose(mean_x, mean_ref, atol=1e-5, rtol=1e-5)
    assert jnp.allclose(std_x, std_ref, atol=1e-5, rtol=1e-5)

    # 3) non-multiple-of-tile batch, multi-step grid (block_batch=128 -> 3 tiles)
    state2 = jax.random.normal(k2, (300, STATE_DIM), jnp.float32)
    mean2, std2 = actor_forward(state2, params, block_batch=128, use_pallas=True)
    jax.block_until_ready((mean2, std2))
    mean2_ref, std2_ref = actor_forward_ref(state2, params)
    assert mean2.shape == (300, ACTION_DIM)
    assert jnp.allclose(mean2, mean2_ref, atol=1e-5, rtol=1e-5)
    assert jnp.allclose(std2, std2_ref, atol=1e-5, rtol=1e-5)

    # 4) 1-D state (unsqueeze(0) path)
    state3 = jax.random.normal(k3, (STATE_DIM,), jnp.float32)
    mean3, std3 = actor_forward(state3, params, use_pallas=True)
    jax.block_until_ready((mean3, std3))
    mean3_ref, std3_ref = actor_forward_ref(state3, params)
    assert mean3.shape == (1, ACTION_DIM)
    assert jnp.allclose(mean3, mean3_ref, atol=1e-5, rtol=1e-5)
    assert jnp.allclose(std3, std3_ref, atol=1e-5, rtol=1e-5)

    print("KERNEL_OK")
</pallas_src>

<mosaic_0001>
module attributes {stable_mosaic.version = 11 : i64} {
  func.func @_actor_kernel(%arg0: i32, %arg1: memref<8x128xf32, #tpu.memory_space<vmem>>, %arg2: memref<128x8xf32, #tpu.memory_space<vmem>>, %arg3: memref<128x1xf32, #tpu.memory_space<vmem>>, %arg4: memref<64x128xf32, #tpu.memory_space<vmem>>, %arg5: memref<64x1xf32, #tpu.memory_space<vmem>>, %arg6: memref<32x64xf32, #tpu.memory_space<vmem>>, %arg7: memref<32x1xf32, #tpu.memory_space<vmem>>, %arg8: memref<4x32xf32, #tpu.memory_space<vmem>>, %arg9: memref<4x1xf32, #tpu.memory_space<vmem>>, %arg10: memref<4x128xf32, #tpu.memory_space<vmem>>) attributes {dimension_semantics = [#tpu.dimension_semantics<parallel>], iteration_bounds = array<i64: 1>, scalar_prefetch = 0 : i64, scratch_operands = 0 : i64, tpu.core_type = #tpu.core_type<tc>, window_params = [{transform_indices = @transform_0, window_bounds = array<i64: 8, 128>}, {pipeline_mode = #tpu.pipeline_mode<synchronous>, transform_indices = @transform_1, window_bounds = array<i64: 128, 8>}, {pipeline_mode = #tpu.pipeline_mode<synchronous>, transform_indices = @transform_2, window_bounds = array<i64: 128, 1>}, {pipeline_mode = #tpu.pipeline_mode<synchronous>, transform_indices = @transform_3, window_bounds = array<i64: 64, 128>}, {pipeline_mode = #tpu.pipeline_mode<synchronous>, transform_indices = @transform_4, window_bounds = array<i64: 64, 1>}, {pipeline_mode = #tpu.pipeline_mode<synchronous>, transform_indices = @transform_5, window_bounds = array<i64: 32, 64>}, {pipeline_mode = #tpu.pipeline_mode<synchronous>, transform_indices = @transform_6, window_bounds = array<i64: 32, 1>}, {pipeline_mode = #tpu.pipeline_mode<synchronous>, transform_indices = @transform_7, window_bounds = array<i64: 4, 32>}, {pipeline_mode = #tpu.pipeline_mode<synchronous>, transform_indices = @transform_8, window_bounds = array<i64: 4, 1>}, {transform_indices = @transform_9, window_bounds = array<i64: 4, 128>}]} {
    %c0 = arith.constant 0 : index
    %c0_0 = arith.constant 0 : index
    %0 = vector.load %arg1[%c0, %c0_0] : memref<8x128xf32, #tpu.memory_space<vmem>>, vector<8x128xf32>
    %c0_1 = arith.constant 0 : index
    %c0_2 = arith.constant 0 : index
    %1 = vector.load %arg2[%c0_1, %c0_2] : memref<128x8xf32, #tpu.memory_space<vmem>>, vector<128x8xf32>
    %cst = arith.constant dense<0.000000e+00> : vector<128x128xf32>
    %2 = tpu.matmul %1, %0, %cst {dimension_numbers = #tpu.dot_dimension_numbers<[1], [0], [0], [1], [0, 0, 1, 1], [], []>, precision = #tpu.contract_precision<fp32>} : vector<128x8xf32>, vector<8x128xf32>, vector<128x128xf32> -> vector<128x128xf32>
    %c0_3 = arith.constant 0 : index
    %c0_4 = arith.constant 0 : index
    %3 = vector.load %arg3[%c0_3, %c0_4] : memref<128x1xf32, #tpu.memory_space<vmem>>, vector<128x1xf32>
    %4 = vector.broadcast %3 : vector<128x1xf32> to vector<128x128xf32>
    %5 = arith.addf %2, %4 : vector<128x128xf32>
    %6 = math.tanh %5 : vector<128x128xf32>
    %c0_5 = arith.constant 0 : index
    %c0_6 = arith.constant 0 : index
    %7 = vector.load %arg4[%c0_5, %c0_6] : memref<64x128xf32, #tpu.memory_space<vmem>>, vector<64x128xf32>
    %cst_7 = arith.constant dense<0.000000e+00> : vector<64x128xf32>
    %8 = tpu.matmul %7, %6, %cst_7 {dimension_numbers = #tpu.dot_dimension_numbers<[1], [0], [0], [1], [0, 0, 1, 1], [], []>, precision = #tpu.contract_precision<fp32>} : vector<64x128xf32>, vector<128x128xf32>, vector<64x128xf32> -> vector<64x128xf32>
    %c0_8 = arith.constant 0 : index
    %c0_9 = arith.constant 0 : index
    %9 = vector.load %arg5[%c0_8, %c0_9] : memref<64x1xf32, #tpu.memory_space<vmem>>, vector<64x1xf32>
    %10 = vector.broadcast %9 : vector<64x1xf32> to vector<64x128xf32>
    %11 = arith.addf %8, %10 : vector<64x128xf32>
    %12 = math.tanh %11 : vector<64x128xf32>
    %c0_10 = arith.constant 0 : index
    %c0_11 = arith.constant 0 : index
    %13 = vector.load %arg6[%c0_10, %c0_11] : memref<32x64xf32, #tpu.memory_space<vmem>>, vector<32x64xf32>
    %cst_12 = arith.constant dense<0.000000e+00> : vector<32x128xf32>
    %14 = tpu.matmul %13, %12, %cst_12 {dimension_numbers = #tpu.dot_dimension_numbers<[1], [0], [0], [1], [0, 0, 1, 1], [], []>, precision = #tpu.contract_precision<fp32>} : vector<32x64xf32>, vector<64x128xf32>, vector<32x128xf32> -> vector<32x128xf32>
    %c0_13 = arith.constant 0 : index
    %c0_14 = arith.constant 0 : index
    %15 = vector.load %arg7[%c0_13, %c0_14] : memref<32x1xf32, #tpu.memory_space<vmem>>, vector<32x1xf32>
    %16 = vector.broadcast %15 : vector<32x1xf32> to vector<32x128xf32>
    %17 = arith.addf %14, %16 : vector<32x128xf32>
    %18 = math.tanh %17 : vector<32x128xf32>
    %c0_15 = arith.constant 0 : index
    %c0_16 = arith.constant 0 : index
    %19 = vector.load %arg8[%c0_15, %c0_16] : memref<4x32xf32, #tpu.memory_space<vmem>>, vector<4x32xf32>
    %cst_17 = arith.constant dense<0.000000e+00> : vector<4x128xf32>
    %20 = tpu.matmul %19, %18, %cst_17 {dimension_numbers = #tpu.dot_dimension_numbers<[1], [0], [0], [1], [0, 0, 1, 1], [], []>, precision = #tpu.contract_precision<fp32>} : vector<4x32xf32>, vector<32x128xf32>, vector<4x128xf32> -> vector<4x128xf32>
    %c0_18 = arith.constant 0 : index
    %c0_19 = arith.constant 0 : index
    %21 = vector.load %arg9[%c0_18, %c0_19] : memref<4x1xf32, #tpu.memory_space<vmem>>, vector<4x1xf32>
    %22 = vector.broadcast %21 : vector<4x1xf32> to vector<4x128xf32>
    %23 = arith.addf %20, %22 : vector<4x128xf32>
    %24 = math.tanh %23 : vector<4x128xf32>
    %c0_20 = arith.constant 0 : index
    %c0_21 = arith.constant 0 : index
    %25 = vector.load %arg10[%c0_20, %c0_21] : memref<4x128xf32, #tpu.memory_space<vmem>>, vector<4x128xf32>
    tpu.vector_store %arg10[%c0_20, %c0_21], %24 {strides = array<i32>} : memref<4x128xf32, #tpu.memory_space<vmem>>, vector<4x128xf32>,
    return
  }
  func.func @transform_0(%arg0: i32) -> (i32, i32) {
    %c0_i32 = arith.constant 0 : i32
    %c0_i32_0 = arith.constant 0 : i32
    return %c0_i32, %arg0 : i32, i32
  }
  func.func @transform_1(%arg0: i32) -> (i32, i32) {
    %c0_i32 = arith.constant 0 : i32
    %c0_i32_0 = arith.constant 0 : i32
    %c0_i32_1 = arith.constant 0 : i32
    return %c0_i32, %c0_i32_0 : i32, i32
  }
  func.func @transform_2(%arg0: i32) -> (i32, i32) {
    %c0_i32 = arith.constant 0 : i32
    %c0_i32_0 = arith.constant 0 : i32
    %c0_i32_1 = arith.constant 0 : i32
    return %c0_i32, %c0_i32_0 : i32, i32
  }
  func.func @transform_3(%arg0: i32) -> (i32, i32) {
    %c0_i32 = arith.constant 0 : i32
    %c0_i32_0 = arith.constant 0 : i32
    %c0_i32_1 = arith.constant 0 : i32
    return %c0_i32, %c0_i32_0 : i32, i32
  }
  func.func @transform_4(%arg0: i32) -> (i32, i32) {
    %c0_i32 = arith.constant 0 : i32
    %c0_i32_0 = arith.constant 0 : i32
    %c0_i32_1 = arith.constant 0 : i32
    return %c0_i32, %c0_i32_0 : i32, i32
  }
  func.func @transform_5(%arg0: i32) -> (i32, i32) {
    %c0_i32 = arith.constant 0 : i32
    %c0_i32_0 = arith.constant 0 : i32
    %c0_i32_1 = arith.constant 0 : i32
    return %c0_i32, %c0_i32_0 : i32, i32
  }
  func.func @transform_6(%arg0: i32) -> (i32, i32) {
    %c0_i32 = arith.constant 0 : i32
    %c0_i32_0 = arith.constant 0 : i32
    %c0_i32_1 = arith.constant 0 : i32
    return %c0_i32, %c0_i32_0 : i32, i32
  }
  func.func @transform_7(%arg0: i32) -> (i32, i32) {
    %c0_i32 = arith.constant 0 : i32
    %c0_i32_0 = arith.constant 0 : i32
    %c0_i32_1 = arith.constant 0 : i32
    return %c0_i32, %c0_i32_0 : i32, i32
  }
  func.func @transform_8(%arg0: i32) -> (i32, i32) {
    %c0_i32 = arith.constant 0 : i32
    %c0_i32_0 = arith.constant 0 : i32
    %c0_i32_1 = arith.constant 0 : i32
    return %c0_i32, %c0_i32_0 : i32, i32
  }
  func.func @transform_9(%arg0: i32) -> (i32, i32) {
    %c0_i32 = arith.constant 0 : i32
    %c0_i32_0 = arith.constant 0 : i32
    return %c0_i32, %arg0 : i32, i32
  }
}

</mosaic_0001>

<llo_original>
// kernel: tpu_custom_call.1
$region0: #{tpu_custom_call.1}
  #allocation0 [shape = 'u32[]', space=smem, size = 0x4, offset = 0x4, fixed_abs, tag = 'smem constant byte address 0x4 - core index']
  #allocation1 [shape = 'u32[144,128]{1,0:T(1,128)}', space=vmem, size = 0x12000, scoped, tag = 'internal scratch']
  %s0 = inlined_call_operand.vmem [shape: f32[8,128], index: 0, kind: input, shape index: {}]
  %s1 = inlined_call_operand.vmem [shape: f32[128,8], index: 1, kind: input, shape index: {}]
  %s2 = inlined_call_operand.vmem [shape: f32[128,1], index: 2, kind: input, shape index: {}]
  %s3 = inlined_call_operand.vmem [shape: f32[64,128], index: 3, kind: input, shape index: {}]
  %s4 = inlined_call_operand.vmem [shape: f32[64,1], index: 4, kind: input, shape index: {}]
  %s5 = inlined_call_operand.vmem [shape: f32[32,64], index: 5, kind: input, shape index: {}]
  %s6 = inlined_call_operand.vmem [shape: f32[32,1], index: 6, kind: input, shape index: {}]
  %s7 = inlined_call_operand.vmem [shape: f32[4,32], index: 7, kind: input, shape index: {}]
  %s8 = inlined_call_operand.vmem [shape: f32[4,1], index: 8, kind: input, shape index: {}]
  %s9 = inlined_call_operand.hbm [shape: f32[4,128], index: 9, kind: output, shape index: {}]
  %s10 = sld [smem:[#allocation0]]
  $region46: #{tpu_custom_call.1} parent=0
    _
  %s12 = ssub.s32 1, %s10
  %s13 = scalar_select 0, %s12, %s10
  $region1: #{tpu_custom_call.1} parent=0
    #allocation2 [shape = 'u8[2048]{0}', space=vmem, size = 0x800, scoped, tag = 'output window, operand 0, single buffered']
    #allocation3 [shape = 's32[1]{0}', space=sflag, size = 0x4, scoped, tag = 'scoped memory for tpu_custom_call.1']
    %14 = vsyncpa [#allocation3], 0
    // Predicated region
    $region2: #{tpu_custom_call.1} parent=1 // pred_check
      _
    $region3: #{tpu_custom_call.1} parent=1 // pred_check_branch
      %16 = sbr.rel (0) target = $region5
    $region4: #{tpu_custom_call.1} parent=1 // pred_region
      _
    $region5: #{tpu_custom_call.1} parent=1 // pred_fallthru
      _
    // Predicated region
    $region6: #{tpu_custom_call.1} parent=1 // pred_check
      _
    $region7: #{tpu_custom_call.1} parent=1 // pred_check_branch
      %18 = sbr.rel (0) target = $region9
    $region8: #{tpu_custom_call.1} parent=1 // pred_region
      _
    $region9: #{tpu_custom_call.1} parent=1 // pred_fallthru
      _
    // Predicated region
    $region10: #{tpu_custom_call.1} parent=1 // pred_check
      _
    $region11: #{tpu_custom_call.1} parent=1 // pred_check_branch
      %20 = sbr.rel (0) target = $region13
    $region12: #{tpu_custom_call.1} parent=1 // pred_region
      _
    $region13: #{tpu_custom_call.1} parent=1 // pred_fallthru
      _
    // Predicated region
    $region14: #{tpu_custom_call.1} parent=1 // pred_check
      _
    $region15: #{tpu_custom_call.1} parent=1 // pred_check_branch
      %22 = sbr.rel (0) target = $region17
    $region16: #{tpu_custom_call.1} parent=1 // pred_region
      _
    $region17: #{tpu_custom_call.1} parent=1 // pred_fallthru
      _
    // Predicated region
    $region18: #{tpu_custom_call.1} parent=1 // pred_check
      _
    $region19: #{tpu_custom_call.1} parent=1 // pred_check_branch
      %24 = sbr.rel (0) target = $region21
    $region20: #{tpu_custom_call.1} parent=1 // pred_region
      _
    $region21: #{tpu_custom_call.1} parent=1 // pred_fallthru
      _
    // Predicated region
    $region22: #{tpu_custom_call.1} parent=1 // pred_check
      _
    $region23: #{tpu_custom_call.1} parent=1 // pred_check_branch
      %26 = sbr.rel (0) target = $region25
    $region24: #{tpu_custom_call.1} parent=1 // pred_region
      _
    $region25: #{tpu_custom_call.1} parent=1 // pred_fallthru
      _
    // Predicated region
    $region26: #{tpu_custom_call.1} parent=1 // pred_check
      _
    $region27: #{tpu_custom_call.1} parent=1 // pred_check_branch
      %28 = sbr.rel (0) target = $region29
    $region28: #{tpu_custom_call.1} parent=1 // pred_region
      _
    $region29: #{tpu_custom_call.1} parent=1 // pred_fallthru
      _
    // Predicated region
    $region30: #{tpu_custom_call.1} parent=1 // pred_check
      _
    $region31: #{tpu_custom_call.1} parent=1 // pred_check_branch
      %30 = sbr.rel (0) target = $region33
    $region32: #{tpu_custom_call.1} parent=1 // pred_region
      _
    $region33: #{tpu_custom_call.1} parent=1 // pred_fallthru
      _
    // Predicated region
    $region34: #{tpu_custom_call.1} parent=1 // pred_check
      _
    $region35: #{tpu_custom_call.1} parent=1 // pred_check_branch
      %32 = sbr.rel (0) target = $region37
    $region36: #{tpu_custom_call.1} parent=1 // pred_region
      _
    $region37: #{tpu_custom_call.1} parent=1 // pred_fallthru
      _
    %v33 = vld [vmem:[%s0] sm:$0xff]
    %v34 = vld [vmem:[%s1] sm:$0xff]
    %v35 = vld [vmem:[%s1 + $0x8] sm:$0xff]
    %v36 = vld [vmem:[%s1 + $0x10] sm:$0xff]
    %v37 = vld [vmem:[%s1 + $0x18] sm:$0xff]
    %v38 = vld [vmem:[%s1 + $0x20] sm:$0xff]
    %v39 = vld [vmem:[%s1 + $0x28] sm:$0xff]
    %v40 = vld [vmem:[%s1 + $0x30] sm:$0xff]
    %v41 = vld [vmem:[%s1 + $0x38] sm:$0xff]
    %v42 = vld [vmem:[%s1 + $0x40] sm:$0xff]
    %v43 = vld [vmem:[%s1 + $0x48] sm:$0xff]
    %v44 = vld [vmem:[%s1 + $0x50] sm:$0xff]
    %v45 = vld [vmem:[%s1 + $0x58] sm:$0xff]
    %v46 = vld [vmem:[%s1 + $0x60] sm:$0xff]
    %v47 = vld [vmem:[%s1 + $0x68] sm:$0xff]
    %v48 = vld [vmem:[%s1 + $0x70] sm:$0xff]
    %v49 = vld [vmem:[%s1 + $0x78] sm:$0xff]
    %v50 = vld [vmem:[%s2] sm:$0xff]
    %v51 = vld [vmem:[%s2 + $0x8] sm:$0xff]
    %v52 = vld [vmem:[%s2 + $0x10] sm:$0xff]
    %v53 = vld [vmem:[%s2 + $0x18] sm:$0xff]
    %v54 = vld [vmem:[%s2 + $0x20] sm:$0xff]
    %v55 = vld [vmem:[%s2 + $0x28] sm:$0xff]
    %v56 = vld [vmem:[%s2 + $0x30] sm:$0xff]
    %v57 = vld [vmem:[%s2 + $0x38] sm:$0xff]
    %v58 = vld [vmem:[%s2 + $0x40] sm:$0xff]
    %v59 = vld [vmem:[%s2 + $0x48] sm:$0xff]
    %v60 = vld [vmem:[%s2 + $0x50] sm:$0xff]
    %v61 = vld [vmem:[%s2 + $0x58] sm:$0xff]
    %v62 = vld [vmem:[%s2 + $0x60] sm:$0xff]
    %v63 = vld [vmem:[%s2 + $0x68] sm:$0xff]
    %v64 = vld [vmem:[%s2 + $0x70] sm:$0xff]
    %v65 = vld [vmem:[%s2 + $0x78] sm:$0xff]
    %67 = vset.pattern.permute.xlu0 0
    %68 = vperm.xlu0 %67, %v50
    %v69 = vpop.permute.xlu0 %68
    %72 = vset.pattern.permute.xlu0 0
    %73 = vperm.xlu0 %72, %v51
    %v74 = vpop.permute.xlu0 %73
    %77 = vset.pattern.permute.xlu0 0
    %78 = vperm.xlu0 %77, %v52
    %v79 = vpop.permute.xlu0 %78
    %82 = vset.pattern.permute.xlu0 0
    %83 = vperm.xlu0 %82, %v53
    %v84 = vpop.permute.xlu0 %83
    %87 = vset.pattern.permute.xlu0 0
    %88 = vperm.xlu0 %87, %v54
    %v89 = vpop.permute.xlu0 %88
    %92 = vset.pattern.permute.xlu0 0
    %93 = vperm.xlu0 %92, %v55
    %v94 = vpop.permute.xlu0 %93
    %97 = vset.pattern.permute.xlu0 0
    %98 = vperm.xlu0 %97, %v56
    %v99 = vpop.permute.xlu0 %98
    %102 = vset.pattern.permute.xlu0 0
    %103 = vperm.xlu0 %102, %v57
    %v104 = vpop.permute.xlu0 %103
    %107 = vset.pattern.permute.xlu0 0
    %108 = vperm.xlu0 %107, %v58
    %v109 = vpop.permute.xlu0 %108
    %112 = vset.pattern.permute.xlu0 0
    %113 = vperm.xlu0 %112, %v59
    %v114 = vpop.permute.xlu0 %113
    %117 = vset.pattern.permute.xlu0 0
    %118 = vperm.xlu0 %117, %v60
    %v119 = vpop.permute.xlu0 %118
    %122 = vset.pattern.permute.xlu0 0
    %123 = vperm.xlu0 %122, %v61
    %v124 = vpop.permute.xlu0 %123
    %127 = vset.pattern.permute.xlu0 0
    %128 = vperm.xlu0 %127, %v62
    %v129 = vpop.permute.xlu0 %128
    %132 = vset.pattern.permute.xlu0 0
    %133 = vperm.xlu0 %132, %v63
    %v134 = vpop.permute.xlu0 %133
    %137 = vset.pattern.permute.xlu0 0
    %138 = vperm.xlu0 %137, %v64
    %v139 = vpop.permute.xlu0 %138
    %142 = vset.pattern.permute.xlu0 0
    %143 = vperm.xlu0 %142, %v65
    %v144 = vpop.permute.xlu0 %143
    %vm146 = vcmask 64512
    %v148 = vsel %vm146, %v34, 0
    %v151 = vsel %vm146, %v35, 0
    %v154 = vsel %vm146, %v36, 0
    %v157 = vsel %vm146, %v37, 0
    %v160 = vsel %vm146, %v38, 0
    %v163 = vsel %vm146, %v39, 0
    %v166 = vsel %vm146, %v40, 0
    %v169 = vsel %vm146, %v41, 0
    %v172 = vsel %vm146, %v42, 0
    %v175 = vsel %vm146, %v43, 0
    %v178 = vsel %vm146, %v44, 0
    %v181 = vsel %vm146, %v45, 0
    %v184 = vsel %vm146, %v46, 0
    %v187 = vsel %vm146, %v47, 0
    %v190 = vsel %vm146, %v48, 0
    %v193 = vsel %vm146, %v49, 0
    %195 = vmatprep.subr.mxu0 0.0
    %196 = vmatpush1.msra.mxu0 0.0
    %197 = vmatprep.subr.mxu0 0.0
    %198 = vmatpush1.msra.mxu0 0.0
    %199 = vmatprep.subr.mxu0 0.0
    %200 = vmatpush1.msra.mxu0 0.0
    %201 = vmatprep.subr.mxu0 0.0
    %202 = vmatpush1.msra.mxu0 0.0
    %203 = vmatprep.subr.mxu0 0.0
    %204 = vmatpush1.msra.mxu0 0.0
    %205 = vmatprep.subr.mxu0 0.0
    %206 = vmatpush1.msra.mxu0 0.0
    %207 = vmatprep.subr.mxu0 0.0
    %208 = vmatpush1.msra.mxu0 0.0
    %209 = vmatprep.subr.mxu0 0.0
    %210 = vmatpush1.msra.mxu0 0.0
    %211 = vmatprep.subr.mxu0 0.0
    %212 = vmatpush1.msra.mxu0 0.0
    %213 = vmatprep.subr.mxu0 0.0
    %214 = vmatpush1.msra.mxu0 0.0
    %215 = vmatprep.subr.mxu0 0.0
    %216 = vmatpush1.msra.mxu0 0.0
    %217 = vmatprep.subr.mxu0 0.0
    %218 = vmatpush1.msra.mxu0 0.0
    %219 = vmatprep.subr.mxu0 0.0
    %220 = vmatpush1.msra.mxu0 0.0
    %221 = vmatprep.subr.mxu0 0.0
    %222 = vmatpush1.msra.mxu0 0.0
    %223 = vmatprep.subr.mxu0 0.0
    %224 = vmatpush1.msra.mxu0 0.0
    %225 = vmatprep.subr.mxu0 0.0
    %v226 = vand.u32 %v33, 4294901760
    %227 = vmatpush1.msra.mxu0 %v226
    %228 = vmatprep.subr.mxu0 0.0
    %229 = vmatpush2.msra.mxu0 0.0
    %230 = vmatprep.subr.mxu0 0.0
    %231 = vmatpush2.msra.mxu0 0.0
    %232 = vmatprep.subr.mxu0 0.0
    %233 = vmatpush2.msra.mxu0 0.0
    %234 = vmatprep.subr.mxu0 0.0
    %235 = vmatpush2.msra.mxu0 0.0
    %236 = vmatprep.subr.mxu0 0.0
    %237 = vmatpush2.msra.mxu0 0.0
    %238 = vmatprep.subr.mxu0 0.0
    %239 = vmatpush2.msra.mxu0 0.0
    %240 = vmatprep.subr.mxu0 0.0
    %241 = vmatpush2.msra.mxu0 0.0
    %242 = vmatprep.subr.mxu0 0.0
    %243 = vmatpush2.msra.mxu0 0.0
    %244 = vmatprep.subr.mxu0 0.0
    %245 = vmatpush2.msra.mxu0 0.0
    %246 = vmatprep.subr.mxu0 0.0
    %247 = vmatpush2.msra.mxu0 0.0
    %248 = vmatprep.subr.mxu0 0.0
    %249 = vmatpush2.msra.mxu0 0.0
    %250 = vmatprep.subr.mxu0 0.0
    %251 = vmatpush2.msra.mxu0 0.0
    %252 = vmatprep.subr.mxu0 0.0
    %253 = vmatpush2.msra.mxu0 0.0
    %254 = vmatprep.subr.mxu0 0.0
    %255 = vmatpush2.msra.mxu0 0.0
    %256 = vmatprep.subr.mxu0 0.0
    %257 = vmatpush2.msra.mxu0 0.0
    %258 = vmatprep.subr.mxu0 0.0
    %259 = vmatpush2.msra.mxu0 0.0
    %260 = vmatprep.mubr.f32.mxu0 0.0
    %v261 = vand.u32 %v148, 4294901760
    %v262 = vsub.f32 %v148, %v261
    %v263 = vand.u32 %v262, 4294901760
    %v264 = vsub.f32 %v262, %v263
    %v265 = vand.u32 %v264, 4294901760
    %266 = vmatmul.mubr.f32.gmra.mxu0 %v265
    %v267 = vpop.f32.mrf.mxu0
    %v268 = vadd.f32 %v69, %v267
    %v269 = vpop.f32.mrf.mxu0
    %270 = vmatprep.mubr.f32.mxu0 0.0
    %v271 = vand.u32 %v151, 4294901760
    %v272 = vsub.f32 %v151, %v271
    %v273 = vand.u32 %v272, 4294901760
    %v274 = vsub.f32 %v272, %v273
    %v275 = vand.u32 %v274, 4294901760
    %276 = vmatmul.mubr.f32.gmra.mxu0 %v275
    %v277 = vpop.f32.mrf.mxu0
    %v278 = vadd.f32 %v74, %v277
    %v279 = vpop.f32.mrf.mxu0
    %280 = vmatprep.mubr.f32.mxu0 0.0
    %v281 = vand.u32 %v154, 4294901760
    %v282 = vsub.f32 %v154, %v281
    %v283 = vand.u32 %v282, 4294901760
    %v284 = vsub.f32 %v282, %v283
    %v285 = vand.u32 %v284, 4294901760
    %286 = vmatmul.mubr.f32.gmra.mxu0 %v285
    %v287 = vpop.f32.mrf.mxu0
    %v288 = vadd.f32 %v79, %v287
    %v289 = vpop.f32.mrf.mxu0
    %290 = vmatprep.mubr.f32.mxu0 0.0
    %v291 = vand.u32 %v157, 4294901760
    %v292 = vsub.f32 %v157, %v291
    %v293 = vand.u32 %v292, 4294901760
    %v294 = vsub.f32 %v292, %v293
    %v295 = vand.u32 %v294, 4294901760
    %296 = vmatmul.mubr.f32.gmra.mxu0 %v295
    %v297 = vpop.f32.mrf.mxu0
    %v298 = vadd.f32 %v84, %v297
    %v299 = vpop.f32.mrf.mxu0
    %300 = vmatprep.mubr.f32.mxu0 0.0
    %v301 = vand.u32 %v160, 4294901760
    %v302 = vsub.f32 %v160, %v301
    %v303 = vand.u32 %v302, 4294901760
    %v304 = vsub.f32 %v302, %v303
    %v305 = vand.u32 %v304, 4294901760
    %306 = vmatmul.mubr.f32.gmra.mxu0 %v305
    %v307 = vpop.f32.mrf.mxu0
    %v308 = vadd.f32 %v89, %v307
    %v309 = vpop.f32.mrf.mxu0
    %310 = vmatprep.mubr.f32.mxu0 0.0
    %v311 = vand.u32 %v163, 4294901760
    %v312 = vsub.f32 %v163, %v311
    %v313 = vand.u32 %v312, 4294901760
    %v314 = vsub.f32 %v312, %v313
    %v315 = vand.u32 %v314, 4294901760
    %316 = vmatmul.mubr.f32.gmra.mxu0 %v315
    %v317 = vpop.f32.mrf.mxu0
    %v318 = vadd.f32 %v94, %v317
    %v319 = vpop.f32.mrf.mxu0
    %320 = vmatprep.mubr.f32.mxu0 0.0
    %v321 = vand.u32 %v166, 4294901760
    %v322 = vsub.f32 %v166, %v321
    %v323 = vand.u32 %v322, 4294901760
    %v324 = vsub.f32 %v322, %v323
    %v325 = vand.u32 %v324, 4294901760
    %326 = vmatmul.mubr.f32.gmra.mxu0 %v325
    %v327 = vpop.f32.mrf.mxu0
    %v328 = vadd.f32 %v99, %v327
    %v329 = vpop.f32.mrf.mxu0
    %330 = vmatprep.mubr.f32.mxu0 0.0
    %v331 = vand.u32 %v169, 4294901760
    %v332 = vsub.f32 %v169, %v331
    %v333 = vand.u32 %v332, 4294901760
    %v334 = vsub.f32 %v332, %v333
    %v335 = vand.u32 %v334, 4294901760
    %336 = vmatmul.mubr.f32.gmra.mxu0 %v335
    %v337 = vpop.f32.mrf.mxu0
    %v338 = vadd.f32 %v104, %v337
    %v339 = vpop.f32.mrf.mxu0
    %340 = vmatprep.mubr.f32.mxu0 0.0
    %v341 = vand.u32 %v172, 4294901760
    %v342 = vsub.f32 %v172, %v341
    %v343 = vand.u32 %v342, 4294901760
    %v344 = vsub.f32 %v342, %v343
    %v345 = vand.u32 %v344, 4294901760
    %346 = vmatmul.mubr.f32.gmra.mxu0 %v345
    %v347 = vpop.f32.mrf.mxu0
    %v348 = vadd.f32 %v109, %v347
    %v349 = vpop.f32.mrf.mxu0
    %350 = vmatprep.mubr.f32.mxu0 0.0
    %v351 = vand.u32 %v175, 4294901760
    %v352 = vsub.f32 %v175, %v351
    %v353 = vand.u32 %v352, 4294901760
    %v354 = vsub.f32 %v352, %v353
    %v355 = vand.u32 %v354, 4294901760
    %356 = vmatmul.mubr.f32.gmra.mxu0 %v355
    %v357 = vpop.f32.mrf.mxu0
    %v358 = vadd.f32 %v114, %v357
    %v359 = vpop.f32.mrf.mxu0
    %360 = vmatprep.mubr.f32.mxu0 0.0
    %v361 = vand.u32 %v178, 4294901760
    %v362 = vsub.f32 %v178, %v361
    %v363 = vand.u32 %v362, 4294901760
    %v364 = vsub.f32 %v362, %v363
    %v365 = vand.u32 %v364, 4294901760
    %366 = vmatmul.mubr.f32.gmra.mxu0 %v365
    %v367 = vpop.f32.mrf.mxu0
    %v368 = vadd.f32 %v119, %v367
    %v369 = vpop.f32.mrf.mxu0
    %370 = vmatprep.mubr.f32.mxu0 0.0
    %v371 = vand.u32 %v181, 4294901760
    %v372 = vsub.f32 %v181, %v371
    %v373 = vand.u32 %v372, 4294901760
    %v374 = vsub.f32 %v372, %v373
    %v375 = vand.u32 %v374, 4294901760
    %376 = vmatmul.mubr.f32.gmra.mxu0 %v375
    %v377 = vpop.f32.mrf.mxu0
    %v378 = vadd.f32 %v124, %v377
    %v379 = vpop.f32.mrf.mxu0
    %380 = vmatprep.mubr.f32.mxu0 0.0
    %v381 = vand.u32 %v184, 4294901760
    %v382 = vsub.f32 %v184, %v381
    %v383 = vand.u32 %v382, 4294901760
    %v384 = vsub.f32 %v382, %v383
    %v385 = vand.u32 %v384, 4294901760
    %386 = vmatmul.mubr.f32.gmra.mxu0 %v385
    %v387 = vpop.f32.mrf.mxu0
    %v388 = vadd.f32 %v129, %v387
    %v389 = vpop.f32.mrf.mxu0
    %390 = vmatprep.mubr.f32.mxu0 0.0
    %v391 = vand.u32 %v187, 4294901760
    %v392 = vsub.f32 %v187, %v391
    %v393 = vand.u32 %v392, 4294901760
    %v394 = vsub.f32 %v392, %v393
    %v395 = vand.u32 %v394, 4294901760
    %396 = vmatmul.mubr.f32.gmra.mxu0 %v395
    %v397 = vpop.f32.mrf.mxu0
    %v398 = vadd.f32 %v134, %v397
    %v399 = vpop.f32.mrf.mxu0
    %400 = vmatprep.mubr.f32.mxu0 0.0
    %v401 = vand.u32 %v190, 4294901760
    %v402 = vsub.f32 %v190, %v401
    %v403 = vand.u32 %v402, 4294901760
    %v404 = vsub.f32 %v402, %v403
    %v405 = vand.u32 %v404, 4294901760
    %406 = vmatmul.mubr.f32.gmra.mxu0 %v405
    %v407 = vpop.f32.mrf.mxu0
    %v408 = vadd.f32 %v139, %v407
    %v409 = vpop.f32.mrf.mxu0
    %410 = vmatprep.mubr.f32.mxu0 0.0
    %v411 = vand.u32 %v193, 4294901760
    %v412 = vsub.f32 %v193, %v411
    %v413 = vand.u32 %v412, 4294901760
    %v414 = vsub.f32 %v412, %v413
    %v415 = vand.u32 %v414, 4294901760
    %416 = vmatmul.mubr.f32.gmra.mxu0 %v415
    %v417 = vpop.f32.mrf.mxu0
    %v418 = vadd.f32 %v144, %v417
    %v419 = vpop.f32.mrf.mxu0
    %420 = vdwg.mxu0
    %421 = vmatprep.subr.mxu0 0.0
    %422 = vmatpush1.msra.mxu0 0.0
    %423 = vmatprep.subr.mxu0 0.0
    %424 = vmatpush1.msra.mxu0 0.0
    %425 = vmatprep.subr.mxu0 0.0
    %426 = vmatpush1.msra.mxu0 0.0
    %427 = vmatprep.subr.mxu0 0.0
    %428 = vmatpush1.msra.mxu0 0.0
    %429 = vmatprep.subr.mxu0 0.0
    %430 = vmatpush1.msra.mxu0 0.0
    %431 = vmatprep.subr.mxu0 0.0
    %432 = vmatpush1.msra.mxu0 0.0
    %433 = vmatprep.subr.mxu0 0.0
    %434 = vmatpush1.msra.mxu0 0.0
    %435 = vmatprep.subr.mxu0 0.0
    %436 = vmatpush1.msra.mxu0 0.0
    %437 = vmatprep.subr.mxu0 0.0
    %438 = vmatpush1.msra.mxu0 0.0
    %439 = vmatprep.subr.mxu0 0.0
    %440 = vmatpush1.msra.mxu0 0.0
    %441 = vmatprep.subr.mxu0 0.0
    %442 = vmatpush1.msra.mxu0 0.0
    %443 = vmatprep.subr.mxu0 0.0
    %444 = vmatpush1.msra.mxu0 0.0
    %445 = vmatprep.subr.mxu0 0.0
    %446 = vmatpush1.msra.mxu0 0.0
    %447 = vmatprep.subr.mxu0 0.0
    %448 = vmatpush1.msra.mxu0 0.0
    %449 = vmatprep.subr.mxu0 0.0
    %450 = vmatpush1.msra.mxu0 0.0
    %451 = vmatprep.subr.mxu0 0.0
    %v452 = vand.u32 %v33, 4294901760
    %v453 = vsub.f32 %v33, %v452
    %v454 = vand.u32 %v453, 4294901760
    %v455 = vsub.f32 %v453, %v454
    %v456 = vand.u32 %v455, 4294901760
    %457 = vmatpush1.msra.mxu0 %v456
    %458 = vmatprep.subr.mxu0 0.0
    %459 = vmatpush2.msra.mxu0 0.0
    %460 = vmatprep.subr.mxu0 0.0
    %461 = vmatpush2.msra.mxu0 0.0
    %462 = vmatprep.subr.mxu0 0.0
    %463 = vmatpush2.msra.mxu0 0.0
    %464 = vmatprep.subr.mxu0 0.0
    %465 = vmatpush2.msra.mxu0 0.0
    %466 = vmatprep.subr.mxu0 0.0
    %467 = vmatpush2.msra.mxu0 0.0
    %468 = vmatprep.subr.mxu0 0.0
    %469 = vmatpush2.msra.mxu0 0.0
    %470 = vmatprep.subr.mxu0 0.0
    %471 = vmatpush2.msra.mxu0 0.0
    %472 = vmatprep.subr.mxu0 0.0
    %473 = vmatpush2.msra.mxu0 0.0
    %474 = vmatprep.subr.mxu0 0.0
    %475 = vmatpush2.msra.mxu0 0.0
    %476 = vmatprep.subr.mxu0 0.0
    %477 = vmatpush2.msra.mxu0 0.0
    %478 = vmatprep.subr.mxu0 0.0
    %479 = vmatpush2.msra.mxu0 0.0
    %480 = vmatprep.subr.mxu0 0.0
    %481 = vmatpush2.msra.mxu0 0.0
    %482 = vmatprep.subr.mxu0 0.0
    %483 = vmatpush2.msra.mxu0 0.0
    %484 = vmatprep.subr.mxu0 0.0
    %485 = vmatpush2.msra.mxu0 0.0
    %486 = vmatprep.subr.mxu0 0.0
    %487 = vmatpush2.msra.mxu0 0.0
    %488 = vmatprep.subr.mxu0 0.0
    %489 = vmatpush2.msra.mxu0 0.0
    %490 = vmatprep.mubr.f32.mxu0 0.0
    %v491 = vand.u32 %v148, 4294901760
    %492 = vmatmul.mubr.f32.gmra.mxu0 %v491
    %v493 = vpop.f32.mrf.mxu0
    %v494 = vadd.f32 %v268, %v493
    %v495 = vpop.f32.mrf.mxu0
    %496 = vmatprep.mubr.f32.mxu0 0.0
    %v497 = vand.u32 %v151, 4294901760
    %498 = vmatmul.mubr.f32.gmra.mxu0 %v497
    %v499 = vpop.f32.mrf.mxu0
    %v500 = vadd.f32 %v278, %v499
    %v501 = vpop.f32.mrf.mxu0
    %502 = vmatprep.mubr.f32.mxu0 0.0
    %v503 = vand.u32 %v154, 4294901760
    %504 = vmatmul.mubr.f32.gmra.mxu0 %v503
    %v505 = vpop.f32.mrf.mxu0
    %v506 = vadd.f32 %v288, %v505
    %v507 = vpop.f32.mrf.mxu0
    %508 = vmatprep.mubr.f32.mxu0 0.0
    %v509 = vand.u32 %v157, 4294901760
    %510 = vmatmul.mubr.f32.gmra.mxu0 %v509
    %v511 = vpop.f32.mrf.mxu0
    %v512 = vadd.f32 %v298, %v511
    %v513 = vpop.f32.mrf.mxu0
    %514 = vmatprep.mubr.f32.mxu0 0.0
    %v515 = vand.u32 %v160, 4294901760
    %516 = vmatmul.mubr.f32.gmra.mxu0 %v515
    %v517 = vpop.f32.mrf.mxu0
    %v518 = vadd.f32 %v308, %v517
    %v519 = vpop.f32.mrf.mxu0
    %520 = vmatprep.mubr.f32.mxu0 0.0
    %v521 = vand.u32 %v163, 4294901760
    %522 = vmatmul.mubr.f32.gmra.mxu0 %v521
    %v523 = vpop.f32.mrf.mxu0
    %v524 = vadd.f32 %v318, %v523
    %v525 = vpop.f32.mrf.mxu0
    %526 = vmatprep.mubr.f32.mxu0 0.0
    %v527 = vand.u32 %v166, 4294901760
    %528 = vmatmul.mubr.f32.gmra.mxu0 %v527
    %v529 = vpop.f32.mrf.mxu0
    %v530 = vadd.f32 %v328, %v529
    %v531 = vpop.f32.mrf.mxu0
    %532 = vmatprep.mubr.f32.mxu0 0.0
    %v533 = vand.u32 %v169, 4294901760
    %534 = vmatmul.mubr.f32.gmra.mxu0 %v533
    %v535 = vpop.f32.mrf.mxu0
    %v536 = vadd.f32 %v338, %v535
    %v537 = vpop.f32.mrf.mxu0
    %538 = vmatprep.mubr.f32.mxu0 0.0
    %v539 = vand.u32 %v172, 4294901760
    %540 = vmatmul.mubr.f32.gmra.mxu0 %v539
    %v541 = vpop.f32.mrf.mxu0
    %v542 = vadd.f32 %v348, %v541
    %v543 = vpop.f32.mrf.mxu0
    %544 = vmatprep.mubr.f32.mxu0 0.0
    %v545 = vand.u32 %v175, 4294901760
    %546 = vmatmul.mubr.f32.gmra.mxu0 %v545
    %v547 = vpop.f32.mrf.mxu0
    %v548 = vadd.f32 %v358, %v547
    %v549 = vpop.f32.mrf.mxu0
    %550 = vmatprep.mubr.f32.mxu0 0.0
    %v551 = vand.u32 %v178, 4294901760
    %552 = vmatmul.mubr.f32.gmra.mxu0 %v551
    %v553 = vpop.f32.mrf.mxu0
    %v554 = vadd.f32 %v368, %v553
    %v555 = vpop.f32.mrf.mxu0
    %556 = vmatprep.mubr.f32.mxu0 0.0
    %v557 = vand.u32 %v181, 4294901760
    %558 = vmatmul.mubr.f32.gmra.mxu0 %v557
    %v559 = vpop.f32.mrf.mxu0
    %v560 = vadd.f32 %v378, %v559
    %v561 = vpop.f32.mrf.mxu0
    %562 = vmatprep.mubr.f32.mxu0 0.0
    %v563 = vand.u32 %v184, 4294901760
    %564 = vmatmul.mubr.f32.gmra.mxu0 %v563
    %v565 = vpop.f32.mrf.mxu0
    %v566 = vadd.f32 %v388, %v565
    %v567 = vpop.f32.mrf.mxu0
    %568 = vmatprep.mubr.f32.mxu0 0.0
    %v569 = vand.u32 %v187, 4294901760
    %570 = vmatmul.mubr.f32.gmra.mxu0 %v569
    %v571 = vpop.f32.mrf.mxu0
    %v572 = vadd.f32 %v398, %v571
    %v573 = vpop.f32.mrf.mxu0
    %574 = vmatprep.mubr.f32.mxu0 0.0
    %v575 = vand.u32 %v190, 4294901760
    %576 = vmatmul.mubr.f32.gmra.mxu0 %v575
    %v577 = vpop.f32.mrf.mxu0
    %v578 = vadd.f32 %v408, %v577
    %v579 = vpop.f32.mrf.mxu0
    %580 = vmatprep.mubr.f32.mxu0 0.0
    %v581 = vand.u32 %v193, 4294901760
    %582 = vmatmul.mubr.f32.gmra.mxu0 %v581
    %v583 = vpop.f32.mrf.mxu0
    %v584 = vadd.f32 %v418, %v583
    %v585 = vpop.f32.mrf.mxu0
    %586 = vdwg.mxu0
    %587 = vmatprep.subr.mxu0 0.0
    %588 = vmatpush1.msra.mxu0 0.0
    %589 = vmatprep.subr.mxu0 0.0
    %590 = vmatpush1.msra.mxu0 0.0
    %591 = vmatprep.subr.mxu0 0.0
    %592 = vmatpush1.msra.mxu0 0.0
    %593 = vmatprep.subr.mxu0 0.0
    %594 = vmatpush1.msra.mxu0 0.0
    %595 = vmatprep.subr.mxu0 0.0
    %596 = vmatpush1.msra.mxu0 0.0
    %597 = vmatprep.subr.mxu0 0.0
    %598 = vmatpush1.msra.mxu0 0.0
    %599 = vmatprep.subr.mxu0 0.0
    %600 = vmatpush1.msra.mxu0 0.0
    %601 = vmatprep.subr.mxu0 0.0
    %602 = vmatpush1.msra.mxu0 0.0
    %603 = vmatprep.subr.mxu0 0.0
    %604 = vmatpush1.msra.mxu0 0.0
    %605 = vmatprep.subr.mxu0 0.0
    %606 = vmatpush1.msra.mxu0 0.0
    %607 = vmatprep.subr.mxu0 0.0
    %608 = vmatpush1.msra.mxu0 0.0
    %609 = vmatprep.subr.mxu0 0.0
    %610 = vmatpush1.msra.mxu0 0.0
    %611 = vmatprep.subr.mxu0 0.0
    %612 = vmatpush1.msra.mxu0 0.0
    %613 = vmatprep.subr.mxu0 0.0
    %614 = vmatpush1.msra.mxu0 0.0
    %615 = vmatprep.subr.mxu0 0.0
    %616 = vmatpush1.msra.mxu0 0.0
    %617 = vmatprep.subr.mxu0 0.0
    %v618 = vand.u32 %v33, 4294901760
    %v619 = vsub.f32 %v33, %v618
    %620 = vmatpush1.msra.mxu0 %v619
    %621 = vmatprep.subr.mxu0 0.0
    %622 = vmatpush2.msra.mxu0 0.0
    %623 = vmatprep.subr.mxu0 0.0
    %624 = vmatpush2.msra.mxu0 0.0
    %625 = vmatprep.subr.mxu0 0.0
    %626 = vmatpush2.msra.mxu0 0.0
    %627 = vmatprep.subr.mxu0 0.0
    %628 = vmatpush2.msra.mxu0 0.0
    %629 = vmatprep.subr.mxu0 0.0
    %630 = vmatpush2.msra.mxu0 0.0
    %631 = vmatprep.subr.mxu0 0.0
    %632 = vmatpush2.msra.mxu0 0.0
    %633 = vmatprep.subr.mxu0 0.0
    %634 = vmatpush2.msra.mxu0 0.0
    %635 = vmatprep.subr.mxu0 0.0
    %636 = vmatpush2.msra.mxu0 0.0
    %637 = vmatprep.subr.mxu0 0.0
    %638 = vmatpush2.msra.mxu0 0.0
    %639 = vmatprep.subr.mxu0 0.0
    %640 = vmatpush2.msra.mxu0 0.0
    %641 = vmatprep.subr.mxu0 0.0
    %642 = vmatpush2.msra.mxu0 0.0
    %643 = vmatprep.subr.mxu0 0.0
    %644 = vmatpush2.msra.mxu0 0.0
    %645 = vmatprep.subr.mxu0 0.0
    %646 = vmatpush2.msra.mxu0 0.0
    %647 = vmatprep.subr.mxu0 0.0
    %648 = vmatpush2.msra.mxu0 0.0
    %649 = vmatprep.subr.mxu0 0.0
    %650 = vmatpush2.msra.mxu0 0.0
    %651 = vmatprep.subr.mxu0 0.0
    %652 = vmatpush2.msra.mxu0 0.0
    %653 = vmatprep.mubr.f32.mxu0 0.0
    %v654 = vand.u32 %v148, 4294901760
    %v655 = vsub.f32 %v148, %v654
    %656 = vmatmul.mubr.f32.gmra.mxu0 %v655
    %v657 = vpop.f32.mrf.mxu0
    %v658 = vadd.f32 %v494, %v657
    %v659 = vpop.f32.mrf.mxu0
    %660 = vmatprep.mubr.f32.mxu0 0.0
    %v661 = vand.u32 %v151, 4294901760
    %v662 = vsub.f32 %v151, %v661
    %663 = vmatmul.mubr.f32.gmra.mxu0 %v662
    %v664 = vpop.f32.mrf.mxu0
    %v665 = vadd.f32 %v500, %v664
    %v666 = vpop.f32.mrf.mxu0
    %667 = vmatprep.mubr.f32.mxu0 0.0
    %v668 = vand.u32 %v154, 4294901760
    %v669 = vsub.f32 %v154, %v668
    %670 = vmatmul.mubr.f32.gmra.mxu0 %v669
    %v671 = vpop.f32.mrf.mxu0
    %v672 = vadd.f32 %v506, %v671
    %v673 = vpop.f32.mrf.mxu0
    %674 = vmatprep.mubr.f32.mxu0 0.0
    %v675 = vand.u32 %v157, 4294901760
    %v676 = vsub.f32 %v157, %v675
    %677 = vmatmul.mubr.f32.gmra.mxu0 %v676
    %v678 = vpop.f32.mrf.mxu0
    %v679 = vadd.f32 %v512, %v678
    %v680 = vpop.f32.mrf.mxu0
    %681 = vmatprep.mubr.f32.mxu0 0.0
    %v682 = vand.u32 %v160, 4294901760
    %v683 = vsub.f32 %v160, %v682
    %684 = vmatmul.mubr.f32.gmra.mxu0 %v683
    %v685 = vpop.f32.mrf.mxu0
    %v686 = vadd.f32 %v518, %v685
    %v687 = vpop.f32.mrf.mxu0
    %688 = vmatprep.mubr.f32.mxu0 0.0
    %v689 = vand.u32 %v163, 4294901760
    %v690 = vsub.f32 %v163, %v689
    %691 = vmatmul.mubr.f32.gmra.mxu0 %v690
    %v692 = vpop.f32.mrf.mxu0
    %v693 = vadd.f32 %v524, %v692
    %v694 = vpop.f32.mrf.mxu0
    %695 = vmatprep.mubr.f32.mxu0 0.0
    %v696 = vand.u32 %v166, 4294901760
    %v697 = vsub.f32 %v166, %v696
    %698 = vmatmul.mubr.f32.gmra.mxu0 %v697
    %v699 = vpop.f32.mrf.mxu0
    %v700 = vadd.f32 %v530, %v699
    %v701 = vpop.f32.mrf.mxu0
    %702 = vmatprep.mubr.f32.mxu0 0.0
    %v703 = vand.u32 %v169, 4294901760
    %v704 = vsub.f32 %v169, %v703
    %705 = vmatmul.mubr.f32.gmra.mxu0 %v704
    %v706 = vpop.f32.mrf.mxu0
    %v707 = vadd.f32 %v536, %v706
    %v708 = vpop.f32.mrf.mxu0
    %709 = vmatprep.mubr.f32.mxu0 0.0
    %v710 = vand.u32 %v172, 4294901760
    %v711 = vsub.f32 %v172, %v710
    %712 = vmatmul.mubr.f32.gmra.mxu0 %v711
    %v713 = vpop.f32.mrf.mxu0
    %v714 = vadd.f32 %v542, %v713
    %v715 = vpop.f32.mrf.mxu0
    %716 = vmatprep.mubr.f32.mxu0 0.0
    %v717 = vand.u32 %v175, 4294901760
    %v718 = vsub.f32 %v175, %v717
    %719 = vmatmul.mubr.f32.gmra.mxu0 %v718
    %v720 = vpop.f32.mrf.mxu0
    %v721 = vadd.f32 %v548, %v720
    %v722 = vpop.f32.mrf.mxu0
    %723 = vmatprep.mubr.f32.mxu0 0.0
    %v724 = vand.u32 %v178, 4294901760
    %v725 = vsub.f32 %v178, %v724
    %726 = vmatmul.mubr.f32.gmra.mxu0 %v725
    %v727 = vpop.f32.mrf.mxu0
    %v728 = vadd.f32 %v554, %v727
    %v729 = vpop.f32.mrf.mxu0
    %730 = vmatprep.mubr.f32.mxu0 0.0
    %v731 = vand.u32 %v181, 4294901760
    %v732 = vsub.f32 %v181, %v731
    %733 = vmatmul.mubr.f32.gmra.mxu0 %v732
    %v734 = vpop.f32.mrf.mxu0
    %v735 = vadd.f32 %v560, %v734
    %v736 = vpop.f32.mrf.mxu0
    %737 = vmatprep.mubr.f32.mxu0 0.0
    %v738 = vand.u32 %v184, 4294901760
    %v739 = vsub.f32 %v184, %v738
    %740 = vmatmul.mubr.f32.gmra.mxu0 %v739
    %v741 = vpop.f32.mrf.mxu0
    %v742 = vadd.f32 %v566, %v741
    %v743 = vpop.f32.mrf.mxu0
    %744 = vmatprep.mubr.f32.mxu0 0.0
    %v745 = vand.u32 %v187, 4294901760
    %v746 = vsub.f32 %v187, %v745
    %747 = vmatmul.mubr.f32.gmra.mxu0 %v746
    %v748 = vpop.f32.mrf.mxu0
    %v749 = vadd.f32 %v572, %v748
    %v750 = vpop.f32.mrf.mxu0
    %751 = vmatprep.mubr.f32.mxu0 0.0
    %v752 = vand.u32 %v190, 4294901760
    %v753 = vsub.f32 %v190, %v752
    %754 = vmatmul.mubr.f32.gmra.mxu0 %v753
    %v755 = vpop.f32.mrf.mxu0
    %v756 = vadd.f32 %v578, %v755
    %v757 = vpop.f32.mrf.mxu0
    %758 = vmatprep.mubr.f32.mxu0 0.0
    %v759 = vand.u32 %v193, 4294901760
    %v760 = vsub.f32 %v193, %v759
    %761 = vmatmul.mubr.f32.gmra.mxu0 %v760
    %v762 = vpop.f32.mrf.mxu0
    %v763 = vadd.f32 %v584, %v762
    %v764 = vpop.f32.mrf.mxu0
    %765 = vdwg.mxu0
    %766 = vmatprep.subr.mxu0 0.0
    %767 = vmatpush1.msra.mxu0 0.0
    %768 = vmatprep.subr.mxu0 0.0
    %769 = vmatpush1.msra.mxu0 0.0
    %770 = vmatprep.subr.mxu0 0.0
    %771 = vmatpush1.msra.mxu0 0.0
    %772 = vmatprep.subr.mxu0 0.0
    %773 = vmatpush1.msra.mxu0 0.0
    %774 = vmatprep.subr.mxu0 0.0
    %775 = vmatpush1.msra.mxu0 0.0
    %776 = vmatprep.subr.mxu0 0.0
    %777 = vmatpush1.msra.mxu0 0.0
    %778 = vmatprep.subr.mxu0 0.0
    %779 = vmatpush1.msra.mxu0 0.0
    %780 = vmatprep.subr.mxu0 0.0
    %781 = vmatpush1.msra.mxu0 0.0
    %782 = vmatprep.subr.mxu0 0.0
    %783 = vmatpush1.msra.mxu0 0.0
    %784 = vmatprep.subr.mxu0 0.0
    %785 = vmatpush1.msra.mxu0 0.0
    %786 = vmatprep.subr.mxu0 0.0
    %787 = vmatpush1.msra.mxu0 0.0
    %788 = vmatprep.subr.mxu0 0.0
    %789 = vmatpush1.msra.mxu0 0.0
    %790 = vmatprep.subr.mxu0 0.0
    %791 = vmatpush1.msra.mxu0 0.0
    %792 = vmatprep.subr.mxu0 0.0
    %793 = vmatpush1.msra.mxu0 0.0
    %794 = vmatprep.subr.mxu0 0.0
    %795 = vmatpush1.msra.mxu0 0.0
    %796 = vmatprep.subr.mxu0 0.0
    %v797 = vand.u32 %v33, 4294901760
    %798 = vmatpush1.msra.mxu0 %v797
    %799 = vmatprep.subr.mxu0 0.0
    %800 = vmatpush2.msra.mxu0 0.0
    %801 = vmatprep.subr.mxu0 0.0
    %802 = vmatpush2.msra.mxu0 0.0
    %803 = vmatprep.subr.mxu0 0.0
    %804 = vmatpush2.msra.mxu0 0.0
    %805 = vmatprep.subr.mxu0 0.0
    %806 = vmatpush2.msra.mxu0 0.0
    %807 = vmatprep.subr.mxu0 0.0
    %808 = vmatpush2.msra.mxu0 0.0
    %809 = vmatprep.subr.mxu0 0.0
    %810 = vmatpush2.msra.mxu0 0.0
    %811 = vmatprep.subr.mxu0 0.0
    %812 = vmatpush2.msra.mxu0 0.0
    %813 = vmatprep.subr.mxu0 0.0
    %814 = vmatpush2.msra.mxu0 0.0
    %815 = vmatprep.subr.mxu0 0.0
    %816 = vmatpush2.msra.mxu0 0.0
    %817 = vmatprep.subr.mxu0 0.0
    %818 = vmatpush2.msra.mxu0 0.0
    %819 = vmatprep.subr.mxu0 0.0
    %820 = vmatpush2.msra.mxu0 0.0
    %821 = vmatprep.subr.mxu0 0.0
    %822 = vmatpush2.msra.mxu0 0.0
    %823 = vmatprep.subr.mxu0 0.0
    %824 = vmatpush2.msra.mxu0 0.0
    %825 = vmatprep.subr.mxu0 0.0
    %826 = vmatpush2.msra.mxu0 0.0
    %827 = vmatprep.subr.mxu0 0.0
    %828 = vmatpush2.msra.mxu0 0.0
    %829 = vmatprep.subr.mxu0 0.0
    %830 = vmatpush2.msra.mxu0 0.0
    %831 = vmatprep.mubr.f32.mxu0 0.0
    %v832 = vand.u32 %v148, 4294901760
    %v833 = vsub.f32 %v148, %v832
    %v834 = vand.u32 %v833, 4294901760
    %835 = vmatmul.mubr.f32.gmra.mxu0 %v834
    %v836 = vpop.f32.mrf.mxu0
    %v837 = vadd.f32 %v658, %v836
    %v838 = vpop.f32.mrf.mxu0
    %839 = vmatprep.mubr.f32.mxu0 0.0
    %v840 = vand.u32 %v151, 4294901760
    %v841 = vsub.f32 %v151, %v840
    %v842 = vand.u32 %v841, 4294901760
    %843 = vmatmul.mubr.f32.gmra.mxu0 %v842
    %v844 = vpop.f32.mrf.mxu0
    %v845 = vadd.f32 %v665, %v844
    %v846 = vpop.f32.mrf.mxu0
    %847 = vmatprep.mubr.f32.mxu0 0.0
    %v848 = vand.u32 %v154, 4294901760
    %v849 = vsub.f32 %v154, %v848
    %v850 = vand.u32 %v849, 4294901760
    %851 = vmatmul.mubr.f32.gmra.mxu0 %v850
    %v852 = vpop.f32.mrf.mxu0
    %v853 = vadd.f32 %v672, %v852
    %v854 = vpop.f32.mrf.mxu0
    %855 = vmatprep.mubr.f32.mxu0 0.0
    %v856 = vand.u32 %v157, 4294901760
    %v857 = vsub.f32 %v157, %v856
    %v858 = vand.u32 %v857, 4294901760
    %859 = vmatmul.mubr.f32.gmra.mxu0 %v858
    %v860 = vpop.f32.mrf.mxu0
    %v861 = vadd.f32 %v679, %v860
    %v862 = vpop.f32.mrf.mxu0
    %863 = vmatprep.mubr.f32.mxu0 0.0
    %v864 = vand.u32 %v160, 4294901760
    %v865 = vsub.f32 %v160, %v864
    %v866 = vand.u32 %v865, 4294901760
    %867 = vmatmul.mubr.f32.gmra.mxu0 %v866
    %v868 = vpop.f32.mrf.mxu0
    %v869 = vadd.f32 %v686, %v868
    %v870 = vpop.f32.mrf.mxu0
    %871 = vmatprep.mubr.f32.mxu0 0.0
    %v872 = vand.u32 %v163, 4294901760
    %v873 = vsub.f32 %v163, %v872
    %v874 = vand.u32 %v873, 4294901760
    %875 = vmatmul.mubr.f32.gmra.mxu0 %v874
    %v876 = vpop.f32.mrf.mxu0
    %v877 = vadd.f32 %v693, %v876
    %v878 = vpop.f32.mrf.mxu0
    %879 = vmatprep.mubr.f32.mxu0 0.0
    %v880 = vand.u32 %v166, 4294901760
    %v881 = vsub.f32 %v166, %v880
    %v882 = vand.u32 %v881, 4294901760
    %883 = vmatmul.mubr.f32.gmra.mxu0 %v882
    %v884 = vpop.f32.mrf.mxu0
    %v885 = vadd.f32 %v700, %v884
    %v886 = vpop.f32.mrf.mxu0
    %887 = vmatprep.mubr.f32.mxu0 0.0
    %v888 = vand.u32 %v169, 4294901760
    %v889 = vsub.f32 %v169, %v888
    %v890 = vand.u32 %v889, 4294901760
    %891 = vmatmul.mubr.f32.gmra.mxu0 %v890
    %v892 = vpop.f32.mrf.mxu0
    %v893 = vadd.f32 %v707, %v892
    %v894 = vpop.f32.mrf.mxu0
    %895 = vmatprep.mubr.f32.mxu0 0.0
    %v896 = vand.u32 %v172, 4294901760
    %v897 = vsub.f32 %v172, %v896
    %v898 = vand.u32 %v897, 4294901760
    %899 = vmatmul.mubr.f32.gmra.mxu0 %v898
    %v900 = vpop.f32.mrf.mxu0
    %v901 = vadd.f32 %v714, %v900
    %v902 = vpop.f32.mrf.mxu0
    %903 = vmatprep.mubr.f32.mxu0 0.0
    %v904 = vand.u32 %v175, 4294901760
    %v905 = vsub.f32 %v175, %v904
    %v906 = vand.u32 %v905, 4294901760
    %907 = vmatmul.mubr.f32.gmra.mxu0 %v906
    %v908 = vpop.f32.mrf.mxu0
    %v909 = vadd.f32 %v721, %v908
    %v910 = vpop.f32.mrf.mxu0
    %911 = vmatprep.mubr.f32.mxu0 0.0
    %v912 = vand.u32 %v178, 4294901760
    %v913 = vsub.f32 %v178, %v912
    %v914 = vand.u32 %v913, 4294901760
    %915 = vmatmul.mubr.f32.gmra.mxu0 %v914
    %v916 = vpop.f32.mrf.mxu0
    %v917 = vadd.f32 %v728, %v916
    %v918 = vpop.f32.mrf.mxu0
    %919 = vmatprep.mubr.f32.mxu0 0.0
    %v920 = vand.u32 %v181, 4294901760
    %v921 = vsub.f32 %v181, %v920
    %v922 = vand.u32 %v921, 4294901760
    %923 = vmatmul.mubr.f32.gmra.mxu0 %v922
    %v924 = vpop.f32.mrf.mxu0
    %v925 = vadd.f32 %v735, %v924
    %v926 = vpop.f32.mrf.mxu0
    %927 = vmatprep.mubr.f32.mxu0 0.0
    %v928 = vand.u32 %v184, 4294901760
    %v929 = vsub.f32 %v184, %v928
    %v930 = vand.u32 %v929, 4294901760
    %931 = vmatmul.mubr.f32.gmra.mxu0 %v930
    %v932 = vpop.f32.mrf.mxu0
    %v933 = vadd.f32 %v742, %v932
    %v934 = vpop.f32.mrf.mxu0
    %935 = vmatprep.mubr.f32.mxu0 0.0
    %v936 = vand.u32 %v187, 4294901760
    %v937 = vsub.f32 %v187, %v936
    %v938 = vand.u32 %v937, 4294901760
    %939 = vmatmul.mubr.f32.gmra.mxu0 %v938
    %v940 = vpop.f32.mrf.mxu0
    %v941 = vadd.f32 %v749, %v940
    %v942 = vpop.f32.mrf.mxu0
    %943 = vmatprep.mubr.f32.mxu0 0.0
    %v944 = vand.u32 %v190, 4294901760
    %v945 = vsub.f32 %v190, %v944
    %v946 = vand.u32 %v945, 4294901760
    %947 = vmatmul.mubr.f32.gmra.mxu0 %v946
    %v948 = vpop.f32.mrf.mxu0
    %v949 = vadd.f32 %v756, %v948
    %v950 = vpop.f32.mrf.mxu0
    %951 = vmatprep.mubr.f32.mxu0 0.0
    %v952 = vand.u32 %v193, 4294901760
    %v953 = vsub.f32 %v193, %v952
    %v954 = vand.u32 %v953, 4294901760
    %955 = vmatmul.mubr.f32.gmra.mxu0 %v954
    %v956 = vpop.f32.mrf.mxu0
    %v957 = vadd.f32 %v763, %v956
    %v958 = vpop.f32.mrf.mxu0
    %959 = vdwg.mxu0
    %960 = vmatprep.subr.mxu0 0.0
    %961 = vmatpush1.msra.mxu0 0.0
    %962 = vmatprep.subr.mxu0 0.0
    %963 = vmatpush1.msra.mxu0 0.0
    %964 = vmatprep.subr.mxu0 0.0
    %965 = vmatpush1.msra.mxu0 0.0
    %966 = vmatprep.subr.mxu0 0.0
    %967 = vmatpush1.msra.mxu0 0.0
    %968 = vmatprep.subr.mxu0 0.0
    %969 = vmatpush1.msra.mxu0 0.0
    %970 = vmatprep.subr.mxu0 0.0
    %971 = vmatpush1.msra.mxu0 0.0
    %972 = vmatprep.subr.mxu0 0.0
    %973 = vmatpush1.msra.mxu0 0.0
    %974 = vmatprep.subr.mxu0 0.0
    %975 = vmatpush1.msra.mxu0 0.0
    %976 = vmatprep.subr.mxu0 0.0
    %977 = vmatpush1.msra.mxu0 0.0
    %978 = vmatprep.subr.mxu0 0.0
    %979 = vmatpush1.msra.mxu0 0.0
    %980 = vmatprep.subr.mxu0 0.0
    %981 = vmatpush1.msra.mxu0 0.0
    %982 = vmatprep.subr.mxu0 0.0
    %983 = vmatpush1.msra.mxu0 0.0
    %984 = vmatprep.subr.mxu0 0.0
    %985 = vmatpush1.msra.mxu0 0.0
    %986 = vmatprep.subr.mxu0 0.0
    %987 = vmatpush1.msra.mxu0 0.0
    %988 = vmatprep.subr.mxu0 0.0
    %989 = vmatpush1.msra.mxu0 0.0
    %990 = vmatprep.subr.mxu0 0.0
    %v991 = vand.u32 %v33, 4294901760
    %v992 = vsub.f32 %v33, %v991
    %v993 = vand.u32 %v992, 4294901760
    %994 = vmatpush1.msra.mxu0 %v993
    %995 = vmatprep.subr.mxu0 0.0
    %996 = vmatpush2.msra.mxu0 0.0
    %997 = vmatprep.subr.mxu0 0.0
    %998 = vmatpush2.msra.mxu0 0.0
    %999 = vmatprep.subr.mxu0 0.0
    %1000 = vmatpush2.msra.mxu0 0.0
    %1001 = vmatprep.subr.mxu0 0.0
    %1002 = vmatpush2.msra.mxu0 0.0
    %1003 = vmatprep.subr.mxu0 0.0
    %1004 = vmatpush2.msra.mxu0 0.0
    %1005 = vmatprep.subr.mxu0 0.0
    %1006 = vmatpush2.msra.mxu0 0.0
    %1007 = vmatprep.subr.mxu0 0.0
    %1008 = vmatpush2.msra.mxu0 0.0
    %1009 = vmatprep.subr.mxu0 0.0
    %1010 = vmatpush2.msra.mxu0 0.0
    %1011 = vmatprep.subr.mxu0 0.0
    %1012 = vmatpush2.msra.mxu0 0.0
    %1013 = vmatprep.subr.mxu0 0.0
    %1014 = vmatpush2.msra.mxu0 0.0
    %1015 = vmatprep.subr.mxu0 0.0
    %1016 = vmatpush2.msra.mxu0 0.0
    %1017 = vmatprep.subr.mxu0 0.0
    %1018 = vmatpush2.msra.mxu0 0.0
    %1019 = vmatprep.subr.mxu0 0.0
    %1020 = vmatpush2.msra.mxu0 0.0
    %1021 = vmatprep.subr.mxu0 0.0
    %1022 = vmatpush2.msra.mxu0 0.0
    %1023 = vmatprep.subr.mxu0 0.0
    %1024 = vmatpush2.msra.mxu0 0.0
    %1025 = vmatprep.subr.mxu0 0.0
    %1026 = vmatpush2.msra.mxu0 0.0
    %1027 = vmatprep.mubr.f32.mxu0 0.0
    %v1028 = vand.u32 %v148, 4294901760
    %1029 = vmatmul.mubr.f32.gmra.mxu0 %v1028
    %v1030 = vpop.f32.mrf.mxu0
    %v1031 = vadd.f32 %v837, %v1030
    %v1032 = vpop.f32.mrf.mxu0
    %1033 = vmatprep.mubr.f32.mxu0 0.0
    %v1034 = vand.u32 %v151, 4294901760
    %1035 = vmatmul.mubr.f32.gmra.mxu0 %v1034
    %v1036 = vpop.f32.mrf.mxu0
    %v1037 = vadd.f32 %v845, %v1036
    %v1038 = vpop.f32.mrf.mxu0
    %1039 = vmatprep.mubr.f32.mxu0 0.0
    %v1040 = vand.u32 %v154, 4294901760
    %1041 = vmatmul.mubr.f32.gmra.mxu0 %v1040
    %v1042 = vpop.f32.mrf.mxu0
    %v1043 = vadd.f32 %v853, %v1042
    %v1044 = vpop.f32.mrf.mxu0
    %1045 = vmatprep.mubr.f32.mxu0 0.0
    %v1046 = vand.u32 %v157, 4294901760
    %1047 = vmatmul.mubr.f32.gmra.mxu0 %v1046
    %v1048 = vpop.f32.mrf.mxu0
    %v1049 = vadd.f32 %v861, %v1048
    %v1050 = vpop.f32.mrf.mxu0
    %1051 = vmatprep.mubr.f32.mxu0 0.0
    %v1052 = vand.u32 %v160, 4294901760
    %1053 = vmatmul.mubr.f32.gmra.mxu0 %v1052
    %v1054 = vpop.f32.mrf.mxu0
    %v1055 = vadd.f32 %v869, %v1054
    %v1056 = vpop.f32.mrf.mxu0
    %1057 = vmatprep.mubr.f32.mxu0 0.0
    %v1058 = vand.u32 %v163, 4294901760
    %1059 = vmatmul.mubr.f32.gmra.mxu0 %v1058
    %v1060 = vpop.f32.mrf.mxu0
    %v1061 = vadd.f32 %v877, %v1060
    %v1062 = vpop.f32.mrf.mxu0
    %1063 = vmatprep.mubr.f32.mxu0 0.0
    %v1064 = vand.u32 %v166, 4294901760
    %1065 = vmatmul.mubr.f32.gmra.mxu0 %v1064
    %v1066 = vpop.f32.mrf.mxu0
    %v1067 = vadd.f32 %v885, %v1066
    %v1068 = vpop.f32.mrf.mxu0
    %1069 = vmatprep.mubr.f32.mxu0 0.0
    %v1070 = vand.u32 %v169, 4294901760
    %1071 = vmatmul.mubr.f32.gmra.mxu0 %v1070
    %v1072 = vpop.f32.mrf.mxu0
    %v1073 = vadd.f32 %v893, %v1072
    %v1074 = vpop.f32.mrf.mxu0
    %1075 = vmatprep.mubr.f32.mxu0 0.0
    %v1076 = vand.u32 %v172, 4294901760
    %1077 = vmatmul.mubr.f32.gmra.mxu0 %v1076
    %v1078 = vpop.f32.mrf.mxu0
    %v1079 = vadd.f32 %v901, %v1078
    %v1080 = vpop.f32.mrf.mxu0
    %1081 = vmatprep.mubr.f32.mxu0 0.0
    %v1082 = vand.u32 %v175, 4294901760
    %1083 = vmatmul.mubr.f32.gmra.mxu0 %v1082
    %v1084 = vpop.f32.mrf.mxu0
    %v1085 = vadd.f32 %v909, %v1084
    %v1086 = vpop.f32.mrf.mxu0
    %1087 = vmatprep.mubr.f32.mxu0 0.0
    %v1088 = vand.u32 %v178, 4294901760
    %1089 = vmatmul.mubr.f32.gmra.mxu0 %v1088
    %v1090 = vpop.f32.mrf.mxu0
    %v1091 = vadd.f32 %v917, %v1090
    %v1092 = vpop.f32.mrf.mxu0
    %1093 = vmatprep.mubr.f32.mxu0 0.0
    %v1094 = vand.u32 %v181, 4294901760
    %1095 = vmatmul.mubr.f32.gmra.mxu0 %v1094
    %v1096 = vpop.f32.mrf.mxu0
    %v1097 = vadd.f32 %v925, %v1096
    %v1098 = vpop.f32.mrf.mxu0
    %1099 = vmatprep.mubr.f32.mxu0 0.0
    %v1100 = vand.u32 %v184, 4294901760
    %1101 = vmatmul.mubr.f32.gmra.mxu0 %v1100
    %v1102 = vpop.f32.mrf.mxu0
    %v1103 = vadd.f32 %v933, %v1102
    %v1104 = vpop.f32.mrf.mxu0
    %1105 = vmatprep.mubr.f32.mxu0 0.0
    %v1106 = vand.u32 %v187, 4294901760
    %1107 = vmatmul.mubr.f32.gmra.mxu0 %v1106
    %v1108 = vpop.f32.mrf.mxu0
    %v1109 = vadd.f32 %v941, %v1108
    %v1110 = vpop.f32.mrf.mxu0
    %1111 = vmatprep.mubr.f32.mxu0 0.0
    %v1112 = vand.u32 %v190, 4294901760
    %1113 = vmatmul.mubr.f32.gmra.mxu0 %v1112
    %v1114 = vpop.f32.mrf.mxu0
    %v1115 = vadd.f32 %v949, %v1114
    %v1116 = vpop.f32.mrf.mxu0
    %1117 = vmatprep.mubr.f32.mxu0 0.0
    %v1118 = vand.u32 %v193, 4294901760
    %1119 = vmatmul.mubr.f32.gmra.mxu0 %v1118
    %v1120 = vpop.f32.mrf.mxu0
    %v1121 = vadd.f32 %v957, %v1120
    %v1122 = vpop.f32.mrf.mxu0
    %1123 = vdwg.mxu0
    %1124 = vmatprep.subr.mxu0 0.0
    %1125 = vmatpush1.msra.mxu0 0.0
    %1126 = vmatprep.subr.mxu0 0.0
    %1127 = vmatpush1.msra.mxu0 0.0
    %1128 = vmatprep.subr.mxu0 0.0
    %1129 = vmatpush1.msra.mxu0 0.0
    %1130 = vmatprep.subr.mxu0 0.0
    %1131 = vmatpush1.msra.mxu0 0.0
    %1132 = vmatprep.subr.mxu0 0.0
    %1133 = vmatpush1.msra.mxu0 0.0
    %1134 = vmatprep.subr.mxu0 0.0
    %1135 = vmatpush1.msra.mxu0 0.0
    %1136 = vmatprep.subr.mxu0 0.0
    %1137 = vmatpush1.msra.mxu0 0.0
    %1138 = vmatprep.subr.mxu0 0.0
    %1139 = vmatpush1.msra.mxu0 0.0
    %1140 = vmatprep.subr.mxu0 0.0
    %1141 = vmatpush1.msra.mxu0 0.0
    %1142 = vmatprep.subr.mxu0 0.0
    %1143 = vmatpush1.msra.mxu0 0.0
    %1144 = vmatprep.subr.mxu0 0.0
    %1145 = vmatpush1.msra.mxu0 0.0
    %1146 = vmatprep.subr.mxu0 0.0
    %1147 = vmatpush1.msra.mxu0 0.0
    %1148 = vmatprep.subr.mxu0 0.0
    %1149 = vmatpush1.msra.mxu0 0.0
    %1150 = vmatprep.subr.mxu0 0.0
    %1151 = vmatpush1.msra.mxu0 0.0
    %1152 = vmatprep.subr.mxu0 0.0
    %1153 = vmatpush1.msra.mxu0 0.0
    %1154 = vmatprep.subr.mxu0 0.0
    %v1155 = vand.u32 %v33, 4294901760
    %1156 = vmatpush1.msra.mxu0 %v1155
    %1157 = vmatprep.subr.mxu0 0.0
    %1158 = vmatpush2.msra.mxu0 0.0
    %1159 = vmatprep.subr.mxu0 0.0
    %1160 = vmatpush2.msra.mxu0 0.0
    %1161 = vmatprep.subr.mxu0 0.0
    %1162 = vmatpush2.msra.mxu0 0.0
    %1163 = vmatprep.subr.mxu0 0.0
    %1164 = vmatpush2.msra.mxu0 0.0
    %1165 = vmatprep.subr.mxu0 0.0
    %1166 = vmatpush2.msra.mxu0 0.0
    %1167 = vmatprep.subr.mxu0 0.0
    %1168 = vmatpush2.msra.mxu0 0.0
    %1169 = vmatprep.subr.mxu0 0.0
    %1170 = vmatpush2.msra.mxu0 0.0
    %1171 = vmatprep.subr.mxu0 0.0
    %1172 = vmatpush2.msra.mxu0 0.0
    %1173 = vmatprep.subr.mxu0 0.0
    %1174 = vmatpush2.msra.mxu0 0.0
    %1175 = vmatprep.subr.mxu0 0.0
    %1176 = vmatpush2.msra.mxu0 0.0
    %1177 = vmatprep.subr.mxu0 0.0
    %1178 = vmatpush2.msra.mxu0 0.0
    %1179 = vmatprep.subr.mxu0 0.0
    %1180 = vmatpush2.msra.mxu0 0.0
    %1181 = vmatprep.subr.mxu0 0.0
    %1182 = vmatpush2.msra.mxu0 0.0
    %1183 = vmatprep.subr.mxu0 0.0
    %1184 = vmatpush2.msra.mxu0 0.0
    %1185 = vmatprep.subr.mxu0 0.0
    %1186 = vmatpush2.msra.mxu0 0.0
    %1187 = vmatprep.subr.mxu0 0.0
    %1188 = vmatpush2.msra.mxu0 0.0
    %1189 = vmatprep.mubr.f32.mxu0 0.0
    %v1190 = vand.u32 %v148, 4294901760
    %1191 = vmatmul.mubr.f32.gmra.mxu0 %v1190
    %v1192 = vpop.f32.mrf.mxu0
    %v1193 = vadd.f32 %v1031, %v1192
    %v1194 = vpop.f32.mrf.mxu0
    %1195 = vmatprep.mubr.f32.mxu0 0.0
    %v1196 = vand.u32 %v151, 4294901760
    %1197 = vmatmul.mubr.f32.gmra.mxu0 %v1196
    %v1198 = vpop.f32.mrf.mxu0
    %v1199 = vadd.f32 %v1037, %v1198
    %v1200 = vpop.f32.mrf.mxu0
    %1201 = vmatprep.mubr.f32.mxu0 0.0
    %v1202 = vand.u32 %v154, 4294901760
    %1203 = vmatmul.mubr.f32.gmra.mxu0 %v1202
    %v1204 = vpop.f32.mrf.mxu0
    %v1205 = vadd.f32 %v1043, %v1204
    %v1206 = vpop.f32.mrf.mxu0
    %1207 = vmatprep.mubr.f32.mxu0 0.0
    %v1208 = vand.u32 %v157, 4294901760
    %1209 = vmatmul.mubr.f32.gmra.mxu0 %v1208
    %v1210 = vpop.f32.mrf.mxu0
    %v1211 = vadd.f32 %v1049, %v1210
    %v1212 = vpop.f32.mrf.mxu0
    %1213 = vmatprep.mubr.f32.mxu0 0.0
    %v1214 = vand.u32 %v160, 4294901760
    %1215 = vmatmul.mubr.f32.gmra.mxu0 %v1214
    %v1216 = vpop.f32.mrf.mxu0
    %v1217 = vadd.f32 %v1055, %v1216
    %v1218 = vpop.f32.mrf.mxu0
    %1219 = vmatprep.mubr.f32.mxu0 0.0
    %v1220 = vand.u32 %v163, 4294901760
    %1221 = vmatmul.mubr.f32.gmra.mxu0 %v1220
    %v1222 = vpop.f32.mrf.mxu0
    %v1223 = vadd.f32 %v1061, %v1222
    %v1224 = vpop.f32.mrf.mxu0
    %1225 = vmatprep.mubr.f32.mxu0 0.0
    %v1226 = vand.u32 %v166, 4294901760
    %1227 = vmatmul.mubr.f32.gmra.mxu0 %v1226
    %v1228 = vpop.f32.mrf.mxu0
    %v1229 = vadd.f32 %v1067, %v1228
    %v1230 = vpop.f32.mrf.mxu0
    %1231 = vmatprep.mubr.f32.mxu0 0.0
    %v1232 = vand.u32 %v169, 4294901760
    %1233 = vmatmul.mubr.f32.gmra.mxu0 %v1232
    %v1234 = vpop.f32.mrf.mxu0
    %v1235 = vadd.f32 %v1073, %v1234
    %v1236 = vpop.f32.mrf.mxu0
    %1237 = vmatprep.mubr.f32.mxu0 0.0
    %v1238 = vand.u32 %v172, 4294901760
    %1239 = vmatmul.mubr.f32.gmra.mxu0 %v1238
    %v1240 = vpop.f32.mrf.mxu0
    %v1241 = vadd.f32 %v1079, %v1240
    %v1242 = vpop.f32.mrf.mxu0
    %1243 = vmatprep.mubr.f32.mxu0 0.0
    %v1244 = vand.u32 %v175, 4294901760
    %1245 = vmatmul.mubr.f32.gmra.mxu0 %v1244
    %v1246 = vpop.f32.mrf.mxu0
    %v1247 = vadd.f32 %v1085, %v1246
    %v1248 = vpop.f32.mrf.mxu0
    %1249 = vmatprep.mubr.f32.mxu0 0.0
    %v1250 = vand.u32 %v178, 4294901760
    %1251 = vmatmul.mubr.f32.gmra.mxu0 %v1250
    %v1252 = vpop.f32.mrf.mxu0
    %v1253 = vadd.f32 %v1091, %v1252
    %v1254 = vpop.f32.mrf.mxu0
    %1255 = vmatprep.mubr.f32.mxu0 0.0
    %v1256 = vand.u32 %v181, 4294901760
    %1257 = vmatmul.mubr.f32.gmra.mxu0 %v1256
    %v1258 = vpop.f32.mrf.mxu0
    %v1259 = vadd.f32 %v1097, %v1258
    %v1260 = vpop.f32.mrf.mxu0
    %1261 = vmatprep.mubr.f32.mxu0 0.0
    %v1262 = vand.u32 %v184, 4294901760
    %1263 = vmatmul.mubr.f32.gmra.mxu0 %v1262
    %v1264 = vpop.f32.mrf.mxu0
    %v1265 = vadd.f32 %v1103, %v1264
    %v1266 = vpop.f32.mrf.mxu0
    %1267 = vmatprep.mubr.f32.mxu0 0.0
    %v1268 = vand.u32 %v187, 4294901760
    %1269 = vmatmul.mubr.f32.gmra.mxu0 %v1268
    %v1270 = vpop.f32.mrf.mxu0
    %v1271 = vadd.f32 %v1109, %v1270
    %v1272 = vpop.f32.mrf.mxu0
    %1273 = vmatprep.mubr.f32.mxu0 0.0
    %v1274 = vand.u32 %v190, 4294901760
    %1275 = vmatmul.mubr.f32.gmra.mxu0 %v1274
    %v1276 = vpop.f32.mrf.mxu0
    %v1277 = vadd.f32 %v1115, %v1276
    %v1278 = vpop.f32.mrf.mxu0
    %1279 = vmatprep.mubr.f32.mxu0 0.0
    %v1280 = vand.u32 %v193, 4294901760
    %1281 = vmatmul.mubr.f32.gmra.mxu0 %v1280
    %v1282 = vpop.f32.mrf.mxu0
    %v1283 = vadd.f32 %v1121, %v1282
    %v1284 = vpop.f32.mrf.mxu0
    %1285 = vdwg.mxu0
    %v1286 = vtanh.pop %v1193
    %v1287 = vtanh.pop %v1199
    %v1288 = vtanh.pop %v1205
    %v1289 = vtanh.pop %v1211
    %v1290 = vtanh.pop %v1217
    %v1291 = vtanh.pop %v1223
    %v1292 = vtanh.pop %v1229
    %v1293 = vtanh.pop %v1235
    %v1294 = vtanh.pop %v1241
    %v1295 = vtanh.pop %v1247
    %v1296 = vtanh.pop %v1253
    %v1297 = vtanh.pop %v1259
    %v1298 = vtanh.pop %v1265
    %v1299 = vtanh.pop %v1271
    %v1300 = vtanh.pop %v1277
    %v1301 = vtanh.pop %v1283
    %v1302 = vld [vmem:[%s3] sm:$0xff]
    %v1303 = vld [vmem:[%s3 + $0x8] sm:$0xff]
    %v1304 = vld [vmem:[%s3 + $0x10] sm:$0xff]
    %v1305 = vld [vmem:[%s3 + $0x18] sm:$0xff]
    %v1306 = vld [vmem:[%s3 + $0x20] sm:$0xff]
    %v1307 = vld [vmem:[%s3 + $0x28] sm:$0xff]
    %v1308 = vld [vmem:[%s3 + $0x30] sm:$0xff]
    %v1309 = vld [vmem:[%s3 + $0x38] sm:$0xff]
    %v1310 = vld [vmem:[%s4] sm:$0xff]
    %v1311 = vld [vmem:[%s4 + $0x8] sm:$0xff]
    %v1312 = vld [vmem:[%s4 + $0x10] sm:$0xff]
    %v1313 = vld [vmem:[%s4 + $0x18] sm:$0xff]
    %v1314 = vld [vmem:[%s4 + $0x20] sm:$0xff]
    %v1315 = vld [vmem:[%s4 + $0x28] sm:$0xff]
    %v1316 = vld [vmem:[%s4 + $0x30] sm:$0xff]
    %v1317 = vld [vmem:[%s4 + $0x38] sm:$0xff]
    %1319 = vset.pattern.permute.xlu0 0
    %1320 = vperm.xlu0 %1319, %v1310
    %v1321 = vpop.permute.xlu0 %1320
    %1324 = vset.pattern.permute.xlu0 0
    %1325 = vperm.xlu0 %1324, %v1311
    %v1326 = vpop.permute.xlu0 %1325
    %1329 = vset.pattern.permute.xlu0 0
    %1330 = vperm.xlu0 %1329, %v1312
    %v1331 = vpop.permute.xlu0 %1330
    %1334 = vset.pattern.permute.xlu0 0
    %1335 = vperm.xlu0 %1334, %v1313
    %v1336 = vpop.permute.xlu0 %1335
    %1339 = vset.pattern.permute.xlu0 0
    %1340 = vperm.xlu0 %1339, %v1314
    %v1341 = vpop.permute.xlu0 %1340
    %1344 = vset.pattern.permute.xlu0 0
    %1345 = vperm.xlu0 %1344, %v1315
    %v1346 = vpop.permute.xlu0 %1345
    %1349 = vset.pattern.permute.xlu0 0
    %1350 = vperm.xlu0 %1349, %v1316
    %v1351 = vpop.permute.xlu0 %1350
    %1354 = vset.pattern.permute.xlu0 0
    %1355 = vperm.xlu0 %1354, %v1317
    %v1356 = vpop.permute.xlu0 %1355
    %1358 = vmatprep.subr.mxu0 0.0
    %v1359 = vand.u32 %v1301, 4294901760
    %1360 = vmatpush1.msra.mxu0 %v1359
    %1361 = vmatprep.subr.mxu0 0.0
    %v1362 = vand.u32 %v1300, 4294901760
    %1363 = vmatpush1.msra.mxu0 %v1362
    %1364 = vmatprep.subr.mxu0 0.0
    %v1365 = vand.u32 %v1299, 4294901760
    %1366 = vmatpush1.msra.mxu0 %v1365
    %1367 = vmatprep.subr.mxu0 0.0
    %v1368 = vand.u32 %v1298, 4294901760
    %1369 = vmatpush1.msra.mxu0 %v1368
    %1370 = vmatprep.subr.mxu0 0.0
    %v1371 = vand.u32 %v1297, 4294901760
    %1372 = vmatpush1.msra.mxu0 %v1371
    %1373 = vmatprep.subr.mxu0 0.0
    %v1374 = vand.u32 %v1296, 4294901760
    %1375 = vmatpush1.msra.mxu0 %v1374
    %1376 = vmatprep.subr.mxu0 0.0
    %v1377 = vand.u32 %v1295, 4294901760
    %1378 = vmatpush1.msra.mxu0 %v1377
    %1379 = vmatprep.subr.mxu0 0.0
    %v1380 = vand.u32 %v1294, 4294901760
    %1381 = vmatpush1.msra.mxu0 %v1380
    %1382 = vmatprep.subr.mxu0 0.0
    %v1383 = vand.u32 %v1293, 4294901760
    %1384 = vmatpush1.msra.mxu0 %v1383
    %1385 = vmatprep.subr.mxu0 0.0
    %v1386 = vand.u32 %v1292, 4294901760
    %1387 = vmatpush1.msra.mxu0 %v1386
    %1388 = vmatprep.subr.mxu0 0.0
    %v1389 = vand.u32 %v1291, 4294901760
    %1390 = vmatpush1.msra.mxu0 %v1389
    %1391 = vmatprep.subr.mxu0 0.0
    %v1392 = vand.u32 %v1290, 4294901760
    %1393 = vmatpush1.msra.mxu0 %v1392
    %1394 = vmatprep.subr.mxu0 0.0
    %v1395 = vand.u32 %v1289, 4294901760
    %1396 = vmatpush1.msra.mxu0 %v1395
    %1397 = vmatprep.subr.mxu0 0.0
    %v1398 = vand.u32 %v1288, 4294901760
    %1399 = vmatpush1.msra.mxu0 %v1398
    %1400 = vmatprep.subr.mxu0 0.0
    %v1401 = vand.u32 %v1287, 4294901760
    %1402 = vmatpush1.msra.mxu0 %v1401
    %1403 = vmatprep.subr.mxu0 0.0
    %v1404 = vand.u32 %v1286, 4294901760
    %1405 = vmatpush1.msra.mxu0 %v1404
    %1406 = vmatprep.subr.mxu0 0.0
    %1407 = vmatpush2.msra.mxu0 0.0
    %1408 = vmatprep.subr.mxu0 0.0
    %1409 = vmatpush2.msra.mxu0 0.0
    %1410 = vmatprep.subr.mxu0 0.0
    %1411 = vmatpush2.msra.mxu0 0.0
    %1412 = vmatprep.subr.mxu0 0.0
    %1413 = vmatpush2.msra.mxu0 0.0
    %1414 = vmatprep.subr.mxu0 0.0
    %1415 = vmatpush2.msra.mxu0 0.0
    %1416 = vmatprep.subr.mxu0 0.0
    %1417 = vmatpush2.msra.mxu0 0.0
    %1418 = vmatprep.subr.mxu0 0.0
    %1419 = vmatpush2.msra.mxu0 0.0
    %1420 = vmatprep.subr.mxu0 0.0
    %1421 = vmatpush2.msra.mxu0 0.0
    %1422 = vmatprep.subr.mxu0 0.0
    %1423 = vmatpush2.msra.mxu0 0.0
    %1424 = vmatprep.subr.mxu0 0.0
    %1425 = vmatpush2.msra.mxu0 0.0
    %1426 = vmatprep.subr.mxu0 0.0
    %1427 = vmatpush2.msra.mxu0 0.0
    %1428 = vmatprep.subr.mxu0 0.0
    %1429 = vmatpush2.msra.mxu0 0.0
    %1430 = vmatprep.subr.mxu0 0.0
    %1431 = vmatpush2.msra.mxu0 0.0
    %1432 = vmatprep.subr.mxu0 0.0
    %1433 = vmatpush2.msra.mxu0 0.0
    %1434 = vmatprep.subr.mxu0 0.0
    %1435 = vmatpush2.msra.mxu0 0.0
    %1436 = vmatprep.subr.mxu0 0.0
    %1437 = vmatpush2.msra.mxu0 0.0
    %1438 = vmatprep.mubr.f32.mxu0 0.0
    %v1439 = vand.u32 %v1302, 4294901760
    %v1440 = vsub.f32 %v1302, %v1439
    %v1441 = vand.u32 %v1440, 4294901760
    %v1442 = vsub.f32 %v1440, %v1441
    %v1443 = vand.u32 %v1442, 4294901760
    %1444 = vmatmul.mubr.f32.gmra.mxu0 %v1443
    %v1445 = vpop.f32.mrf.mxu0
    %v1446 = vadd.f32 %v1321, %v1445
    %v1447 = vpop.f32.mrf.mxu0
    %1448 = vmatprep.mubr.f32.mxu0 0.0
    %v1449 = vand.u32 %v1303, 4294901760
    %v1450 = vsub.f32 %v1303, %v1449
    %v1451 = vand.u32 %v1450, 4294901760
    %v1452 = vsub.f32 %v1450, %v1451
    %v1453 = vand.u32 %v1452, 4294901760
    %1454 = vmatmul.mubr.f32.gmra.mxu0 %v1453
    %v1455 = vpop.f32.mrf.mxu0
    %v1456 = vadd.f32 %v1326, %v1455
    %v1457 = vpop.f32.mrf.mxu0
    %1458 = vmatprep.mubr.f32.mxu0 0.0
    %v1459 = vand.u32 %v1304, 4294901760
    %v1460 = vsub.f32 %v1304, %v1459
    %v1461 = vand.u32 %v1460, 4294901760
    %v1462 = vsub.f32 %v1460, %v1461
    %v1463 = vand.u32 %v1462, 4294901760
    %1464 = vmatmul.mubr.f32.gmra.mxu0 %v1463
    %v1465 = vpop.f32.mrf.mxu0
    %v1466 = vadd.f32 %v1331, %v1465
    %v1467 = vpop.f32.mrf.mxu0
    %1468 = vmatprep.mubr.f32.mxu0 0.0
    %v1469 = vand.u32 %v1305, 4294901760
    %v1470 = vsub.f32 %v1305, %v1469
    %v1471 = vand.u32 %v1470, 4294901760
    %v1472 = vsub.f32 %v1470, %v1471
    %v1473 = vand.u32 %v1472, 4294901760
    %1474 = vmatmul.mubr.f32.gmra.mxu0 %v1473
    %v1475 = vpop.f32.mrf.mxu0
    %v1476 = vadd.f32 %v1336, %v1475
    %v1477 = vpop.f32.mrf.mxu0
    %1478 = vmatprep.mubr.f32.mxu0 0.0
    %v1479 = vand.u32 %v1306, 4294901760
    %v1480 = vsub.f32 %v1306, %v1479
    %v1481 = vand.u32 %v1480, 4294901760
    %v1482 = vsub.f32 %v1480, %v1481
    %v1483 = vand.u32 %v1482, 4294901760
    %1484 = vmatmul.mubr.f32.gmra.mxu0 %v1483
    %v1485 = vpop.f32.mrf.mxu0
    %v1486 = vadd.f32 %v1341, %v1485
    %v1487 = vpop.f32.mrf.mxu0
    %1488 = vmatprep.mubr.f32.mxu0 0.0
    %v1489 = vand.u32 %v1307, 4294901760
    %v1490 = vsub.f32 %v1307, %v1489
    %v1491 = vand.u32 %v1490, 4294901760
    %v1492 = vsub.f32 %v1490, %v1491
    %v1493 = vand.u32 %v1492, 4294901760
    %1494 = vmatmul.mubr.f32.gmra.mxu0 %v1493
    %v1495 = vpop.f32.mrf.mxu0
    %v1496 = vadd.f32 %v1346, %v1495
    %v1497 = vpop.f32.mrf.mxu0
    %1498 = vmatprep.mubr.f32.mxu0 0.0
    %v1499 = vand.u32 %v1308, 4294901760
    %v1500 = vsub.f32 %v1308, %v1499
    %v1501 = vand.u32 %v1500, 4294901760
    %v1502 = vsub.f32 %v1500, %v1501
    %v1503 = vand.u32 %v1502, 4294901760
    %1504 = vmatmul.mubr.f32.gmra.mxu0 %v1503
    %v1505 = vpop.f32.mrf.mxu0
    %v1506 = vadd.f32 %v1351, %v1505
    %v1507 = vpop.f32.mrf.mxu0
    %1508 = vmatprep.mubr.f32.mxu0 0.0
    %v1509 = vand.u32 %v1309, 4294901760
    %v1510 = vsub.f32 %v1309, %v1509
    %v1511 = vand.u32 %v1510, 4294901760
    %v1512 = vsub.f32 %v1510, %v1511
    %v1513 = vand.u32 %v1512, 4294901760
    %1514 = vmatmul.mubr.f32.gmra.mxu0 %v1513
    %v1515 = vpop.f32.mrf.mxu0
    %v1516 = vadd.f32 %v1356, %v1515
    %v1517 = vpop.f32.mrf.mxu0
    %1518 = vdwg.mxu0
    %1519 = vmatprep.subr.mxu0 0.0
    %v1520 = vand.u32 %v1301, 4294901760
    %v1521 = vsub.f32 %v1301, %v1520
    %v1522 = vand.u32 %v1521, 4294901760
    %v1523 = vsub.f32 %v1521, %v1522
    %v1524 = vand.u32 %v1523, 4294901760
    %1525 = vmatpush1.msra.mxu0 %v1524
    %1526 = vmatprep.subr.mxu0 0.0
    %v1527 = vand.u32 %v1300, 4294901760
    %v1528 = vsub.f32 %v1300, %v1527
    %v1529 = vand.u32 %v1528, 4294901760
    %v1530 = vsub.f32 %v1528, %v1529
    %v1531 = vand.u32 %v1530, 4294901760
    %1532 = vmatpush1.msra.mxu0 %v1531
    %1533 = vmatprep.subr.mxu0 0.0
    %v1534 = vand.u32 %v1299, 4294901760
    %v1535 = vsub.f32 %v1299, %v1534
    %v1536 = vand.u32 %v1535, 4294901760
    %v1537 = vsub.f32 %v1535, %v1536
    %v1538 = vand.u32 %v1537, 4294901760
    %1539 = vmatpush1.msra.mxu0 %v1538
    %1540 = vmatprep.subr.mxu0 0.0
    %v1541 = vand.u32 %v1298, 4294901760
    %v1542 = vsub.f32 %v1298, %v1541
    %v1543 = vand.u32 %v1542, 4294901760
    %v1544 = vsub.f32 %v1542, %v1543
    %v1545 = vand.u32 %v1544, 4294901760
    %1546 = vmatpush1.msra.mxu0 %v1545
    %1547 = vmatprep.subr.mxu0 0.0
    %v1548 = vand.u32 %v1297, 4294901760
    %v1549 = vsub.f32 %v1297, %v1548
    %v1550 = vand.u32 %v1549, 4294901760
    %v1551 = vsub.f32 %v1549, %v1550
    %v1552 = vand.u32 %v1551, 4294901760
    %1553 = vmatpush1.msra.mxu0 %v1552
    %1554 = vmatprep.subr.mxu0 0.0
    %v1555 = vand.u32 %v1296, 4294901760
    %v1556 = vsub.f32 %v1296, %v1555
    %v1557 = vand.u32 %v1556, 4294901760
    %v1558 = vsub.f32 %v1556, %v1557
    %v1559 = vand.u32 %v1558, 4294901760
    %1560 = vmatpush1.msra.mxu0 %v1559
    %1561 = vmatprep.subr.mxu0 0.0
    %v1562 = vand.u32 %v1295, 4294901760
    %v1563 = vsub.f32 %v1295, %v1562
    %v1564 = vand.u32 %v1563, 4294901760
    %v1565 = vsub.f32 %v1563, %v1564
    %v1566 = vand.u32 %v1565, 4294901760
    %1567 = vmatpush1.msra.mxu0 %v1566
    %1568 = vmatprep.subr.mxu0 0.0
    %v1569 = vand.u32 %v1294, 4294901760
    %v1570 = vsub.f32 %v1294, %v1569
    %v1571 = vand.u32 %v1570, 4294901760
    %v1572 = vsub.f32 %v1570, %v1571
    %v1573 = vand.u32 %v1572, 4294901760
    %1574 = vmatpush1.msra.mxu0 %v1573
    %1575 = vmatprep.subr.mxu0 0.0
    %v1576 = vand.u32 %v1293, 4294901760
    %v1577 = vsub.f32 %v1293, %v1576
    %v1578 = vand.u32 %v1577, 4294901760
    %v1579 = vsub.f32 %v1577, %v1578
    %v1580 = vand.u32 %v1579, 4294901760
    %1581 = vmatpush1.msra.mxu0 %v1580
    %1582 = vmatprep.subr.mxu0 0.0
    %v1583 = vand.u32 %v1292, 4294901760
    %v1584 = vsub.f32 %v1292, %v1583
    %v1585 = vand.u32 %v1584, 4294901760
    %v1586 = vsub.f32 %v1584, %v1585
    %v1587 = vand.u32 %v1586, 4294901760
    %1588 = vmatpush1.msra.mxu0 %v1587
    %1589 = vmatprep.subr.mxu0 0.0
    %v1590 = vand.u32 %v1291, 4294901760
    %v1591 = vsub.f32 %v1291, %v1590
    %v1592 = vand.u32 %v1591, 4294901760
    %v1593 = vsub.f32 %v1591, %v1592
    %v1594 = vand.u32 %v1593, 4294901760
    %1595 = vmatpush1.msra.mxu0 %v1594
    %1596 = vmatprep.subr.mxu0 0.0
    %v1597 = vand.u32 %v1290, 4294901760
    %v1598 = vsub.f32 %v1290, %v1597
    %v1599 = vand.u32 %v1598, 4294901760
    %v1600 = vsub.f32 %v1598, %v1599
    %v1601 = vand.u32 %v1600, 4294901760
    %1602 = vmatpush1.msra.mxu0 %v1601
    %1603 = vmatprep.subr.mxu0 0.0
    %v1604 = vand.u32 %v1289, 4294901760
    %v1605 = vsub.f32 %v1289, %v1604
    %v1606 = vand.u32 %v1605, 4294901760
    %v1607 = vsub.f32 %v1605, %v1606
    %v1608 = vand.u32 %v1607, 4294901760
    %1609 = vmatpush1.msra.mxu0 %v1608
    %1610 = vmatprep.subr.mxu0 0.0
    %v1611 = vand.u32 %v1288, 4294901760
    %v1612 = vsub.f32 %v1288, %v1611
    %v1613 = vand.u32 %v1612, 4294901760
    %v1614 = vsub.f32 %v1612, %v1613
    %v1615 = vand.u32 %v1614, 4294901760
    %1616 = vmatpush1.msra.mxu0 %v1615
    %1617 = vmatprep.subr.mxu0 0.0
    %v1618 = vand.u32 %v1287, 4294901760
    %v1619 = vsub.f32 %v1287, %v1618
    %v1620 = vand.u32 %v1619, 4294901760
    %v1621 = vsub.f32 %v1619, %v1620
    %v1622 = vand.u32 %v1621, 4294901760
    %1623 = vmatpush1.msra.mxu0 %v1622
    %1624 = vmatprep.subr.mxu0 0.0
    %v1625 = vand.u32 %v1286, 4294901760
    %v1626 = vsub.f32 %v1286, %v1625
    %v1627 = vand.u32 %v1626, 4294901760
    %v1628 = vsub.f32 %v1626, %v1627
    %v1629 = vand.u32 %v1628, 4294901760
    %1630 = vmatpush1.msra.mxu0 %v1629
    %1631 = vmatprep.subr.mxu0 0.0
    %1632 = vmatpush2.msra.mxu0 0.0
    %1633 = vmatprep.subr.mxu0 0.0
    %1634 = vmatpush2.msra.mxu0 0.0
    %1635 = vmatprep.subr.mxu0 0.0
    %1636 = vmatpush2.msra.mxu0 0.0
    %1637 = vmatprep.subr.mxu0 0.0
    %1638 = vmatpush2.msra.mxu0 0.0
    %1639 = vmatprep.subr.mxu0 0.0
    %1640 = vmatpush2.msra.mxu0 0.0
    %1641 = vmatprep.subr.mxu0 0.0
    %1642 = vmatpush2.msra.mxu0 0.0
    %1643 = vmatprep.subr.mxu0 0.0
    %1644 = vmatpush2.msra.mxu0 0.0
    %1645 = vmatprep.subr.mxu0 0.0
    %1646 = vmatpush2.msra.mxu0 0.0
    %1647 = vmatprep.subr.mxu0 0.0
    %1648 = vmatpush2.msra.mxu0 0.0
    %1649 = vmatprep.subr.mxu0 0.0
    %1650 = vmatpush2.msra.mxu0 0.0
    %1651 = vmatprep.subr.mxu0 0.0
    %1652 = vmatpush2.msra.mxu0 0.0
    %1653 = vmatprep.subr.mxu0 0.0
    %1654 = vmatpush2.msra.mxu0 0.0
    %1655 = vmatprep.subr.mxu0 0.0
    %1656 = vmatpush2.msra.mxu0 0.0
    %1657 = vmatprep.subr.mxu0 0.0
    %1658 = vmatpush2.msra.mxu0 0.0
    %1659 = vmatprep.subr.mxu0 0.0
    %1660 = vmatpush2.msra.mxu0 0.0
    %1661 = vmatprep.subr.mxu0 0.0
    %1662 = vmatpush2.msra.mxu0 0.0
    %1663 = vmatprep.mubr.f32.mxu0 0.0
    %v1664 = vand.u32 %v1302, 4294901760
    %1665 = vmatmul.mubr.f32.gmra.mxu0 %v1664
    %v1666 = vpop.f32.mrf.mxu0
    %v1667 = vadd.f32 %v1446, %v1666
    %v1668 = vpop.f32.mrf.mxu0
    %1669 = vmatprep.mubr.f32.mxu0 0.0
    %v1670 = vand.u32 %v1303, 4294901760
    %1671 = vmatmul.mubr.f32.gmra.mxu0 %v1670
    %v1672 = vpop.f32.mrf.mxu0
    %v1673 = vadd.f32 %v1456, %v1672
    %v1674 = vpop.f32.mrf.mxu0
    %1675 = vmatprep.mubr.f32.mxu0 0.0
    %v1676 = vand.u32 %v1304, 4294901760
    %1677 = vmatmul.mubr.f32.gmra.mxu0 %v1676
    %v1678 = vpop.f32.mrf.mxu0
    %v1679 = vadd.f32 %v1466, %v1678
    %v1680 = vpop.f32.mrf.mxu0
    %1681 = vmatprep.mubr.f32.mxu0 0.0
    %v1682 = vand.u32 %v1305, 4294901760
    %1683 = vmatmul.mubr.f32.gmra.mxu0 %v1682
    %v1684 = vpop.f32.mrf.mxu0
    %v1685 = vadd.f32 %v1476, %v1684
    %v1686 = vpop.f32.mrf.mxu0
    %1687 = vmatprep.mubr.f32.mxu0 0.0
    %v1688 = vand.u32 %v1306, 4294901760
    %1689 = vmatmul.mubr.f32.gmra.mxu0 %v1688
    %v1690 = vpop.f32.mrf.mxu0
    %v1691 = vadd.f32 %v1486, %v1690
    %v1692 = vpop.f32.mrf.mxu0
    %1693 = vmatprep.mubr.f32.mxu0 0.0
    %v1694 = vand.u32 %v1307, 4294901760
    %1695 = vmatmul.mubr.f32.gmra.mxu0 %v1694
    %v1696 = vpop.f32.mrf.mxu0
    %v1697 = vadd.f32 %v1496, %v1696
    %v1698 = vpop.f32.mrf.mxu0
    %1699 = vmatprep.mubr.f32.mxu0 0.0
    %v1700 = vand.u32 %v1308, 4294901760
    %1701 = vmatmul.mubr.f32.gmra.mxu0 %v1700
    %v1702 = vpop.f32.mrf.mxu0
    %v1703 = vadd.f32 %v1506, %v1702
    %v1704 = vpop.f32.mrf.mxu0
    %1705 = vmatprep.mubr.f32.mxu0 0.0
    %v1706 = vand.u32 %v1309, 4294901760
    %1707 = vmatmul.mubr.f32.gmra.mxu0 %v1706
    %v1708 = vpop.f32.mrf.mxu0
    %v1709 = vadd.f32 %v1516, %v1708
    %v1710 = vpop.f32.mrf.mxu0
    %1711 = vdwg.mxu0
    %1712 = vmatprep.subr.mxu0 0.0
    %v1713 = vand.u32 %v1301, 4294901760
    %v1714 = vsub.f32 %v1301, %v1713
    %1715 = vmatpush1.msra.mxu0 %v1714
    %1716 = vmatprep.subr.mxu0 0.0
    %v1717 = vand.u32 %v1300, 4294901760
    %v1718 = vsub.f32 %v1300, %v1717
    %1719 = vmatpush1.msra.mxu0 %v1718
    %1720 = vmatprep.subr.mxu0 0.0
    %v1721 = vand.u32 %v1299, 4294901760
    %v1722 = vsub.f32 %v1299, %v1721
    %1723 = vmatpush1.msra.mxu0 %v1722
    %1724 = vmatprep.subr.mxu0 0.0
    %v1725 = vand.u32 %v1298, 4294901760
    %v1726 = vsub.f32 %v1298, %v1725
    %1727 = vmatpush1.msra.mxu0 %v1726
    %1728 = vmatprep.subr.mxu0 0.0
    %v1729 = vand.u32 %v1297, 4294901760
    %v1730 = vsub.f32 %v1297, %v1729
    %1731 = vmatpush1.msra.mxu0 %v1730
    %1732 = vmatprep.subr.mxu0 0.0
    %v1733 = vand.u32 %v1296, 4294901760
    %v1734 = vsub.f32 %v1296, %v1733
    %1735 = vmatpush1.msra.mxu0 %v1734
    %1736 = vmatprep.subr.mxu0 0.0
    %v1737 = vand.u32 %v1295, 4294901760
    %v1738 = vsub.f32 %v1295, %v1737
    %1739 = vmatpush1.msra.mxu0 %v1738
    %1740 = vmatprep.subr.mxu0 0.0
    %v1741 = vand.u32 %v1294, 4294901760
    %v1742 = vsub.f32 %v1294, %v1741
    %1743 = vmatpush1.msra.mxu0 %v1742
    %1744 = vmatprep.subr.mxu0 0.0
    %v1745 = vand.u32 %v1293, 4294901760
    %v1746 = vsub.f32 %v1293, %v1745
    %1747 = vmatpush1.msra.mxu0 %v1746
    %1748 = vmatprep.subr.mxu0 0.0
    %v1749 = vand.u32 %v1292, 4294901760
    %v1750 = vsub.f32 %v1292, %v1749
    %1751 = vmatpush1.msra.mxu0 %v1750
    %1752 = vmatprep.subr.mxu0 0.0
    %v1753 = vand.u32 %v1291, 4294901760
    %v1754 = vsub.f32 %v1291, %v1753
    %1755 = vmatpush1.msra.mxu0 %v1754
    %1756 = vmatprep.subr.mxu0 0.0
    %v1757 = vand.u32 %v1290, 4294901760
    %v1758 = vsub.f32 %v1290, %v1757
    %1759 = vmatpush1.msra.mxu0 %v1758
    %1760 = vmatprep.subr.mxu0 0.0
    %v1761 = vand.u32 %v1289, 4294901760
    %v1762 = vsub.f32 %v1289, %v1761
    %1763 = vmatpush1.msra.mxu0 %v1762
    %1764 = vmatprep.subr.mxu0 0.0
    %v1765 = vand.u32 %v1288, 4294901760
    %v1766 = vsub.f32 %v1288, %v1765
    %1767 = vmatpush1.msra.mxu0 %v1766
    %1768 = vmatprep.subr.mxu0 0.0
    %v1769 = vand.u32 %v1287, 4294901760
    %v1770 = vsub.f32 %v1287, %v1769
    %1771 = vmatpush1.msra.mxu0 %v1770
    %1772 = vmatprep.subr.mxu0 0.0
    %v1773 = vand.u32 %v1286, 4294901760
    %v1774 = vsub.f32 %v1286, %v1773
    %1775 = vmatpush1.msra.mxu0 %v1774
    %1776 = vmatprep.subr.mxu0 0.0
    %1777 = vmatpush2.msra.mxu0 0.0
    %1778 = vmatprep.subr.mxu0 0.0
    %1779 = vmatpush2.msra.mxu0 0.0
    %1780 = vmatprep.subr.mxu0 0.0
    %1781 = vmatpush2.msra.mxu0 0.0
    %1782 = vmatprep.subr.mxu0 0.0
    %1783 = vmatpush2.msra.mxu0 0.0
    %1784 = vmatprep.subr.mxu0 0.0
    %1785 = vmatpush2.msra.mxu0 0.0
    %1786 = vmatprep.subr.mxu0 0.0
    %1787 = vmatpush2.msra.mxu0 0.0
    %1788 = vmatprep.subr.mxu0 0.0
    %1789 = vmatpush2.msra.mxu0 0.0
    %1790 = vmatprep.subr.mxu0 0.0
    %1791 = vmatpush2.msra.mxu0 0.0
    %1792 = vmatprep.subr.mxu0 0.0
    %1793 = vmatpush2.msra.mxu0 0.0
    %1794 = vmatprep.subr.mxu0 0.0
    %1795 = vmatpush2.msra.mxu0 0.0
    %1796 = vmatprep.subr.mxu0 0.0
    %1797 = vmatpush2.msra.mxu0 0.0
    %1798 = vmatprep.subr.mxu0 0.0
    %1799 = vmatpush2.msra.mxu0 0.0
    %1800 = vmatprep.subr.mxu0 0.0
    %1801 = vmatpush2.msra.mxu0 0.0
    %1802 = vmatprep.subr.mxu0 0.0
    %1803 = vmatpush2.msra.mxu0 0.0
    %1804 = vmatprep.subr.mxu0 0.0
    %1805 = vmatpush2.msra.mxu0 0.0
    %1806 = vmatprep.subr.mxu0 0.0
    %1807 = vmatpush2.msra.mxu0 0.0
    %1808 = vmatprep.mubr.f32.mxu0 0.0
    %v1809 = vand.u32 %v1302, 4294901760
    %v1810 = vsub.f32 %v1302, %v1809
    %1811 = vmatmul.mubr.f32.gmra.mxu0 %v1810
    %v1812 = vpop.f32.mrf.mxu0
    %v1813 = vadd.f32 %v1667, %v1812
    %v1814 = vpop.f32.mrf.mxu0
    %1815 = vmatprep.mubr.f32.mxu0 0.0
    %v1816 = vand.u32 %v1303, 4294901760
    %v1817 = vsub.f32 %v1303, %v1816
    %1818 = vmatmul.mubr.f32.gmra.mxu0 %v1817
    %v1819 = vpop.f32.mrf.mxu0
    %v1820 = vadd.f32 %v1673, %v1819
    %v1821 = vpop.f32.mrf.mxu0
    %1822 = vmatprep.mubr.f32.mxu0 0.0
    %v1823 = vand.u32 %v1304, 4294901760
    %v1824 = vsub.f32 %v1304, %v1823
    %1825 = vmatmul.mubr.f32.gmra.mxu0 %v1824
    %v1826 = vpop.f32.mrf.mxu0
    %v1827 = vadd.f32 %v1679, %v1826
    %v1828 = vpop.f32.mrf.mxu0
    %1829 = vmatprep.mubr.f32.mxu0 0.0
    %v1830 = vand.u32 %v1305, 4294901760
    %v1831 = vsub.f32 %v1305, %v1830
    %1832 = vmatmul.mubr.f32.gmra.mxu0 %v1831
    %v1833 = vpop.f32.mrf.mxu0
    %v1834 = vadd.f32 %v1685, %v1833
    %v1835 = vpop.f32.mrf.mxu0
    %1836 = vmatprep.mubr.f32.mxu0 0.0
    %v1837 = vand.u32 %v1306, 4294901760
    %v1838 = vsub.f32 %v1306, %v1837
    %1839 = vmatmul.mubr.f32.gmra.mxu0 %v1838
    %v1840 = vpop.f32.mrf.mxu0
    %v1841 = vadd.f32 %v1691, %v1840
    %v1842 = vpop.f32.mrf.mxu0
    %1843 = vmatprep.mubr.f32.mxu0 0.0
    %v1844 = vand.u32 %v1307, 4294901760
    %v1845 = vsub.f32 %v1307, %v1844
    %1846 = vmatmul.mubr.f32.gmra.mxu0 %v1845
    %v1847 = vpop.f32.mrf.mxu0
    %v1848 = vadd.f32 %v1697, %v1847
    %v1849 = vpop.f32.mrf.mxu0
    %1850 = vmatprep.mubr.f32.mxu0 0.0
    %v1851 = vand.u32 %v1308, 4294901760
    %v1852 = vsub.f32 %v1308, %v1851
    %1853 = vmatmul.mubr.f32.gmra.mxu0 %v1852
    %v1854 = vpop.f32.mrf.mxu0
    %v1855 = vadd.f32 %v1703, %v1854
    %v1856 = vpop.f32.mrf.mxu0
    %1857 = vmatprep.mubr.f32.mxu0 0.0
    %v1858 = vand.u32 %v1309, 4294901760
    %v1859 = vsub.f32 %v1309, %v1858
    %1860 = vmatmul.mubr.f32.gmra.mxu0 %v1859
    %v1861 = vpop.f32.mrf.mxu0
    %v1862 = vadd.f32 %v1709, %v1861
    %v1863 = vpop.f32.mrf.mxu0
    %1864 = vdwg.mxu0
    %1865 = vmatprep.subr.mxu0 0.0
    %v1866 = vand.u32 %v1301, 4294901760
    %1867 = vmatpush1.msra.mxu0 %v1866
    %1868 = vmatprep.subr.mxu0 0.0
    %v1869 = vand.u32 %v1300, 4294901760
    %1870 = vmatpush1.msra.mxu0 %v1869
    %1871 = vmatprep.subr.mxu0 0.0
    %v1872 = vand.u32 %v1299, 4294901760
    %1873 = vmatpush1.msra.mxu0 %v1872
    %1874 = vmatprep.subr.mxu0 0.0
    %v1875 = vand.u32 %v1298, 4294901760
    %1876 = vmatpush1.msra.mxu0 %v1875
    %1877 = vmatprep.subr.mxu0 0.0
    %v1878 = vand.u32 %v1297, 4294901760
    %1879 = vmatpush1.msra.mxu0 %v1878
    %1880 = vmatprep.subr.mxu0 0.0
    %v1881 = vand.u32 %v1296, 4294901760
    %1882 = vmatpush1.msra.mxu0 %v1881
    %1883 = vmatprep.subr.mxu0 0.0
    %v1884 = vand.u32 %v1295, 4294901760
    %1885 = vmatpush1.msra.mxu0 %v1884
    %1886 = vmatprep.subr.mxu0 0.0
    %v1887 = vand.u32 %v1294, 4294901760
    %1888 = vmatpush1.msra.mxu0 %v1887
    %1889 = vmatprep.subr.mxu0 0.0
    %v1890 = vand.u32 %v1293, 4294901760
    %1891 = vmatpush1.msra.mxu0 %v1890
    %1892 = vmatprep.subr.mxu0 0.0
    %v1893 = vand.u32 %v1292, 4294901760
    %1894 = vmatpush1.msra.mxu0 %v1893
    %1895 = vmatprep.subr.mxu0 0.0
    %v1896 = vand.u32 %v1291, 4294901760
    %1897 = vmatpush1.msra.mxu0 %v1896
    %1898 = vmatprep.subr.mxu0 0.0
    %v1899 = vand.u32 %v1290, 4294901760
    %1900 = vmatpush1.msra.mxu0 %v1899
    %1901 = vmatprep.subr.mxu0 0.0
    %v1902 = vand.u32 %v1289, 4294901760
    %1903 = vmatpush1.msra.mxu0 %v1902
    %1904 = vmatprep.subr.mxu0 0.0
    %v1905 = vand.u32 %v1288, 4294901760
    %1906 = vmatpush1.msra.mxu0 %v1905
    %1907 = vmatprep.subr.mxu0 0.0
    %v1908 = vand.u32 %v1287, 4294901760
    %1909 = vmatpush1.msra.mxu0 %v1908
    %1910 = vmatprep.subr.mxu0 0.0
    %v1911 = vand.u32 %v1286, 4294901760
    %1912 = vmatpush1.msra.mxu0 %v1911
    %1913 = vmatprep.subr.mxu0 0.0
    %1914 = vmatpush2.msra.mxu0 0.0
    %1915 = vmatprep.subr.mxu0 0.0
    %1916 = vmatpush2.msra.mxu0 0.0
    %1917 = vmatprep.subr.mxu0 0.0
    %1918 = vmatpush2.msra.mxu0 0.0
    %1919 = vmatprep.subr.mxu0 0.0
    %1920 = vmatpush2.msra.mxu0 0.0
    %1921 = vmatprep.subr.mxu0 0.0
    %1922 = vmatpush2.msra.mxu0 0.0
    %1923 = vmatprep.subr.mxu0 0.0
    %1924 = vmatpush2.msra.mxu0 0.0
    %1925 = vmatprep.subr.mxu0 0.0
    %1926 = vmatpush2.msra.mxu0 0.0
    %1927 = vmatprep.subr.mxu0 0.0
    %1928 = vmatpush2.msra.mxu0 0.0
    %1929 = vmatprep.subr.mxu0 0.0
    %1930 = vmatpush2.msra.mxu0 0.0
    %1931 = vmatprep.subr.mxu0 0.0
    %1932 = vmatpush2.msra.mxu0 0.0
    %1933 = vmatprep.subr.mxu0 0.0
    %1934 = vmatpush2.msra.mxu0 0.0
    %1935 = vmatprep.subr.mxu0 0.0
    %1936 = vmatpush2.msra.mxu0 0.0
    %1937 = vmatprep.subr.mxu0 0.0
    %1938 = vmatpush2.msra.mxu0 0.0
    %1939 = vmatprep.subr.mxu0 0.0
    %1940 = vmatpush2.msra.mxu0 0.0
    %1941 = vmatprep.subr.mxu0 0.0
    %1942 = vmatpush2.msra.mxu0 0.0
    %1943 = vmatprep.subr.mxu0 0.0
    %1944 = vmatpush2.msra.mxu0 0.0
    %1945 = vmatprep.mubr.f32.mxu0 0.0
    %v1946 = vand.u32 %v1302, 4294901760
    %v1947 = vsub.f32 %v1302, %v1946
    %v1948 = vand.u32 %v1947, 4294901760
    %1949 = vmatmul.mubr.f32.gmra.mxu0 %v1948
    %v1950 = vpop.f32.mrf.mxu0
    %v1951 = vadd.f32 %v1813, %v1950
    %v1952 = vpop.f32.mrf.mxu0
    %1953 = vmatprep.mubr.f32.mxu0 0.0
    %v1954 = vand.u32 %v1303, 4294901760
    %v1955 = vsub.f32 %v1303, %v1954
    %v1956 = vand.u32 %v1955, 4294901760
    %1957 = vmatmul.mubr.f32.gmra.mxu0 %v1956
    %v1958 = vpop.f32.mrf.mxu0
    %v1959 = vadd.f32 %v1820, %v1958
    %v1960 = vpop.f32.mrf.mxu0
    %1961 = vmatprep.mubr.f32.mxu0 0.0
    %v1962 = vand.u32 %v1304, 4294901760
    %v1963 = vsub.f32 %v1304, %v1962
    %v1964 = vand.u32 %v1963, 4294901760
    %1965 = vmatmul.mubr.f32.gmra.mxu0 %v1964
    %v1966 = vpop.f32.mrf.mxu0
    %v1967 = vadd.f32 %v1827, %v1966
    %v1968 = vpop.f32.mrf.mxu0
    %1969 = vmatprep.mubr.f32.mxu0 0.0
    %v1970 = vand.u32 %v1305, 4294901760
    %v1971 = vsub.f32 %v1305, %v1970
    %v1972 = vand.u32 %v1971, 4294901760
    %1973 = vmatmul.mubr.f32.gmra.mxu0 %v1972
    %v1974 = vpop.f32.mrf.mxu0
    %v1975 = vadd.f32 %v1834, %v1974
    %v1976 = vpop.f32.mrf.mxu0
    %1977 = vmatprep.mubr.f32.mxu0 0.0
    %v1978 = vand.u32 %v1306, 4294901760
    %v1979 = vsub.f32 %v1306, %v1978
    %v1980 = vand.u32 %v1979, 4294901760
    %1981 = vmatmul.mubr.f32.gmra.mxu0 %v1980
    %v1982 = vpop.f32.mrf.mxu0
    %v1983 = vadd.f32 %v1841, %v1982
    %v1984 = vpop.f32.mrf.mxu0
    %1985 = vmatprep.mubr.f32.mxu0 0.0
    %v1986 = vand.u32 %v1307, 4294901760
    %v1987 = vsub.f32 %v1307, %v1986
    %v1988 = vand.u32 %v1987, 4294901760
    %1989 = vmatmul.mubr.f32.gmra.mxu0 %v1988
    %v1990 = vpop.f32.mrf.mxu0
    %v1991 = vadd.f32 %v1848, %v1990
    %v1992 = vpop.f32.mrf.mxu0
    %1993 = vmatprep.mubr.f32.mxu0 0.0
    %v1994 = vand.u32 %v1308, 4294901760
    %v1995 = vsub.f32 %v1308, %v1994
    %v1996 = vand.u32 %v1995, 4294901760
    %1997 = vmatmul.mubr.f32.gmra.mxu0 %v1996
    %v1998 = vpop.f32.mrf.mxu0
    %v1999 = vadd.f32 %v1855, %v1998
    %v2000 = vpop.f32.mrf.mxu0
    %2001 = vmatprep.mubr.f32.mxu0 0.0
    %v2002 = vand.u32 %v1309, 4294901760
    %v2003 = vsub.f32 %v1309, %v2002
    %v2004 = vand.u32 %v2003, 4294901760
    %2005 = vmatmul.mubr.f32.gmra.mxu0 %v2004
    %v2006 = vpop.f32.mrf.mxu0
    %v2007 = vadd.f32 %v1862, %v2006
    %v2008 = vpop.f32.mrf.mxu0
    %2009 = vdwg.mxu0
    %2010 = vmatprep.subr.mxu0 0.0
    %v2011 = vand.u32 %v1301, 4294901760
    %v2012 = vsub.f32 %v1301, %v2011
    %v2013 = vand.u32 %v2012, 4294901760
    %2014 = vmatpush1.msra.mxu0 %v2013
    %2015 = vmatprep.subr.mxu0 0.0
    %v2016 = vand.u32 %v1300, 4294901760
    %v2017 = vsub.f32 %v1300, %v2016
    %v2018 = vand.u32 %v2017, 4294901760
    %2019 = vmatpush1.msra.mxu0 %v2018
    %2020 = vmatprep.subr.mxu0 0.0
    %v2021 = vand.u32 %v1299, 4294901760
    %v2022 = vsub.f32 %v1299, %v2021
    %v2023 = vand.u32 %v2022, 4294901760
    %2024 = vmatpush1.msra.mxu0 %v2023
    %2025 = vmatprep.subr.mxu0 0.0
    %v2026 = vand.u32 %v1298, 4294901760
    %v2027 = vsub.f32 %v1298, %v2026
    %v2028 = vand.u32 %v2027, 4294901760
    %2029 = vmatpush1.msra.mxu0 %v2028
    %2030 = vmatprep.subr.mxu0 0.0
    %v2031 = vand.u32 %v1297, 4294901760
    %v2032 = vsub.f32 %v1297, %v2031
    %v2033 = vand.u32 %v2032, 4294901760
    %2034 = vmatpush1.msra.mxu0 %v2033
    %2035 = vmatprep.subr.mxu0 0.0
    %v2036 = vand.u32 %v1296, 4294901760
    %v2037 = vsub.f32 %v1296, %v2036
    %v2038 = vand.u32 %v2037, 4294901760
    %2039 = vmatpush1.msra.mxu0 %v2038
    %2040 = vmatprep.subr.mxu0 0.0
    %v2041 = vand.u32 %v1295, 4294901760
    %v2042 = vsub.f32 %v1295, %v2041
    %v2043 = vand.u32 %v2042, 4294901760
    %2044 = vmatpush1.msra.mxu0 %v2043
    %2045 = vmatprep.subr.mxu0 0.0
    %v2046 = vand.u32 %v1294, 4294901760
    %v2047 = vsub.f32 %v1294, %v2046
    %v2048 = vand.u32 %v2047, 4294901760
    %2049 = vmatpush1.msra.mxu0 %v2048
    %2050 = vmatprep.subr.mxu0 0.0
    %v2051 = vand.u32 %v1293, 4294901760
    %v2052 = vsub.f32 %v1293, %v2051
    %v2053 = vand.u32 %v2052, 4294901760
    %2054 = vmatpush1.msra.mxu0 %v2053
    %2055 = vmatprep.subr.mxu0 0.0
    %v2056 = vand.u32 %v1292, 4294901760
    %v2057 = vsub.f32 %v1292, %v2056
    %v2058 = vand.u32 %v2057, 4294901760
    %2059 = vmatpush1.msra.mxu0 %v2058
    %2060 = vmatprep.subr.mxu0 0.0
    %v2061 = vand.u32 %v1291, 4294901760
    %v2062 = vsub.f32 %v1291, %v2061
    %v2063 = vand.u32 %v2062, 4294901760
    %2064 = vmatpush1.msra.mxu0 %v2063
    %2065 = vmatprep.subr.mxu0 0.0
    %v2066 = vand.u32 %v1290, 4294901760
    %v2067 = vsub.f32 %v1290, %v2066
    %v2068 = vand.u32 %v2067, 4294901760
    %2069 = vmatpush1.msra.mxu0 %v2068
    %2070 = vmatprep.subr.mxu0 0.0
    %v2071 = vand.u32 %v1289, 4294901760
    %v2072 = vsub.f32 %v1289, %v2071
    %v2073 = vand.u32 %v2072, 4294901760
    %2074 = vmatpush1.msra.mxu0 %v2073
    %2075 = vmatprep.subr.mxu0 0.0
    %v2076 = vand.u32 %v1288, 4294901760
    %v2077 = vsub.f32 %v1288, %v2076
    %v2078 = vand.u32 %v2077, 4294901760
    %2079 = vmatpush1.msra.mxu0 %v2078
    %2080 = vmatprep.subr.mxu0 0.0
    %v2081 = vand.u32 %v1287, 4294901760
    %v2082 = vsub.f32 %v1287, %v2081
    %v2083 = vand.u32 %v2082, 4294901760
    %2084 = vmatpush1.msra.mxu0 %v2083
    %2085 = vmatprep.subr.mxu0 0.0
    %v2086 = vand.u32 %v1286, 4294901760
    %v2087 = vsub.f32 %v1286, %v2086
    %v2088 = vand.u32 %v2087, 4294901760
    %2089 = vmatpush1.msra.mxu0 %v2088
    %2090 = vmatprep.subr.mxu0 0.0
    %2091 = vmatpush2.msra.mxu0 0.0
    %2092 = vmatprep.subr.mxu0 0.0
    %2093 = vmatpush2.msra.mxu0 0.0
    %2094 = vmatprep.subr.mxu0 0.0
    %2095 = vmatpush2.msra.mxu0 0.0
    %2096 = vmatprep.subr.mxu0 0.0
    %2097 = vmatpush2.msra.mxu0 0.0
    %2098 = vmatprep.subr.mxu0 0.0
    %2099 = vmatpush2.msra.mxu0 0.0
    %2100 = vmatprep.subr.mxu0 0.0
    %2101 = vmatpush2.msra.mxu0 0.0
    %2102 = vmatprep.subr.mxu0 0.0
    %2103 = vmatpush2.msra.mxu0 0.0
    %2104 = vmatprep.subr.mxu0 0.0
    %2105 = vmatpush2.msra.mxu0 0.0
    %2106 = vmatprep.subr.mxu0 0.0
    %2107 = vmatpush2.msra.mxu0 0.0
    %2108 = vmatprep.subr.mxu0 0.0
    %2109 = vmatpush2.msra.mxu0 0.0
    %2110 = vmatprep.subr.mxu0 0.0
    %2111 = vmatpush2.msra.mxu0 0.0
    %2112 = vmatprep.subr.mxu0 0.0
    %2113 = vmatpush2.msra.mxu0 0.0
    %2114 = vmatprep.subr.mxu0 0.0
    %2115 = vmatpush2.msra.mxu0 0.0
    %2116 = vmatprep.subr.mxu0 0.0
    %2117 = vmatpush2.msra.mxu0 0.0
    %2118 = vmatprep.subr.mxu0 0.0
    %2119 = vmatpush2.msra.mxu0 0.0
    %2120 = vmatprep.subr.mxu0 0.0
    %2121 = vmatpush2.msra.mxu0 0.0
    %2122 = vmatprep.mubr.f32.mxu0 0.0
    %v2123 = vand.u32 %v1302, 4294901760
    %2124 = vmatmul.mubr.f32.gmra.mxu0 %v2123
    %v2125 = vpop.f32.mrf.mxu0
    %v2126 = vadd.f32 %v1951, %v2125
    %v2127 = vpop.f32.mrf.mxu0
    %2128 = vmatprep.mubr.f32.mxu0 0.0
    %v2129 = vand.u32 %v1303, 4294901760
    %2130 = vmatmul.mubr.f32.gmra.mxu0 %v2129
    %v2131 = vpop.f32.mrf.mxu0
    %v2132 = vadd.f32 %v1959, %v2131
    %v2133 = vpop.f32.mrf.mxu0
    %2134 = vmatprep.mubr.f32.mxu0 0.0
    %v2135 = vand.u32 %v1304, 4294901760
    %2136 = vmatmul.mubr.f32.gmra.mxu0 %v2135
    %v2137 = vpop.f32.mrf.mxu0
    %v2138 = vadd.f32 %v1967, %v2137
    %v2139 = vpop.f32.mrf.mxu0
    %2140 = vmatprep.mubr.f32.mxu0 0.0
    %v2141 = vand.u32 %v1305, 4294901760
    %2142 = vmatmul.mubr.f32.gmra.mxu0 %v2141
    %v2143 = vpop.f32.mrf.mxu0
    %v2144 = vadd.f32 %v1975, %v2143
    %v2145 = vpop.f32.mrf.mxu0
    %2146 = vmatprep.mubr.f32.mxu0 0.0
    %v2147 = vand.u32 %v1306, 4294901760
    %2148 = vmatmul.mubr.f32.gmra.mxu0 %v2147
    %v2149 = vpop.f32.mrf.mxu0
    %v2150 = vadd.f32 %v1983, %v2149
    %v2151 = vpop.f32.mrf.mxu0
    %2152 = vmatprep.mubr.f32.mxu0 0.0
    %v2153 = vand.u32 %v1307, 4294901760
    %2154 = vmatmul.mubr.f32.gmra.mxu0 %v2153
    %v2155 = vpop.f32.mrf.mxu0
    %v2156 = vadd.f32 %v1991, %v2155
    %v2157 = vpop.f32.mrf.mxu0
    %2158 = vmatprep.mubr.f32.mxu0 0.0
    %v2159 = vand.u32 %v1308, 4294901760
    %2160 = vmatmul.mubr.f32.gmra.mxu0 %v2159
    %v2161 = vpop.f32.mrf.mxu0
    %v2162 = vadd.f32 %v1999, %v2161
    %v2163 = vpop.f32.mrf.mxu0
    %2164 = vmatprep.mubr.f32.mxu0 0.0
    %v2165 = vand.u32 %v1309, 4294901760
    %2166 = vmatmul.mubr.f32.gmra.mxu0 %v2165
    %v2167 = vpop.f32.mrf.mxu0
    %v2168 = vadd.f32 %v2007, %v2167
    %v2169 = vpop.f32.mrf.mxu0
    %2170 = vdwg.mxu0
    %2171 = vmatprep.subr.mxu0 0.0
    %v2172 = vand.u32 %v1301, 4294901760
    %2173 = vmatpush1.msra.mxu0 %v2172
    %2174 = vmatprep.subr.mxu0 0.0
    %v2175 = vand.u32 %v1300, 4294901760
    %2176 = vmatpush1.msra.mxu0 %v2175
    %2177 = vmatprep.subr.mxu0 0.0
    %v2178 = vand.u32 %v1299, 4294901760
    %2179 = vmatpush1.msra.mxu0 %v2178
    %2180 = vmatprep.subr.mxu0 0.0
    %v2181 = vand.u32 %v1298, 4294901760
    %2182 = vmatpush1.msra.mxu0 %v2181
    %2183 = vmatprep.subr.mxu0 0.0
    %v2184 = vand.u32 %v1297, 4294901760
    %2185 = vmatpush1.msra.mxu0 %v2184
    %2186 = vmatprep.subr.mxu0 0.0
    %v2187 = vand.u32 %v1296, 4294901760
    %2188 = vmatpush1.msra.mxu0 %v2187
    %2189 = vmatprep.subr.mxu0 0.0
    %v2190 = vand.u32 %v1295, 4294901760
    %2191 = vmatpush1.msra.mxu0 %v2190
    %2192 = vmatprep.subr.mxu0 0.0
    %v2193 = vand.u32 %v1294, 4294901760
    %2194 = vmatpush1.msra.mxu0 %v2193
    %2195 = vmatprep.subr.mxu0 0.0
    %v2196 = vand.u32 %v1293, 4294901760
    %2197 = vmatpush1.msra.mxu0 %v2196
    %2198 = vmatprep.subr.mxu0 0.0
    %v2199 = vand.u32 %v1292, 4294901760
    %2200 = vmatpush1.msra.mxu0 %v2199
    %2201 = vmatprep.subr.mxu0 0.0
    %v2202 = vand.u32 %v1291, 4294901760
    %2203 = vmatpush1.msra.mxu0 %v2202
    %2204 = vmatprep.subr.mxu0 0.0
    %v2205 = vand.u32 %v1290, 4294901760
    %2206 = vmatpush1.msra.mxu0 %v2205
    %2207 = vmatprep.subr.mxu0 0.0
    %v2208 = vand.u32 %v1289, 4294901760
    %2209 = vmatpush1.msra.mxu0 %v2208
    %2210 = vmatprep.subr.mxu0 0.0
    %v2211 = vand.u32 %v1288, 4294901760
    %2212 = vmatpush1.msra.mxu0 %v2211
    %2213 = vmatprep.subr.mxu0 0.0
    %v2214 = vand.u32 %v1287, 4294901760
    %2215 = vmatpush1.msra.mxu0 %v2214
    %2216 = vmatprep.subr.mxu0 0.0
    %v2217 = vand.u32 %v1286, 4294901760
    %2218 = vmatpush1.msra.mxu0 %v2217
    %2219 = vmatprep.subr.mxu0 0.0
    %2220 = vmatpush2.msra.mxu0 0.0
    %2221 = vmatprep.subr.mxu0 0.0
    %2222 = vmatpush2.msra.mxu0 0.0
    %2223 = vmatprep.subr.mxu0 0.0
    %2224 = vmatpush2.msra.mxu0 0.0
    %2225 = vmatprep.subr.mxu0 0.0
    %2226 = vmatpush2.msra.mxu0 0.0
    %2227 = vmatprep.subr.mxu0 0.0
    %2228 = vmatpush2.msra.mxu0 0.0
    %2229 = vmatprep.subr.mxu0 0.0
    %2230 = vmatpush2.msra.mxu0 0.0
    %2231 = vmatprep.subr.mxu0 0.0
    %2232 = vmatpush2.msra.mxu0 0.0
    %2233 = vmatprep.subr.mxu0 0.0
    %2234 = vmatpush2.msra.mxu0 0.0
    %2235 = vmatprep.subr.mxu0 0.0
    %2236 = vmatpush2.msra.mxu0 0.0
    %2237 = vmatprep.subr.mxu0 0.0
    %2238 = vmatpush2.msra.mxu0 0.0
    %2239 = vmatprep.subr.mxu0 0.0
    %2240 = vmatpush2.msra.mxu0 0.0
    %2241 = vmatprep.subr.mxu0 0.0
    %2242 = vmatpush2.msra.mxu0 0.0
    %2243 = vmatprep.subr.mxu0 0.0
    %2244 = vmatpush2.msra.mxu0 0.0
    %2245 = vmatprep.subr.mxu0 0.0
    %2246 = vmatpush2.msra.mxu0 0.0
    %2247 = vmatprep.subr.mxu0 0.0
    %2248 = vmatpush2.msra.mxu0 0.0
    %2249 = vmatprep.subr.mxu0 0.0
    %2250 = vmatpush2.msra.mxu0 0.0
    %2251 = vmatprep.mubr.f32.mxu0 0.0
    %v2252 = vand.u32 %v1302, 4294901760
    %2253 = vmatmul.mubr.f32.gmra.mxu0 %v2252
    %v2254 = vpop.f32.mrf.mxu0
    %v2255 = vadd.f32 %v2126, %v2254
    %v2256 = vpop.f32.mrf.mxu0
    %2257 = vmatprep.mubr.f32.mxu0 0.0
    %v2258 = vand.u32 %v1303, 4294901760
    %2259 = vmatmul.mubr.f32.gmra.mxu0 %v2258
    %v2260 = vpop.f32.mrf.mxu0
    %v2261 = vadd.f32 %v2132, %v2260
    %v2262 = vpop.f32.mrf.mxu0
    %2263 = vmatprep.mubr.f32.mxu0 0.0
    %v2264 = vand.u32 %v1304, 4294901760
    %2265 = vmatmul.mubr.f32.gmra.mxu0 %v2264
    %v2266 = vpop.f32.mrf.mxu0
    %v2267 = vadd.f32 %v2138, %v2266
    %v2268 = vpop.f32.mrf.mxu0
    %2269 = vmatprep.mubr.f32.mxu0 0.0
    %v2270 = vand.u32 %v1305, 4294901760
    %2271 = vmatmul.mubr.f32.gmra.mxu0 %v2270
    %v2272 = vpop.f32.mrf.mxu0
    %v2273 = vadd.f32 %v2144, %v2272
    %v2274 = vpop.f32.mrf.mxu0
    %2275 = vmatprep.mubr.f32.mxu0 0.0
    %v2276 = vand.u32 %v1306, 4294901760
    %2277 = vmatmul.mubr.f32.gmra.mxu0 %v2276
    %v2278 = vpop.f32.mrf.mxu0
    %v2279 = vadd.f32 %v2150, %v2278
    %v2280 = vpop.f32.mrf.mxu0
    %2281 = vmatprep.mubr.f32.mxu0 0.0
    %v2282 = vand.u32 %v1307, 4294901760
    %2283 = vmatmul.mubr.f32.gmra.mxu0 %v2282
    %v2284 = vpop.f32.mrf.mxu0
    %v2285 = vadd.f32 %v2156, %v2284
    %v2286 = vpop.f32.mrf.mxu0
    %2287 = vmatprep.mubr.f32.mxu0 0.0
    %v2288 = vand.u32 %v1308, 4294901760
    %2289 = vmatmul.mubr.f32.gmra.mxu0 %v2288
    %v2290 = vpop.f32.mrf.mxu0
    %v2291 = vadd.f32 %v2162, %v2290
    %v2292 = vpop.f32.mrf.mxu0
    %2293 = vmatprep.mubr.f32.mxu0 0.0
    %v2294 = vand.u32 %v1309, 4294901760
    %2295 = vmatmul.mubr.f32.gmra.mxu0 %v2294
    %v2296 = vpop.f32.mrf.mxu0
    %v2297 = vadd.f32 %v2168, %v2296
    %v2298 = vpop.f32.mrf.mxu0
    %2299 = vdwg.mxu0
    %v2300 = vtanh.pop %v2255
    %v2301 = vtanh.pop %v2261
    %v2302 = vtanh.pop %v2267
    %v2303 = vtanh.pop %v2273
    %v2304 = vtanh.pop %v2279
    %v2305 = vtanh.pop %v2285
    %v2306 = vtanh.pop %v2291
    %v2307 = vtanh.pop %v2297
    %v2308 = vld [vmem:[%s5] sm:$0xff]
    %v2309 = vld [vmem:[%s5 + $0x8] sm:$0xff]
    %v2310 = vld [vmem:[%s5 + $0x10] sm:$0xff]
    %v2311 = vld [vmem:[%s5 + $0x18] sm:$0xff]
    %v2312 = vld [vmem:[%s6] sm:$0xff]
    %v2313 = vld [vmem:[%s6 + $0x8] sm:$0xff]
    %v2314 = vld [vmem:[%s6 + $0x10] sm:$0xff]
    %v2315 = vld [vmem:[%s6 + $0x18] sm:$0xff]
    %2317 = vset.pattern.permute.xlu0 0
    %2318 = vperm.xlu0 %2317, %v2312
    %v2319 = vpop.permute.xlu0 %2318
    %2322 = vset.pattern.permute.xlu0 0
    %2323 = vperm.xlu0 %2322, %v2313
    %v2324 = vpop.permute.xlu0 %2323
    %2327 = vset.pattern.permute.xlu0 0
    %2328 = vperm.xlu0 %2327, %v2314
    %v2329 = vpop.permute.xlu0 %2328
    %2332 = vset.pattern.permute.xlu0 0
    %2333 = vperm.xlu0 %2332, %v2315
    %v2334 = vpop.permute.xlu0 %2333
    %vm2336 = vcmask 523264
    %v2338 = vsel %vm2336, %v2308, 0
    %v2341 = vsel %vm2336, %v2309, 0
    %v2344 = vsel %vm2336, %v2310, 0
    %v2347 = vsel %vm2336, %v2311, 0
    %2349 = vmatprep.subr.mxu0 0.0
    %2350 = vmatpush1.msra.mxu0 0.0
    %2351 = vmatprep.subr.mxu0 0.0
    %2352 = vmatpush1.msra.mxu0 0.0
    %2353 = vmatprep.subr.mxu0 0.0
    %2354 = vmatpush1.msra.mxu0 0.0
    %2355 = vmatprep.subr.mxu0 0.0
    %2356 = vmatpush1.msra.mxu0 0.0
    %2357 = vmatprep.subr.mxu0 0.0
    %2358 = vmatpush1.msra.mxu0 0.0
    %2359 = vmatprep.subr.mxu0 0.0
    %2360 = vmatpush1.msra.mxu0 0.0
    %2361 = vmatprep.subr.mxu0 0.0
    %2362 = vmatpush1.msra.mxu0 0.0
    %2363 = vmatprep.subr.mxu0 0.0
    %2364 = vmatpush1.msra.mxu0 0.0
    %2365 = vmatprep.subr.mxu0 0.0
    %v2366 = vand.u32 %v2307, 4294901760
    %2367 = vmatpush1.msra.mxu0 %v2366
    %2368 = vmatprep.subr.mxu0 0.0
    %v2369 = vand.u32 %v2306, 4294901760
    %2370 = vmatpush1.msra.mxu0 %v2369
    %2371 = vmatprep.subr.mxu0 0.0
    %v2372 = vand.u32 %v2305, 4294901760
    %2373 = vmatpush1.msra.mxu0 %v2372
    %2374 = vmatprep.subr.mxu0 0.0
    %v2375 = vand.u32 %v2304, 4294901760
    %2376 = vmatpush1.msra.mxu0 %v2375
    %2377 = vmatprep.subr.mxu0 0.0
    %v2378 = vand.u32 %v2303, 4294901760
    %2379 = vmatpush1.msra.mxu0 %v2378
    %2380 = vmatprep.subr.mxu0 0.0
    %v2381 = vand.u32 %v2302, 4294901760
    %2382 = vmatpush1.msra.mxu0 %v2381
    %2383 = vmatprep.subr.mxu0 0.0
    %v2384 = vand.u32 %v2301, 4294901760
    %2385 = vmatpush1.msra.mxu0 %v2384
    %2386 = vmatprep.subr.mxu0 0.0
    %v2387 = vand.u32 %v2300, 4294901760
    %2388 = vmatpush1.msra.mxu0 %v2387
    %2389 = vmatprep.subr.mxu0 0.0
    %2390 = vmatpush2.msra.mxu0 0.0
    %2391 = vmatprep.subr.mxu0 0.0
    %2392 = vmatpush2.msra.mxu0 0.0
    %2393 = vmatprep.subr.mxu0 0.0
    %2394 = vmatpush2.msra.mxu0 0.0
    %2395 = vmatprep.subr.mxu0 0.0
    %2396 = vmatpush2.msra.mxu0 0.0
    %2397 = vmatprep.subr.mxu0 0.0
    %2398 = vmatpush2.msra.mxu0 0.0
    %2399 = vmatprep.subr.mxu0 0.0
    %2400 = vmatpush2.msra.mxu0 0.0
    %2401 = vmatprep.subr.mxu0 0.0
    %2402 = vmatpush2.msra.mxu0 0.0
    %2403 = vmatprep.subr.mxu0 0.0
    %2404 = vmatpush2.msra.mxu0 0.0
    %2405 = vmatprep.subr.mxu0 0.0
    %2406 = vmatpush2.msra.mxu0 0.0
    %2407 = vmatprep.subr.mxu0 0.0
    %2408 = vmatpush2.msra.mxu0 0.0
    %2409 = vmatprep.subr.mxu0 0.0
    %2410 = vmatpush2.msra.mxu0 0.0
    %2411 = vmatprep.subr.mxu0 0.0
    %2412 = vmatpush2.msra.mxu0 0.0
    %2413 = vmatprep.subr.mxu0 0.0
    %2414 = vmatpush2.msra.mxu0 0.0
    %2415 = vmatprep.subr.mxu0 0.0
    %2416 = vmatpush2.msra.mxu0 0.0
    %2417 = vmatprep.subr.mxu0 0.0
    %2418 = vmatpush2.msra.mxu0 0.0
    %2419 = vmatprep.subr.mxu0 0.0
    %2420 = vmatpush2.msra.mxu0 0.0
    %2421 = vmatprep.mubr.f32.mxu0 0.0
    %v2422 = vand.u32 %v2338, 4294901760
    %v2423 = vsub.f32 %v2338, %v2422
    %v2424 = vand.u32 %v2423, 4294901760
    %v2425 = vsub.f32 %v2423, %v2424
    %v2426 = vand.u32 %v2425, 4294901760
    %2427 = vmatmul.mubr.f32.gmra.mxu0 %v2426
    %v2428 = vpop.f32.mrf.mxu0
    %v2429 = vadd.f32 %v2319, %v2428
    %v2430 = vpop.f32.mrf.mxu0
    %2431 = vmatprep.mubr.f32.mxu0 0.0
    %v2432 = vand.u32 %v2341, 4294901760
    %v2433 = vsub.f32 %v2341, %v2432
    %v2434 = vand.u32 %v2433, 4294901760
    %v2435 = vsub.f32 %v2433, %v2434
    %v2436 = vand.u32 %v2435, 4294901760
    %2437 = vmatmul.mubr.f32.gmra.mxu0 %v2436
    %v2438 = vpop.f32.mrf.mxu0
    %v2439 = vadd.f32 %v2324, %v2438
    %v2440 = vpop.f32.mrf.mxu0
    %2441 = vmatprep.mubr.f32.mxu0 0.0
    %v2442 = vand.u32 %v2344, 4294901760
    %v2443 = vsub.f32 %v2344, %v2442
    %v2444 = vand.u32 %v2443, 4294901760
    %v2445 = vsub.f32 %v2443, %v2444
    %v2446 = vand.u32 %v2445, 4294901760
    %2447 = vmatmul.mubr.f32.gmra.mxu0 %v2446
    %v2448 = vpop.f32.mrf.mxu0
    %v2449 = vadd.f32 %v2329, %v2448
    %v2450 = vpop.f32.mrf.mxu0
    %2451 = vmatprep.mubr.f32.mxu0 0.0
    %v2452 = vand.u32 %v2347, 4294901760
    %v2453 = vsub.f32 %v2347, %v2452
    %v2454 = vand.u32 %v2453, 4294901760
    %v2455 = vsub.f32 %v2453, %v2454
    %v2456 = vand.u32 %v2455, 4294901760
    %2457 = vmatmul.mubr.f32.gmra.mxu0 %v2456
    %v2458 = vpop.f32.mrf.mxu0
    %v2459 = vadd.f32 %v2334, %v2458
    %v2460 = vpop.f32.mrf.mxu0
    %2461 = vdwg.mxu0
    %2462 = vmatprep.subr.mxu0 0.0
    %2463 = vmatpush1.msra.mxu0 0.0
    %2464 = vmatprep.subr.mxu0 0.0
    %2465 = vmatpush1.msra.mxu0 0.0
    %2466 = vmatprep.subr.mxu0 0.0
    %2467 = vmatpush1.msra.mxu0 0.0
    %2468 = vmatprep.subr.mxu0 0.0
    %2469 = vmatpush1.msra.mxu0 0.0
    %2470 = vmatprep.subr.mxu0 0.0
    %2471 = vmatpush1.msra.mxu0 0.0
    %2472 = vmatprep.subr.mxu0 0.0
    %2473 = vmatpush1.msra.mxu0 0.0
    %2474 = vmatprep.subr.mxu0 0.0
    %2475 = vmatpush1.msra.mxu0 0.0
    %2476 = vmatprep.subr.mxu0 0.0
    %2477 = vmatpush1.msra.mxu0 0.0
    %2478 = vmatprep.subr.mxu0 0.0
    %v2479 = vand.u32 %v2307, 4294901760
    %v2480 = vsub.f32 %v2307, %v2479
    %v2481 = vand.u32 %v2480, 4294901760
    %v2482 = vsub.f32 %v2480, %v2481
    %v2483 = vand.u32 %v2482, 4294901760
    %2484 = vmatpush1.msra.mxu0 %v2483
    %2485 = vmatprep.subr.mxu0 0.0
    %v2486 = vand.u32 %v2306, 4294901760
    %v2487 = vsub.f32 %v2306, %v2486
    %v2488 = vand.u32 %v2487, 4294901760
    %v2489 = vsub.f32 %v2487, %v2488
    %v2490 = vand.u32 %v2489, 4294901760
    %2491 = vmatpush1.msra.mxu0 %v2490
    %2492 = vmatprep.subr.mxu0 0.0
    %v2493 = vand.u32 %v2305, 4294901760
    %v2494 = vsub.f32 %v2305, %v2493
    %v2495 = vand.u32 %v2494, 4294901760
    %v2496 = vsub.f32 %v2494, %v2495
    %v2497 = vand.u32 %v2496, 4294901760
    %2498 = vmatpush1.msra.mxu0 %v2497
    %2499 = vmatprep.subr.mxu0 0.0
    %v2500 = vand.u32 %v2304, 4294901760
    %v2501 = vsub.f32 %v2304, %v2500
    %v2502 = vand.u32 %v2501, 4294901760
    %v2503 = vsub.f32 %v2501, %v2502
    %v2504 = vand.u32 %v2503, 4294901760
    %2505 = vmatpush1.msra.mxu0 %v2504
    %2506 = vmatprep.subr.mxu0 0.0
    %v2507 = vand.u32 %v2303, 4294901760
    %v2508 = vsub.f32 %v2303, %v2507
    %v2509 = vand.u32 %v2508, 4294901760
    %v2510 = vsub.f32 %v2508, %v2509
    %v2511 = vand.u32 %v2510, 4294901760
    %2512 = vmatpush1.msra.mxu0 %v2511
    %2513 = vmatprep.subr.mxu0 0.0
    %v2514 = vand.u32 %v2302, 4294901760
    %v2515 = vsub.f32 %v2302, %v2514
    %v2516 = vand.u32 %v2515, 4294901760
    %v2517 = vsub.f32 %v2515, %v2516
    %v2518 = vand.u32 %v2517, 4294901760
    %2519 = vmatpush1.msra.mxu0 %v2518
    %2520 = vmatprep.subr.mxu0 0.0
    %v2521 = vand.u32 %v2301, 4294901760
    %v2522 = vsub.f32 %v2301, %v2521
    %v2523 = vand.u32 %v2522, 4294901760
    %v2524 = vsub.f32 %v2522, %v2523
    %v2525 = vand.u32 %v2524, 4294901760
    %2526 = vmatpush1.msra.mxu0 %v2525
    %2527 = vmatprep.subr.mxu0 0.0
    %v2528 = vand.u32 %v2300, 4294901760
    %v2529 = vsub.f32 %v2300, %v2528
    %v2530 = vand.u32 %v2529, 4294901760
    %v2531 = vsub.f32 %v2529, %v2530
    %v2532 = vand.u32 %v2531, 4294901760
    %2533 = vmatpush1.msra.mxu0 %v2532
    %2534 = vmatprep.subr.mxu0 0.0
    %2535 = vmatpush2.msra.mxu0 0.0
    %2536 = vmatprep.subr.mxu0 0.0
    %2537 = vmatpush2.msra.mxu0 0.0
    %2538 = vmatprep.subr.mxu0 0.0
    %2539 = vmatpush2.msra.mxu0 0.0
    %2540 = vmatprep.subr.mxu0 0.0
    %2541 = vmatpush2.msra.mxu0 0.0
    %2542 = vmatprep.subr.mxu0 0.0
    %2543 = vmatpush2.msra.mxu0 0.0
    %2544 = vmatprep.subr.mxu0 0.0
    %2545 = vmatpush2.msra.mxu0 0.0
    %2546 = vmatprep.subr.mxu0 0.0
    %2547 = vmatpush2.msra.mxu0 0.0
    %2548 = vmatprep.subr.mxu0 0.0
    %2549 = vmatpush2.msra.mxu0 0.0
    %2550 = vmatprep.subr.mxu0 0.0
    %2551 = vmatpush2.msra.mxu0 0.0
    %2552 = vmatprep.subr.mxu0 0.0
    %2553 = vmatpush2.msra.mxu0 0.0
    %2554 = vmatprep.subr.mxu0 0.0
    %2555 = vmatpush2.msra.mxu0 0.0
    %2556 = vmatprep.subr.mxu0 0.0
    %2557 = vmatpush2.msra.mxu0 0.0
    %2558 = vmatprep.subr.mxu0 0.0
    %2559 = vmatpush2.msra.mxu0 0.0
    %2560 = vmatprep.subr.mxu0 0.0
    %2561 = vmatpush2.msra.mxu0 0.0
    %2562 = vmatprep.subr.mxu0 0.0
    %2563 = vmatpush2.msra.mxu0 0.0
    %2564 = vmatprep.subr.mxu0 0.0
    %2565 = vmatpush2.msra.mxu0 0.0
    %2566 = vmatprep.mubr.f32.mxu0 0.0
    %v2567 = vand.u32 %v2338, 4294901760
    %2568 = vmatmul.mubr.f32.gmra.mxu0 %v2567
    %v2569 = vpop.f32.mrf.mxu0
    %v2570 = vadd.f32 %v2429, %v2569
    %v2571 = vpop.f32.mrf.mxu0
    %2572 = vmatprep.mubr.f32.mxu0 0.0
    %v2573 = vand.u32 %v2341, 4294901760
    %2574 = vmatmul.mubr.f32.gmra.mxu0 %v2573
    %v2575 = vpop.f32.mrf.mxu0
    %v2576 = vadd.f32 %v2439, %v2575
    %v2577 = vpop.f32.mrf.mxu0
    %2578 = vmatprep.mubr.f32.mxu0 0.0
    %v2579 = vand.u32 %v2344, 4294901760
    %2580 = vmatmul.mubr.f32.gmra.mxu0 %v2579
    %v2581 = vpop.f32.mrf.mxu0
    %v2582 = vadd.f32 %v2449, %v2581
    %v2583 = vpop.f32.mrf.mxu0
    %2584 = vmatprep.mubr.f32.mxu0 0.0
    %v2585 = vand.u32 %v2347, 4294901760
    %2586 = vmatmul.mubr.f32.gmra.mxu0 %v2585
    %v2587 = vpop.f32.mrf.mxu0
    %v2588 = vadd.f32 %v2459, %v2587
    %v2589 = vpop.f32.mrf.mxu0
    %2590 = vdwg.mxu0
    %2591 = vmatprep.subr.mxu0 0.0
    %2592 = vmatpush1.msra.mxu0 0.0
    %2593 = vmatprep.subr.mxu0 0.0
    %2594 = vmatpush1.msra.mxu0 0.0
    %2595 = vmatprep.subr.mxu0 0.0
    %2596 = vmatpush1.msra.mxu0 0.0
    %2597 = vmatprep.subr.mxu0 0.0
    %2598 = vmatpush1.msra.mxu0 0.0
    %2599 = vmatprep.subr.mxu0 0.0
    %2600 = vmatpush1.msra.mxu0 0.0
    %2601 = vmatprep.subr.mxu0 0.0
    %2602 = vmatpush1.msra.mxu0 0.0
    %2603 = vmatprep.subr.mxu0 0.0
    %2604 = vmatpush1.msra.mxu0 0.0
    %2605 = vmatprep.subr.mxu0 0.0
    %2606 = vmatpush1.msra.mxu0 0.0
    %2607 = vmatprep.subr.mxu0 0.0
    %v2608 = vand.u32 %v2307, 4294901760
    %v2609 = vsub.f32 %v2307, %v2608
    %2610 = vmatpush1.msra.mxu0 %v2609
    %2611 = vmatprep.subr.mxu0 0.0
    %v2612 = vand.u32 %v2306, 4294901760
    %v2613 = vsub.f32 %v2306, %v2612
    %2614 = vmatpush1.msra.mxu0 %v2613
    %2615 = vmatprep.subr.mxu0 0.0
    %v2616 = vand.u32 %v2305, 4294901760
    %v2617 = vsub.f32 %v2305, %v2616
    %2618 = vmatpush1.msra.mxu0 %v2617
    %2619 = vmatprep.subr.mxu0 0.0
    %v2620 = vand.u32 %v2304, 4294901760
    %v2621 = vsub.f32 %v2304, %v2620
    %2622 = vmatpush1.msra.mxu0 %v2621
    %2623 = vmatprep.subr.mxu0 0.0
    %v2624 = vand.u32 %v2303, 4294901760
    %v2625 = vsub.f32 %v2303, %v2624
    %2626 = vmatpush1.msra.mxu0 %v2625
    %2627 = vmatprep.subr.mxu0 0.0
    %v2628 = vand.u32 %v2302, 4294901760
    %v2629 = vsub.f32 %v2302, %v2628
    %2630 = vmatpush1.msra.mxu0 %v2629
    %2631 = vmatprep.subr.mxu0 0.0
    %v2632 = vand.u32 %v2301, 4294901760
    %v2633 = vsub.f32 %v2301, %v2632
    %2634 = vmatpush1.msra.mxu0 %v2633
    %2635 = vmatprep.subr.mxu0 0.0
    %v2636 = vand.u32 %v2300, 4294901760
    %v2637 = vsub.f32 %v2300, %v2636
    %2638 = vmatpush1.msra.mxu0 %v2637
    %2639 = vmatprep.subr.mxu0 0.0
    %2640 = vmatpush2.msra.mxu0 0.0
    %2641 = vmatprep.subr.mxu0 0.0
    %2642 = vmatpush2.msra.mxu0 0.0
    %2643 = vmatprep.subr.mxu0 0.0
    %2644 = vmatpush2.msra.mxu0 0.0
    %2645 = vmatprep.subr.mxu0 0.0
    %2646 = vmatpush2.msra.mxu0 0.0
    %2647 = vmatprep.subr.mxu0 0.0
    %2648 = vmatpush2.msra.mxu0 0.0
    %2649 = vmatprep.subr.mxu0 0.0
    %2650 = vmatpush2.msra.mxu0 0.0
    %2651 = vmatprep.subr.mxu0 0.0
    %2652 = vmatpush2.msra.mxu0 0.0
    %2653 = vmatprep.subr.mxu0 0.0
    %2654 = vmatpush2.msra.mxu0 0.0
    %2655 = vmatprep.subr.mxu0 0.0
    %2656 = vmatpush2.msra.mxu0 0.0
    %2657 = vmatprep.subr.mxu0 0.0
    %2658 = vmatpush2.msra.mxu0 0.0
    %2659 = vmatprep.subr.mxu0 0.0
    %2660 = vmatpush2.msra.mxu0 0.0
    %2661 = vmatprep.subr.mxu0 0.0
    %2662 = vmatpush2.msra.mxu0 0.0
    %2663 = vmatprep.subr.mxu0 0.0
    %2664 = vmatpush2.msra.mxu0 0.0
    %2665 = vmatprep.subr.mxu0 0.0
    %2666 = vmatpush2.msra.mxu0 0.0
    %2667 = vmatprep.subr.mxu0 0.0
    %2668 = vmatpush2.msra.mxu0 0.0
    %2669 = vmatprep.subr.mxu0 0.0
    %2670 = vmatpush2.msra.mxu0 0.0
    %2671 = vmatprep.mubr.f32.mxu0 0.0
    %v2672 = vand.u32 %v2338, 4294901760
    %v2673 = vsub.f32 %v2338, %v2672
    %2674 = vmatmul.mubr.f32.gmra.mxu0 %v2673
    %v2675 = vpop.f32.mrf.mxu0
    %v2676 = vadd.f32 %v2570, %v2675
    %v2677 = vpop.f32.mrf.mxu0
    %2678 = vmatprep.mubr.f32.mxu0 0.0
    %v2679 = vand.u32 %v2341, 4294901760
    %v2680 = vsub.f32 %v2341, %v2679
    %2681 = vmatmul.mubr.f32.gmra.mxu0 %v2680
    %v2682 = vpop.f32.mrf.mxu0
    %v2683 = vadd.f32 %v2576, %v2682
    %v2684 = vpop.f32.mrf.mxu0
    %2685 = vmatprep.mubr.f32.mxu0 0.0
    %v2686 = vand.u32 %v2344, 4294901760
    %v2687 = vsub.f32 %v2344, %v2686
    %2688 = vmatmul.mubr.f32.gmra.mxu0 %v2687
    %v2689 = vpop.f32.mrf.mxu0
    %v2690 = vadd.f32 %v2582, %v2689
    %v2691 = vpop.f32.mrf.mxu0
    %2692 = vmatprep.mubr.f32.mxu0 0.0
    %v2693 = vand.u32 %v2347, 4294901760
    %v2694 = vsub.f32 %v2347, %v2693
    %2695 = vmatmul.mubr.f32.gmra.mxu0 %v2694
    %v2696 = vpop.f32.mrf.mxu0
    %v2697 = vadd.f32 %v2588, %v2696
    %v2698 = vpop.f32.mrf.mxu0
    %2699 = vdwg.mxu0
    %2700 = vmatprep.subr.mxu0 0.0
    %2701 = vmatpush1.msra.mxu0 0.0
    %2702 = vmatprep.subr.mxu0 0.0
    %2703 = vmatpush1.msra.mxu0 0.0
    %2704 = vmatprep.subr.mxu0 0.0
    %2705 = vmatpush1.msra.mxu0 0.0
    %2706 = vmatprep.subr.mxu0 0.0
    %2707 = vmatpush1.msra.mxu0 0.0
    %2708 = vmatprep.subr.mxu0 0.0
    %2709 = vmatpush1.msra.mxu0 0.0
    %2710 = vmatprep.subr.mxu0 0.0
    %2711 = vmatpush1.msra.mxu0 0.0
    %2712 = vmatprep.subr.mxu0 0.0
    %2713 = vmatpush1.msra.mxu0 0.0
    %2714 = vmatprep.subr.mxu0 0.0
    %2715 = vmatpush1.msra.mxu0 0.0
    %2716 = vmatprep.subr.mxu0 0.0
    %v2717 = vand.u32 %v2307, 4294901760
    %2718 = vmatpush1.msra.mxu0 %v2717
    %2719 = vmatprep.subr.mxu0 0.0
    %v2720 = vand.u32 %v2306, 4294901760
    %2721 = vmatpush1.msra.mxu0 %v2720
    %2722 = vmatprep.subr.mxu0 0.0
    %v2723 = vand.u32 %v2305, 4294901760
    %2724 = vmatpush1.msra.mxu0 %v2723
    %2725 = vmatprep.subr.mxu0 0.0
    %v2726 = vand.u32 %v2304, 4294901760
    %2727 = vmatpush1.msra.mxu0 %v2726
    %2728 = vmatprep.subr.mxu0 0.0
    %v2729 = vand.u32 %v2303, 4294901760
    %2730 = vmatpush1.msra.mxu0 %v2729
    %2731 = vmatprep.subr.mxu0 0.0
    %v2732 = vand.u32 %v2302, 4294901760
    %2733 = vmatpush1.msra.mxu0 %v2732
    %2734 = vmatprep.subr.mxu0 0.0
    %v2735 = vand.u32 %v2301, 4294901760
    %2736 = vmatpush1.msra.mxu0 %v2735
    %2737 = vmatprep.subr.mxu0 0.0
    %v2738 = vand.u32 %v2300, 4294901760
    %2739 = vmatpush1.msra.mxu0 %v2738
    %2740 = vmatprep.subr.mxu0 0.0
    %2741 = vmatpush2.msra.mxu0 0.0
    %2742 = vmatprep.subr.mxu0 0.0
    %2743 = vmatpush2.msra.mxu0 0.0
    %2744 = vmatprep.subr.mxu0 0.0
    %2745 = vmatpush2.msra.mxu0 0.0
    %2746 = vmatprep.subr.mxu0 0.0
    %2747 = vmatpush2.msra.mxu0 0.0
    %2748 = vmatprep.subr.mxu0 0.0
    %2749 = vmatpush2.msra.mxu0 0.0
    %2750 = vmatprep.subr.mxu0 0.0
    %2751 = vmatpush2.msra.mxu0 0.0
    %2752 = vmatprep.subr.mxu0 0.0
    %2753 = vmatpush2.msra.mxu0 0.0
    %2754 = vmatprep.subr.mxu0 0.0
    %2755 = vmatpush2.msra.mxu0 0.0
    %2756 = vmatprep.subr.mxu0 0.0
    %2757 = vmatpush2.msra.mxu0 0.0
    %2758 = vmatprep.subr.mxu0 0.0
    %2759 = vmatpush2.msra.mxu0 0.0
    %2760 = vmatprep.subr.mxu0 0.0
    %2761 = vmatpush2.msra.mxu0 0.0
    %2762 = vmatprep.subr.mxu0 0.0
    %2763 = vmatpush2.msra.mxu0 0.0
    %2764 = vmatprep.subr.mxu0 0.0
    %2765 = vmatpush2.msra.mxu0 0.0
    %2766 = vmatprep.subr.mxu0 0.0
    %2767 = vmatpush2.msra.mxu0 0.0
    %2768 = vmatprep.subr.mxu0 0.0
    %2769 = vmatpush2.msra.mxu0 0.0
    %2770 = vmatprep.subr.mxu0 0.0
    %2771 = vmatpush2.msra.mxu0 0.0
    %2772 = vmatprep.mubr.f32.mxu0 0.0
    %v2773 = vand.u32 %v2338, 4294901760
    %v2774 = vsub.f32 %v2338, %v2773
    %v2775 = vand.u32 %v2774, 4294901760
    %2776 = vmatmul.mubr.f32.gmra.mxu0 %v2775
    %v2777 = vpop.f32.mrf.mxu0
    %v2778 = vadd.f32 %v2676, %v2777
    %v2779 = vpop.f32.mrf.mxu0
    %2780 = vmatprep.mubr.f32.mxu0 0.0
    %v2781 = vand.u32 %v2341, 4294901760
    %v2782 = vsub.f32 %v2341, %v2781
    %v2783 = vand.u32 %v2782, 4294901760
    %2784 = vmatmul.mubr.f32.gmra.mxu0 %v2783
    %v2785 = vpop.f32.mrf.mxu0
    %v2786 = vadd.f32 %v2683, %v2785
    %v2787 = vpop.f32.mrf.mxu0
    %2788 = vmatprep.mubr.f32.mxu0 0.0
    %v2789 = vand.u32 %v2344, 4294901760
    %v2790 = vsub.f32 %v2344, %v2789
    %v2791 = vand.u32 %v2790, 4294901760
    %2792 = vmatmul.mubr.f32.gmra.mxu0 %v2791
    %v2793 = vpop.f32.mrf.mxu0
    %v2794 = vadd.f32 %v2690, %v2793
    %v2795 = vpop.f32.mrf.mxu0
    %2796 = vmatprep.mubr.f32.mxu0 0.0
    %v2797 = vand.u32 %v2347, 4294901760
    %v2798 = vsub.f32 %v2347, %v2797
    %v2799 = vand.u32 %v2798, 4294901760
    %2800 = vmatmul.mubr.f32.gmra.mxu0 %v2799
    %v2801 = vpop.f32.mrf.mxu0
    %v2802 = vadd.f32 %v2697, %v2801
    %v2803 = vpop.f32.mrf.mxu0
    %2804 = vdwg.mxu0
    %2805 = vmatprep.subr.mxu0 0.0
    %2806 = vmatpush1.msra.mxu0 0.0
    %2807 = vmatprep.subr.mxu0 0.0
    %2808 = vmatpush1.msra.mxu0 0.0
    %2809 = vmatprep.subr.mxu0 0.0
    %2810 = vmatpush1.msra.mxu0 0.0
    %2811 = vmatprep.subr.mxu0 0.0
    %2812 = vmatpush1.msra.mxu0 0.0
    %2813 = vmatprep.subr.mxu0 0.0
    %2814 = vmatpush1.msra.mxu0 0.0
    %2815 = vmatprep.subr.mxu0 0.0
    %2816 = vmatpush1.msra.mxu0 0.0
    %2817 = vmatprep.subr.mxu0 0.0
    %2818 = vmatpush1.msra.mxu0 0.0
    %2819 = vmatprep.subr.mxu0 0.0
    %2820 = vmatpush1.msra.mxu0 0.0
    %2821 = vmatprep.subr.mxu0 0.0
    %v2822 = vand.u32 %v2307, 4294901760
    %v2823 = vsub.f32 %v2307, %v2822
    %v2824 = vand.u32 %v2823, 4294901760
    %2825 = vmatpush1.msra.mxu0 %v2824
    %2826 = vmatprep.subr.mxu0 0.0
    %v2827 = vand.u32 %v2306, 4294901760
    %v2828 = vsub.f32 %v2306, %v2827
    %v2829 = vand.u32 %v2828, 4294901760
    %2830 = vmatpush1.msra.mxu0 %v2829
    %2831 = vmatprep.subr.mxu0 0.0
    %v2832 = vand.u32 %v2305, 4294901760
    %v2833 = vsub.f32 %v2305, %v2832
    %v2834 = vand.u32 %v2833, 4294901760
    %2835 = vmatpush1.msra.mxu0 %v2834
    %2836 = vmatprep.subr.mxu0 0.0
    %v2837 = vand.u32 %v2304, 4294901760
    %v2838 = vsub.f32 %v2304, %v2837
    %v2839 = vand.u32 %v2838, 4294901760
    %2840 = vmatpush1.msra.mxu0 %v2839
    %2841 = vmatprep.subr.mxu0 0.0
    %v2842 = vand.u32 %v2303, 4294901760
    %v2843 = vsub.f32 %v2303, %v2842
    %v2844 = vand.u32 %v2843, 4294901760
    %2845 = vmatpush1.msra.mxu0 %v2844
    %2846 = vmatprep.subr.mxu0 0.0
    %v2847 = vand.u32 %v2302, 4294901760
    %v2848 = vsub.f32 %v2302, %v2847
    %v2849 = vand.u32 %v2848, 4294901760
    %2850 = vmatpush1.msra.mxu0 %v2849
    %2851 = vmatprep.subr.mxu0 0.0
    %v2852 = vand.u32 %v2301, 4294901760
    %v2853 = vsub.f32 %v2301, %v2852
    %v2854 = vand.u32 %v2853, 4294901760
    %2855 = vmatpush1.msra.mxu0 %v2854
    %2856 = vmatprep.subr.mxu0 0.0
    %v2857 = vand.u32 %v2300, 4294901760
    %v2858 = vsub.f32 %v2300, %v2857
    %v2859 = vand.u32 %v2858, 4294901760
    %2860 = vmatpush1.msra.mxu0 %v2859
    %2861 = vmatprep.subr.mxu0 0.0
    %2862 = vmatpush2.msra.mxu0 0.0
    %2863 = vmatprep.subr.mxu0 0.0
    %2864 = vmatpush2.msra.mxu0 0.0
    %2865 = vmatprep.subr.mxu0 0.0
    %2866 = vmatpush2.msra.mxu0 0.0
    %2867 = vmatprep.subr.mxu0 0.0
    %2868 = vmatpush2.msra.mxu0 0.0
    %2869 = vmatprep.subr.mxu0 0.0
    %2870 = vmatpush2.msra.mxu0 0.0
    %2871 = vmatprep.subr.mxu0 0.0
    %2872 = vmatpush2.msra.mxu0 0.0
    %2873 = vmatprep.subr.mxu0 0.0
    %2874 = vmatpush2.msra.mxu0 0.0
    %2875 = vmatprep.subr.mxu0 0.0
    %2876 = vmatpush2.msra.mxu0 0.0
    %2877 = vmatprep.subr.mxu0 0.0
    %2878 = vmatpush2.msra.mxu0 0.0
    %2879 = vmatprep.subr.mxu0 0.0
    %2880 = vmatpush2.msra.mxu0 0.0
    %2881 = vmatprep.subr.mxu0 0.0
    %2882 = vmatpush2.msra.mxu0 0.0
    %2883 = vmatprep.subr.mxu0 0.0
    %2884 = vmatpush2.msra.mxu0 0.0
    %2885 = vmatprep.subr.mxu0 0.0
    %2886 = vmatpush2.msra.mxu0 0.0
    %2887 = vmatprep.subr.mxu0 0.0
    %2888 = vmatpush2.msra.mxu0 0.0
    %2889 = vmatprep.subr.mxu0 0.0
    %2890 = vmatpush2.msra.mxu0 0.0
    %2891 = vmatprep.subr.mxu0 0.0
    %2892 = vmatpush2.msra.mxu0 0.0
    %2893 = vmatprep.mubr.f32.mxu0 0.0
    %v2894 = vand.u32 %v2338, 4294901760
    %2895 = vmatmul.mubr.f32.gmra.mxu0 %v2894
    %v2896 = vpop.f32.mrf.mxu0
    %v2897 = vadd.f32 %v2778, %v2896
    %v2898 = vpop.f32.mrf.mxu0
    %2899 = vmatprep.mubr.f32.mxu0 0.0
    %v2900 = vand.u32 %v2341, 4294901760
    %2901 = vmatmul.mubr.f32.gmra.mxu0 %v2900
    %v2902 = vpop.f32.mrf.mxu0
    %v2903 = vadd.f32 %v2786, %v2902
    %v2904 = vpop.f32.mrf.mxu0
    %2905 = vmatprep.mubr.f32.mxu0 0.0
    %v2906 = vand.u32 %v2344, 4294901760
    %2907 = vmatmul.mubr.f32.gmra.mxu0 %v2906
    %v2908 = vpop.f32.mrf.mxu0
    %v2909 = vadd.f32 %v2794, %v2908
    %v2910 = vpop.f32.mrf.mxu0
    %2911 = vmatprep.mubr.f32.mxu0 0.0
    %v2912 = vand.u32 %v2347, 4294901760
    %2913 = vmatmul.mubr.f32.gmra.mxu0 %v2912
    %v2914 = vpop.f32.mrf.mxu0
    %v2915 = vadd.f32 %v2802, %v2914
    %v2916 = vpop.f32.mrf.mxu0
    %2917 = vdwg.mxu0
    %2918 = vmatprep.subr.mxu0 0.0
    %2919 = vmatpush1.msra.mxu0 0.0
    %2920 = vmatprep.subr.mxu0 0.0
    %2921 = vmatpush1.msra.mxu0 0.0
    %2922 = vmatprep.subr.mxu0 0.0
    %2923 = vmatpush1.msra.mxu0 0.0
    %2924 = vmatprep.subr.mxu0 0.0
    %2925 = vmatpush1.msra.mxu0 0.0
    %2926 = vmatprep.subr.mxu0 0.0
    %2927 = vmatpush1.msra.mxu0 0.0
    %2928 = vmatprep.subr.mxu0 0.0
    %2929 = vmatpush1.msra.mxu0 0.0
    %2930 = vmatprep.subr.mxu0 0.0
    %2931 = vmatpush1.msra.mxu0 0.0
    %2932 = vmatprep.subr.mxu0 0.0
    %2933 = vmatpush1.msra.mxu0 0.0
    %2934 = vmatprep.subr.mxu0 0.0
    %v2935 = vand.u32 %v2307, 4294901760
    %2936 = vmatpush1.msra.mxu0 %v2935
    %2937 = vmatprep.subr.mxu0 0.0
    %v2938 = vand.u32 %v2306, 4294901760
    %2939 = vmatpush1.msra.mxu0 %v2938
    %2940 = vmatprep.subr.mxu0 0.0
    %v2941 = vand.u32 %v2305, 4294901760
    %2942 = vmatpush1.msra.mxu0 %v2941
    %2943 = vmatprep.subr.mxu0 0.0
    %v2944 = vand.u32 %v2304, 4294901760
    %2945 = vmatpush1.msra.mxu0 %v2944
    %2946 = vmatprep.subr.mxu0 0.0
    %v2947 = vand.u32 %v2303, 4294901760
    %2948 = vmatpush1.msra.mxu0 %v2947
    %2949 = vmatprep.subr.mxu0 0.0
    %v2950 = vand.u32 %v2302, 4294901760
    %2951 = vmatpush1.msra.mxu0 %v2950
    %2952 = vmatprep.subr.mxu0 0.0
    %v2953 = vand.u32 %v2301, 4294901760
    %2954 = vmatpush1.msra.mxu0 %v2953
    %2955 = vmatprep.subr.mxu0 0.0
    %v2956 = vand.u32 %v2300, 4294901760
    %2957 = vmatpush1.msra.mxu0 %v2956
    %2958 = vmatprep.subr.mxu0 0.0
    %2959 = vmatpush2.msra.mxu0 0.0
    %2960 = vmatprep.subr.mxu0 0.0
    %2961 = vmatpush2.msra.mxu0 0.0
    %2962 = vmatprep.subr.mxu0 0.0
    %2963 = vmatpush2.msra.mxu0 0.0
    %2964 = vmatprep.subr.mxu0 0.0
    %2965 = vmatpush2.msra.mxu0 0.0
    %2966 = vmatprep.subr.mxu0 0.0
    %2967 = vmatpush2.msra.mxu0 0.0
    %2968 = vmatprep.subr.mxu0 0.0
    %2969 = vmatpush2.msra.mxu0 0.0
    %2970 = vmatprep.subr.mxu0 0.0
    %2971 = vmatpush2.msra.mxu0 0.0
    %2972 = vmatprep.subr.mxu0 0.0
    %2973 = vmatpush2.msra.mxu0 0.0
    %2974 = vmatprep.subr.mxu0 0.0
    %2975 = vmatpush2.msra.mxu0 0.0
    %2976 = vmatprep.subr.mxu0 0.0
    %2977 = vmatpush2.msra.mxu0 0.0
    %2978 = vmatprep.subr.mxu0 0.0
    %2979 = vmatpush2.msra.mxu0 0.0
    %2980 = vmatprep.subr.mxu0 0.0
    %2981 = vmatpush2.msra.mxu0 0.0
    %2982 = vmatprep.subr.mxu0 0.0
    %2983 = vmatpush2.msra.mxu0 0.0
    %2984 = vmatprep.subr.mxu0 0.0
    %2985 = vmatpush2.msra.mxu0 0.0
    %2986 = vmatprep.subr.mxu0 0.0
    %2987 = vmatpush2.msra.mxu0 0.0
    %2988 = vmatprep.subr.mxu0 0.0
    %2989 = vmatpush2.msra.mxu0 0.0
    %2990 = vmatprep.mubr.f32.mxu0 0.0
    %v2991 = vand.u32 %v2338, 4294901760
    %2992 = vmatmul.mubr.f32.gmra.mxu0 %v2991
    %v2993 = vpop.f32.mrf.mxu0
    %v2994 = vadd.f32 %v2897, %v2993
    %v2995 = vpop.f32.mrf.mxu0
    %2996 = vmatprep.mubr.f32.mxu0 0.0
    %v2997 = vand.u32 %v2341, 4294901760
    %2998 = vmatmul.mubr.f32.gmra.mxu0 %v2997
    %v2999 = vpop.f32.mrf.mxu0
    %v3000 = vadd.f32 %v2903, %v2999
    %v3001 = vpop.f32.mrf.mxu0
    %3002 = vmatprep.mubr.f32.mxu0 0.0
    %v3003 = vand.u32 %v2344, 4294901760
    %3004 = vmatmul.mubr.f32.gmra.mxu0 %v3003
    %v3005 = vpop.f32.mrf.mxu0
    %v3006 = vadd.f32 %v2909, %v3005
    %v3007 = vpop.f32.mrf.mxu0
    %3008 = vmatprep.mubr.f32.mxu0 0.0
    %v3009 = vand.u32 %v2347, 4294901760
    %3010 = vmatmul.mubr.f32.gmra.mxu0 %v3009
    %v3011 = vpop.f32.mrf.mxu0
    %v3012 = vadd.f32 %v2915, %v3011
    %v3013 = vpop.f32.mrf.mxu0
    %3014 = vdwg.mxu0
    %v3015 = vtanh.pop %v2994
    %v3016 = vtanh.pop %v3000
    %v3017 = vtanh.pop %v3006
    %v3018 = vtanh.pop %v3012
    %v3019 = vld [vmem:[%s7] sm:$0xf]
    %v3020 = vld [vmem:[%s8] sm:$0xf]
    %3022 = vset.pattern.permute.xlu0 0
    %3023 = vperm.xlu0 %3022, %v3020
    %v3024 = vpop.permute.xlu0 %3023
    %vm3026 = vcmask 261120
    %v3028 = vsel %vm3026, %v3019, 0
    %3030 = vmatprep.subr.mxu0 0.0
    %3031 = vmatpush1.msra.mxu0 0.0
    %3032 = vmatprep.subr.mxu0 0.0
    %3033 = vmatpush1.msra.mxu0 0.0
    %3034 = vmatprep.subr.mxu0 0.0
    %3035 = vmatpush1.msra.mxu0 0.0
    %3036 = vmatprep.subr.mxu0 0.0
    %3037 = vmatpush1.msra.mxu0 0.0
    %3038 = vmatprep.subr.mxu0 0.0
    %3039 = vmatpush1.msra.mxu0 0.0
    %3040 = vmatprep.subr.mxu0 0.0
    %3041 = vmatpush1.msra.mxu0 0.0
    %3042 = vmatprep.subr.mxu0 0.0
    %3043 = vmatpush1.msra.mxu0 0.0
    %3044 = vmatprep.subr.mxu0 0.0
    %3045 = vmatpush1.msra.mxu0 0.0
    %3046 = vmatprep.subr.mxu0 0.0
    %3047 = vmatpush1.msra.mxu0 0.0
    %3048 = vmatprep.subr.mxu0 0.0
    %3049 = vmatpush1.msra.mxu0 0.0
    %3050 = vmatprep.subr.mxu0 0.0
    %3051 = vmatpush1.msra.mxu0 0.0
    %3052 = vmatprep.subr.mxu0 0.0
    %3053 = vmatpush1.msra.mxu0 0.0
    %3054 = vmatprep.subr.mxu0 0.0
    %v3055 = vand.u32 %v3018, 4294901760
    %3056 = vmatpush1.msra.mxu0 %v3055
    %3057 = vmatprep.subr.mxu0 0.0
    %v3058 = vand.u32 %v3017, 4294901760
    %3059 = vmatpush1.msra.mxu0 %v3058
    %3060 = vmatprep.subr.mxu0 0.0
    %v3061 = vand.u32 %v3016, 4294901760
    %3062 = vmatpush1.msra.mxu0 %v3061
    %3063 = vmatprep.subr.mxu0 0.0
    %v3064 = vand.u32 %v3015, 4294901760
    %3065 = vmatpush1.msra.mxu0 %v3064
    %3066 = vmatprep.subr.mxu0 0.0
    %3067 = vmatpush2.msra.mxu0 0.0
    %3068 = vmatprep.subr.mxu0 0.0
    %3069 = vmatpush2.msra.mxu0 0.0
    %3070 = vmatprep.subr.mxu0 0.0
    %3071 = vmatpush2.msra.mxu0 0.0
    %3072 = vmatprep.subr.mxu0 0.0
    %3073 = vmatpush2.msra.mxu0 0.0
    %3074 = vmatprep.subr.mxu0 0.0
    %3075 = vmatpush2.msra.mxu0 0.0
    %3076 = vmatprep.subr.mxu0 0.0
    %3077 = vmatpush2.msra.mxu0 0.0
    %3078 = vmatprep.subr.mxu0 0.0
    %3079 = vmatpush2.msra.mxu0 0.0
    %3080 = vmatprep.subr.mxu0 0.0
    %3081 = vmatpush2.msra.mxu0 0.0
    %3082 = vmatprep.subr.mxu0 0.0
    %3083 = vmatpush2.msra.mxu0 0.0
    %3084 = vmatprep.subr.mxu0 0.0
    %3085 = vmatpush2.msra.mxu0 0.0
    %3086 = vmatprep.subr.mxu0 0.0
    %3087 = vmatpush2.msra.mxu0 0.0
    %3088 = vmatprep.subr.mxu0 0.0
    %3089 = vmatpush2.msra.mxu0 0.0
    %3090 = vmatprep.subr.mxu0 0.0
    %3091 = vmatpush2.msra.mxu0 0.0
    %3092 = vmatprep.subr.mxu0 0.0
    %3093 = vmatpush2.msra.mxu0 0.0
    %3094 = vmatprep.subr.mxu0 0.0
    %3095 = vmatpush2.msra.mxu0 0.0
    %3096 = vmatprep.subr.mxu0 0.0
    %3097 = vmatpush2.msra.mxu0 0.0
    %3098 = vmatprep.mubr.f32.mxu0 0.0
    %v3099 = vand.u32 %v3028, 4294901760
    %v3100 = vsub.f32 %v3028, %v3099
    %v3101 = vand.u32 %v3100, 4294901760
    %v3102 = vsub.f32 %v3100, %v3101
    %v3103 = vand.u32 %v3102, 4294901760
    %3104 = vmatmul.mubr.f32.gmra.mxu0 %v3103
    %v3105 = vpop.f32.mrf.mxu0
    %v3106 = vadd.f32 %v3024, %v3105
    %v3107 = vpop.f32.mrf.mxu0
    %3108 = vdwg.mxu0
    %3109 = vmatprep.subr.mxu0 0.0
    %3110 = vmatpush1.msra.mxu0 0.0
    %3111 = vmatprep.subr.mxu0 0.0
    %3112 = vmatpush1.msra.mxu0 0.0
    %3113 = vmatprep.subr.mxu0 0.0
    %3114 = vmatpush1.msra.mxu0 0.0
    %3115 = vmatprep.subr.mxu0 0.0
    %3116 = vmatpush1.msra.mxu0 0.0
    %3117 = vmatprep.subr.mxu0 0.0
    %3118 = vmatpush1.msra.mxu0 0.0
    %3119 = vmatprep.subr.mxu0 0.0
    %3120 = vmatpush1.msra.mxu0 0.0
    %3121 = vmatprep.subr.mxu0 0.0
    %3122 = vmatpush1.msra.mxu0 0.0
    %3123 = vmatprep.subr.mxu0 0.0
    %3124 = vmatpush1.msra.mxu0 0.0
    %3125 = vmatprep.subr.mxu0 0.0
    %3126 = vmatpush1.msra.mxu0 0.0
    %3127 = vmatprep.subr.mxu0 0.0
    %3128 = vmatpush1.msra.mxu0 0.0
    %3129 = vmatprep.subr.mxu0 0.0
    %3130 = vmatpush1.msra.mxu0 0.0
    %3131 = vmatprep.subr.mxu0 0.0
    %3132 = vmatpush1.msra.mxu0 0.0
    %3133 = vmatprep.subr.mxu0 0.0
    %v3134 = vand.u32 %v3018, 4294901760
    %v3135 = vsub.f32 %v3018, %v3134
    %v3136 = vand.u32 %v3135, 4294901760
    %v3137 = vsub.f32 %v3135, %v3136
    %v3138 = vand.u32 %v3137, 4294901760
    %3139 = vmatpush1.msra.mxu0 %v3138
    %3140 = vmatprep.subr.mxu0 0.0
    %v3141 = vand.u32 %v3017, 4294901760
    %v3142 = vsub.f32 %v3017, %v3141
    %v3143 = vand.u32 %v3142, 4294901760
    %v3144 = vsub.f32 %v3142, %v3143
    %v3145 = vand.u32 %v3144, 4294901760
    %3146 = vmatpush1.msra.mxu0 %v3145
    %3147 = vmatprep.subr.mxu0 0.0
    %v3148 = vand.u32 %v3016, 4294901760
    %v3149 = vsub.f32 %v3016, %v3148
    %v3150 = vand.u32 %v3149, 4294901760
    %v3151 = vsub.f32 %v3149, %v3150
    %v3152 = vand.u32 %v3151, 4294901760
    %3153 = vmatpush1.msra.mxu0 %v3152
    %3154 = vmatprep.subr.mxu0 0.0
    %v3155 = vand.u32 %v3015, 4294901760
    %v3156 = vsub.f32 %v3015, %v3155
    %v3157 = vand.u32 %v3156, 4294901760
    %v3158 = vsub.f32 %v3156, %v3157
    %v3159 = vand.u32 %v3158, 4294901760
    %3160 = vmatpush1.msra.mxu0 %v3159
    %3161 = vmatprep.subr.mxu0 0.0
    %3162 = vmatpush2.msra.mxu0 0.0
    %3163 = vmatprep.subr.mxu0 0.0
    %3164 = vmatpush2.msra.mxu0 0.0
    %3165 = vmatprep.subr.mxu0 0.0
    %3166 = vmatpush2.msra.mxu0 0.0
    %3167 = vmatprep.subr.mxu0 0.0
    %3168 = vmatpush2.msra.mxu0 0.0
    %3169 = vmatprep.subr.mxu0 0.0
    %3170 = vmatpush2.msra.mxu0 0.0
    %3171 = vmatprep.subr.mxu0 0.0
    %3172 = vmatpush2.msra.mxu0 0.0
    %3173 = vmatprep.subr.mxu0 0.0
    %3174 = vmatpush2.msra.mxu0 0.0
    %3175 = vmatprep.subr.mxu0 0.0
    %3176 = vmatpush2.msra.mxu0 0.0
    %3177 = vmatprep.subr.mxu0 0.0
    %3178 = vmatpush2.msra.mxu0 0.0
    %3179 = vmatprep.subr.mxu0 0.0
    %3180 = vmatpush2.msra.mxu0 0.0
    %3181 = vmatprep.subr.mxu0 0.0
    %3182 = vmatpush2.msra.mxu0 0.0
    %3183 = vmatprep.subr.mxu0 0.0
    %3184 = vmatpush2.msra.mxu0 0.0
    %3185 = vmatprep.subr.mxu0 0.0
    %3186 = vmatpush2.msra.mxu0 0.0
    %3187 = vmatprep.subr.mxu0 0.0
    %3188 = vmatpush2.msra.mxu0 0.0
    %3189 = vmatprep.subr.mxu0 0.0
    %3190 = vmatpush2.msra.mxu0 0.0
    %3191 = vmatprep.subr.mxu0 0.0
    %3192 = vmatpush2.msra.mxu0 0.0
    %3193 = vmatprep.mubr.f32.mxu0 0.0
    %v3194 = vand.u32 %v3028, 4294901760
    %3195 = vmatmul.mubr.f32.gmra.mxu0 %v3194
    %v3196 = vpop.f32.mrf.mxu0
    %v3197 = vadd.f32 %v3106, %v3196
    %v3198 = vpop.f32.mrf.mxu0
    %3199 = vdwg.mxu0
    %3200 = vmatprep.subr.mxu0 0.0
    %3201 = vmatpush1.msra.mxu0 0.0
    %3202 = vmatprep.subr.mxu0 0.0
    %3203 = vmatpush1.msra.mxu0 0.0
    %3204 = vmatprep.subr.mxu0 0.0
    %3205 = vmatpush1.msra.mxu0 0.0
    %3206 = vmatprep.subr.mxu0 0.0
    %3207 = vmatpush1.msra.mxu0 0.0
    %3208 = vmatprep.subr.mxu0 0.0
    %3209 = vmatpush1.msra.mxu0 0.0
    %3210 = vmatprep.subr.mxu0 0.0
    %3211 = vmatpush1.msra.mxu0 0.0
    %3212 = vmatprep.subr.mxu0 0.0
    %3213 = vmatpush1.msra.mxu0 0.0
    %3214 = vmatprep.subr.mxu0 0.0
    %3215 = vmatpush1.msra.mxu0 0.0
    %3216 = vmatprep.subr.mxu0 0.0
    %3217 = vmatpush1.msra.mxu0 0.0
    %3218 = vmatprep.subr.mxu0 0.0
    %3219 = vmatpush1.msra.mxu0 0.0
    %3220 = vmatprep.subr.mxu0 0.0
    %3221 = vmatpush1.msra.mxu0 0.0
    %3222 = vmatprep.subr.mxu0 0.0
    %3223 = vmatpush1.msra.mxu0 0.0
    %3224 = vmatprep.subr.mxu0 0.0
    %v3225 = vand.u32 %v3018, 4294901760
    %v3226 = vsub.f32 %v3018, %v3225
    %3227 = vmatpush1.msra.mxu0 %v3226
    %3228 = vmatprep.subr.mxu0 0.0
    %v3229 = vand.u32 %v3017, 4294901760
    %v3230 = vsub.f32 %v3017, %v3229
    %3231 = vmatpush1.msra.mxu0 %v3230
    %3232 = vmatprep.subr.mxu0 0.0
    %v3233 = vand.u32 %v3016, 4294901760
    %v3234 = vsub.f32 %v3016, %v3233
    %3235 = vmatpush1.msra.mxu0 %v3234
    %3236 = vmatprep.subr.mxu0 0.0
    %v3237 = vand.u32 %v3015, 4294901760
    %v3238 = vsub.f32 %v3015, %v3237
    %3239 = vmatpush1.msra.mxu0 %v3238
    %3240 = vmatprep.subr.mxu0 0.0
    %3241 = vmatpush2.msra.mxu0 0.0
    %3242 = vmatprep.subr.mxu0 0.0
    %3243 = vmatpush2.msra.mxu0 0.0
    %3244 = vmatprep.subr.mxu0 0.0
    %3245 = vmatpush2.msra.mxu0 0.0
    %3246 = vmatprep.subr.mxu0 0.0
    %3247 = vmatpush2.msra.mxu0 0.0
    %3248 = vmatprep.subr.mxu0 0.0
    %3249 = vmatpush2.msra.mxu0 0.0
    %3250 = vmatprep.subr.mxu0 0.0
    %3251 = vmatpush2.msra.mxu0 0.0
    %3252 = vmatprep.subr.mxu0 0.0
    %3253 = vmatpush2.msra.mxu0 0.0
    %3254 = vmatprep.subr.mxu0 0.0
    %3255 = vmatpush2.msra.mxu0 0.0
    %3256 = vmatprep.subr.mxu0 0.0
    %3257 = vmatpush2.msra.mxu0 0.0
    %3258 = vmatprep.subr.mxu0 0.0
    %3259 = vmatpush2.msra.mxu0 0.0
    %3260 = vmatprep.subr.mxu0 0.0
    %3261 = vmatpush2.msra.mxu0 0.0
    %3262 = vmatprep.subr.mxu0 0.0
    %3263 = vmatpush2.msra.mxu0 0.0
    %3264 = vmatprep.subr.mxu0 0.0
    %3265 = vmatpush2.msra.mxu0 0.0
    %3266 = vmatprep.subr.mxu0 0.0
    %3267 = vmatpush2.msra.mxu0 0.0
    %3268 = vmatprep.subr.mxu0 0.0
    %3269 = vmatpush2.msra.mxu0 0.0
    %3270 = vmatprep.subr.mxu0 0.0
    %3271 = vmatpush2.msra.mxu0 0.0
    %3272 = vmatprep.mubr.f32.mxu0 0.0
    %v3273 = vand.u32 %v3028, 4294901760
    %v3274 = vsub.f32 %v3028, %v3273
    %3275 = vmatmul.mubr.f32.gmra.mxu0 %v3274
    %v3276 = vpop.f32.mrf.mxu0
    %v3277 = vadd.f32 %v3197, %v3276
    %v3278 = vpop.f32.mrf.mxu0
    %3279 = vdwg.mxu0
    %3280 = vmatprep.subr.mxu0 0.0
    %3281 = vmatpush1.msra.mxu0 0.0
    %3282 = vmatprep.subr.mxu0 0.0
    %3283 = vmatpush1.msra.mxu0 0.0
    %3284 = vmatprep.subr.mxu0 0.0
    %3285 = vmatpush1.msra.mxu0 0.0
    %3286 = vmatprep.subr.mxu0 0.0
    %3287 = vmatpush1.msra.mxu0 0.0
    %3288 = vmatprep.subr.mxu0 0.0
    %3289 = vmatpush1.msra.mxu0 0.0
    %3290 = vmatprep.subr.mxu0 0.0
    %3291 = vmatpush1.msra.mxu0 0.0
    %3292 = vmatprep.subr.mxu0 0.0
    %3293 = vmatpush1.msra.mxu0 0.0
    %3294 = vmatprep.subr.mxu0 0.0
    %3295 = vmatpush1.msra.mxu0 0.0
    %3296 = vmatprep.subr.mxu0 0.0
    %3297 = vmatpush1.msra.mxu0 0.0
    %3298 = vmatprep.subr.mxu0 0.0
    %3299 = vmatpush1.msra.mxu0 0.0
    %3300 = vmatprep.subr.mxu0 0.0
    %3301 = vmatpush1.msra.mxu0 0.0
    %3302 = vmatprep.subr.mxu0 0.0
    %3303 = vmatpush1.msra.mxu0 0.0
    %3304 = vmatprep.subr.mxu0 0.0
    %v3305 = vand.u32 %v3018, 4294901760
    %3306 = vmatpush1.msra.mxu0 %v3305
    %3307 = vmatprep.subr.mxu0 0.0
    %v3308 = vand.u32 %v3017, 4294901760
    %3309 = vmatpush1.msra.mxu0 %v3308
    %3310 = vmatprep.subr.mxu0 0.0
    %v3311 = vand.u32 %v3016, 4294901760
    %3312 = vmatpush1.msra.mxu0 %v3311
    %3313 = vmatprep.subr.mxu0 0.0
    %v3314 = vand.u32 %v3015, 4294901760
    %3315 = vmatpush1.msra.mxu0 %v3314
    %3316 = vmatprep.subr.mxu0 0.0
    %3317 = vmatpush2.msra.mxu0 0.0
    %3318 = vmatprep.subr.mxu0 0.0
    %3319 = vmatpush2.msra.mxu0 0.0
    %3320 = vmatprep.subr.mxu0 0.0
    %3321 = vmatpush2.msra.mxu0 0.0
    %3322 = vmatprep.subr.mxu0 0.0
    %3323 = vmatpush2.msra.mxu0 0.0
    %3324 = vmatprep.subr.mxu0 0.0
    %3325 = vmatpush2.msra.mxu0 0.0
    %3326 = vmatprep.subr.mxu0 0.0
    %3327 = vmatpush2.msra.mxu0 0.0
    %3328 = vmatprep.subr.mxu0 0.0
    %3329 = vmatpush2.msra.mxu0 0.0
    %3330 = vmatprep.subr.mxu0 0.0
    %3331 = vmatpush2.msra.mxu0 0.0
    %3332 = vmatprep.subr.mxu0 0.0
    %3333 = vmatpush2.msra.mxu0 0.0
    %3334 = vmatprep.subr.mxu0 0.0
    %3335 = vmatpush2.msra.mxu0 0.0
    %3336 = vmatprep.subr.mxu0 0.0
    %3337 = vmatpush2.msra.mxu0 0.0
    %3338 = vmatprep.subr.mxu0 0.0
    %3339 = vmatpush2.msra.mxu0 0.0
    %3340 = vmatprep.subr.mxu0 0.0
    %3341 = vmatpush2.msra.mxu0 0.0
    %3342 = vmatprep.subr.mxu0 0.0
    %3343 = vmatpush2.msra.mxu0 0.0
    %3344 = vmatprep.subr.mxu0 0.0
    %3345 = vmatpush2.msra.mxu0 0.0
    %3346 = vmatprep.subr.mxu0 0.0
    %3347 = vmatpush2.msra.mxu0 0.0
    %3348 = vmatprep.mubr.f32.mxu0 0.0
    %v3349 = vand.u32 %v3028, 4294901760
    %v3350 = vsub.f32 %v3028, %v3349
    %v3351 = vand.u32 %v3350, 4294901760
    %3352 = vmatmul.mubr.f32.gmra.mxu0 %v3351
    %v3353 = vpop.f32.mrf.mxu0
    %v3354 = vadd.f32 %v3277, %v3353
    %v3355 = vpop.f32.mrf.mxu0
    %3356 = vdwg.mxu0
    %3357 = vmatprep.subr.mxu0 0.0
    %3358 = vmatpush1.msra.mxu0 0.0
    %3359 = vmatprep.subr.mxu0 0.0
    %3360 = vmatpush1.msra.mxu0 0.0
    %3361 = vmatprep.subr.mxu0 0.0
    %3362 = vmatpush1.msra.mxu0 0.0
    %3363 = vmatprep.subr.mxu0 0.0
    %3364 = vmatpush1.msra.mxu0 0.0
    %3365 = vmatprep.subr.mxu0 0.0
    %3366 = vmatpush1.msra.mxu0 0.0
    %3367 = vmatprep.subr.mxu0 0.0
    %3368 = vmatpush1.msra.mxu0 0.0
    %3369 = vmatprep.subr.mxu0 0.0
    %3370 = vmatpush1.msra.mxu0 0.0
    %3371 = vmatprep.subr.mxu0 0.0
    %3372 = vmatpush1.msra.mxu0 0.0
    %3373 = vmatprep.subr.mxu0 0.0
    %3374 = vmatpush1.msra.mxu0 0.0
    %3375 = vmatprep.subr.mxu0 0.0
    %3376 = vmatpush1.msra.mxu0 0.0
    %3377 = vmatprep.subr.mxu0 0.0
    %3378 = vmatpush1.msra.mxu0 0.0
    %3379 = vmatprep.subr.mxu0 0.0
    %3380 = vmatpush1.msra.mxu0 0.0
    %3381 = vmatprep.subr.mxu0 0.0
    %v3382 = vand.u32 %v3018, 4294901760
    %v3383 = vsub.f32 %v3018, %v3382
    %v3384 = vand.u32 %v3383, 4294901760
    %3385 = vmatpush1.msra.mxu0 %v3384
    %3386 = vmatprep.subr.mxu0 0.0
    %v3387 = vand.u32 %v3017, 4294901760
    %v3388 = vsub.f32 %v3017, %v3387
    %v3389 = vand.u32 %v3388, 4294901760
    %3390 = vmatpush1.msra.mxu0 %v3389
    %3391 = vmatprep.subr.mxu0 0.0
    %v3392 = vand.u32 %v3016, 4294901760
    %v3393 = vsub.f32 %v3016, %v3392
    %v3394 = vand.u32 %v3393, 4294901760
    %3395 = vmatpush1.msra.mxu0 %v3394
    %3396 = vmatprep.subr.mxu0 0.0
    %v3397 = vand.u32 %v3015, 4294901760
    %v3398 = vsub.f32 %v3015, %v3397
    %v3399 = vand.u32 %v3398, 4294901760
    %3400 = vmatpush1.msra.mxu0 %v3399
    %3401 = vmatprep.subr.mxu0 0.0
    %3402 = vmatpush2.msra.mxu0 0.0
    %3403 = vmatprep.subr.mxu0 0.0
    %3404 = vmatpush2.msra.mxu0 0.0
    %3405 = vmatprep.subr.mxu0 0.0
    %3406 = vmatpush2.msra.mxu0 0.0
    %3407 = vmatprep.subr.mxu0 0.0
    %3408 = vmatpush2.msra.mxu0 0.0
    %3409 = vmatprep.subr.mxu0 0.0
    %3410 = vmatpush2.msra.mxu0 0.0
    %3411 = vmatprep.subr.mxu0 0.0
    %3412 = vmatpush2.msra.mxu0 0.0
    %3413 = vmatprep.subr.mxu0 0.0
    %3414 = vmatpush2.msra.mxu0 0.0
    %3415 = vmatprep.subr.mxu0 0.0
    %3416 = vmatpush2.msra.mxu0 0.0
    %3417 = vmatprep.subr.mxu0 0.0
    %3418 = vmatpush2.msra.mxu0 0.0
    %3419 = vmatprep.subr.mxu0 0.0
    %3420 = vmatpush2.msra.mxu0 0.0
    %3421 = vmatprep.subr.mxu0 0.0
    %3422 = vmatpush2.msra.mxu0 0.0
    %3423 = vmatprep.subr.mxu0 0.0
    %3424 = vmatpush2.msra.mxu0 0.0
    %3425 = vmatprep.subr.mxu0 0.0
    %3426 = vmatpush2.msra.mxu0 0.0
    %3427 = vmatprep.subr.mxu0 0.0
    %3428 = vmatpush2.msra.mxu0 0.0
    %3429 = vmatprep.subr.mxu0 0.0
    %3430 = vmatpush2.msra.mxu0 0.0
    %3431 = vmatprep.subr.mxu0 0.0
    %3432 = vmatpush2.msra.mxu0 0.0
    %3433 = vmatprep.mubr.f32.mxu0 0.0
    %v3434 = vand.u32 %v3028, 4294901760
    %3435 = vmatmul.mubr.f32.gmra.mxu0 %v3434
    %v3436 = vpop.f32.mrf.mxu0
    %v3437 = vadd.f32 %v3354, %v3436
    %v3438 = vpop.f32.mrf.mxu0
    %3439 = vdwg.mxu0
    %3440 = vmatprep.subr.mxu0 0.0
    %3441 = vmatpush1.msra.mxu0 0.0
    %3442 = vmatprep.subr.mxu0 0.0
    %3443 = vmatpush1.msra.mxu0 0.0
    %3444 = vmatprep.subr.mxu0 0.0
    %3445 = vmatpush1.msra.mxu0 0.0
    %3446 = vmatprep.subr.mxu0 0.0
    %3447 = vmatpush1.msra.mxu0 0.0
    %3448 = vmatprep.subr.mxu0 0.0
    %3449 = vmatpush1.msra.mxu0 0.0
    %3450 = vmatprep.subr.mxu0 0.0
    %3451 = vmatpush1.msra.mxu0 0.0
    %3452 = vmatprep.subr.mxu0 0.0
    %3453 = vmatpush1.msra.mxu0 0.0
    %3454 = vmatprep.subr.mxu0 0.0
    %3455 = vmatpush1.msra.mxu0 0.0
    %3456 = vmatprep.subr.mxu0 0.0
    %3457 = vmatpush1.msra.mxu0 0.0
    %3458 = vmatprep.subr.mxu0 0.0
    %3459 = vmatpush1.msra.mxu0 0.0
    %3460 = vmatprep.subr.mxu0 0.0
    %3461 = vmatpush1.msra.mxu0 0.0
    %3462 = vmatprep.subr.mxu0 0.0
    %3463 = vmatpush1.msra.mxu0 0.0
    %3464 = vmatprep.subr.mxu0 0.0
    %v3465 = vand.u32 %v3018, 4294901760
    %3466 = vmatpush1.msra.mxu0 %v3465
    %3467 = vmatprep.subr.mxu0 0.0
    %v3468 = vand.u32 %v3017, 4294901760
    %3469 = vmatpush1.msra.mxu0 %v3468
    %3470 = vmatprep.subr.mxu0 0.0
    %v3471 = vand.u32 %v3016, 4294901760
    %3472 = vmatpush1.msra.mxu0 %v3471
    %3473 = vmatprep.subr.mxu0 0.0
    %v3474 = vand.u32 %v3015, 4294901760
    %3475 = vmatpush1.msra.mxu0 %v3474
    %3476 = vmatprep.subr.mxu0 0.0
    %3477 = vmatpush2.msra.mxu0 0.0
    %3478 = vmatprep.subr.mxu0 0.0
    %3479 = vmatpush2.msra.mxu0 0.0
    %3480 = vmatprep.subr.mxu0 0.0
    %3481 = vmatpush2.msra.mxu0 0.0
    %3482 = vmatprep.subr.mxu0 0.0
    %3483 = vmatpush2.msra.mxu0 0.0
    %3484 = vmatprep.subr.mxu0 0.0
    %3485 = vmatpush2.msra.mxu0 0.0
    %3486 = vmatprep.subr.mxu0 0.0
    %3487 = vmatpush2.msra.mxu0 0.0
    %3488 = vmatprep.subr.mxu0 0.0
    %3489 = vmatpush2.msra.mxu0 0.0
    %3490 = vmatprep.subr.mxu0 0.0
    %3491 = vmatpush2.msra.mxu0 0.0
    %3492 = vmatprep.subr.mxu0 0.0
    %3493 = vmatpush2.msra.mxu0 0.0
    %3494 = vmatprep.subr.mxu0 0.0
    %3495 = vmatpush2.msra.mxu0 0.0
    %3496 = vmatprep.subr.mxu0 0.0
    %3497 = vmatpush2.msra.mxu0 0.0
    %3498 = vmatprep.subr.mxu0 0.0
    %3499 = vmatpush2.msra.mxu0 0.0
    %3500 = vmatprep.subr.mxu0 0.0
    %3501 = vmatpush2.msra.mxu0 0.0
    %3502 = vmatprep.subr.mxu0 0.0
    %3503 = vmatpush2.msra.mxu0 0.0
    %3504 = vmatprep.subr.mxu0 0.0
    %3505 = vmatpush2.msra.mxu0 0.0
    %3506 = vmatprep.subr.mxu0 0.0
    %3507 = vmatpush2.msra.mxu0 0.0
    %3508 = vmatprep.mubr.f32.mxu0 0.0
    %v3509 = vand.u32 %v3028, 4294901760
    %3510 = vmatmul.mubr.f32.gmra.mxu0 %v3509
    %v3511 = vpop.f32.mrf.mxu0
    %v3512 = vadd.f32 %v3437, %v3511
    %v3513 = vpop.f32.mrf.mxu0
    %3514 = vdwg.mxu0
    %v3515 = vtanh.pop %v3512
    %3516 = vst [vmem:[#allocation2] sm:$0xf] %v3515
    // Predicated region
    $region38: #{tpu_custom_call.1} parent=1 // pred_check
      _
    $region39: #{tpu_custom_call.1} parent=1 // pred_check_branch
      %3518 = sbr.rel (0) target = $region41
    $region40: #{tpu_custom_call.1} parent=1 // pred_region
      %s3520 = ssub.s32 64, 64
      %3521 = vsyncadd [#allocation3], %s3520
      %s3523 = sshll.u32 [#allocation2], 4
      %s3524 = int_to_ptr.vmem [resolvable:$true] %s3523
      %3526 = dma.vmem_to_hbm [thread:$0]  %s3524, 64, %s9, [#allocation3]
    $region41: #{tpu_custom_call.1} parent=1 // pred_fallthru
      _
    // Predicated region
    $region42: #{tpu_custom_call.1} parent=1 // pred_check
      _
    $region43: #{tpu_custom_call.1} parent=1 // pred_check_branch
      %3528 = sbr.rel (0) target = $region45
    $region44: #{tpu_custom_call.1} parent=1 // pred_region
      %3529 = dma.done [#allocation3], 64
    $region45: #{tpu_custom_call.1} parent=1 // pred_fallthru
      _
    %3530 = vsyncpa [#allocation3], 1

</llo_original>
